<compile_context>
chip_gen: v6e
topology: v6e:2x2x1
jax: 0.10.0
libtpu: 0.0.40
codegen_flags: <defaults>
</compile_context>

<pallas_src>
import functools
import math

import jax
import jax.numpy as jnp
from jax.experimental import pallas as pl
from jax.experimental.pallas import tpu as pltpu

_LN_EPS = 1e-5   # match PyTorch nn.LayerNorm default


# ----------------------------------------------------------------------------- helpers

def _row_tile(m):
    """Largest row tile that splits m into >=2 pipelined/parallel blocks, else m."""
    for t in (512, 256, 128):
        if m > t and m % t == 0:
            return t
    return m


def _parallel1():
    return pltpu.CompilerParams(dimension_semantics=("parallel",))


def _layernorm(x, g, b, eps):
    mean = jnp.mean(x, axis=-1, keepdims=True)
    cen = x - mean
    var = jnp.mean(cen * cen, axis=-1, keepdims=True)
    return cen * jax.lax.rsqrt(var + eps) * g + b


# ----------------------------------------------------------------------------- kernels

def _ln_qkv_kernel(x_ref, g_ref, bt_ref, w_ref, b_ref, q_ref, kv_ref, *, eps):
    h = _layernorm(x_ref[...], g_ref[...], bt_ref[...], eps)
    y = jnp.dot(h.astype(jnp.bfloat16), w_ref[...],
                preferred_element_type=jnp.float32) + b_ref[...]
    d = q_ref.shape[-1]
    q_ref[...] = y[:, :d]
    kv_ref[...] = y[:, d:]


def pallas_ln_qkv(x, gamma, beta, wqkv, bqkv, eps=_LN_EPS):
    """Fused LayerNorm + (D,3D) QKV matmul.  x: (M, D) -> q (M, D), kv (M, 2D)."""
    M, D = x.shape
    N = wqkv.shape[1]
    tm = _row_tile(M)
    return pl.pallas_call(
        functools.partial(_ln_qkv_kernel, eps=eps),
        out_shape=(jax.ShapeDtypeStruct((M, D), jnp.float32),
                   jax.ShapeDtypeStruct((M, N - D), jnp.float32)),
        grid=(M // tm,),
        in_specs=[
            pl.BlockSpec((tm, D), lambda i: (i, 0)),
            pl.BlockSpec((1, D), lambda i: (0, 0)),
            pl.BlockSpec((1, D), lambda i: (0, 0)),
            pl.BlockSpec((D, N), lambda i: (0, 0)),
            pl.BlockSpec((1, N), lambda i: (0, 0)),
        ],
        out_specs=(pl.BlockSpec((tm, D), lambda i: (i, 0)),
                   pl.BlockSpec((tm, N - D), lambda i: (i, 0))),
        compiler_params=_parallel1(),
    )(x, gamma.reshape(1, D), beta.reshape(1, D), wqkv, bqkv.reshape(1, N))


def _ln_linear_kernel(x_ref, g_ref, bt_ref, w_ref, b_ref, o_ref, *, eps, activation):
    h = _layernorm(x_ref[...], g_ref[...], bt_ref[...], eps)
    y = jnp.dot(h.astype(jnp.bfloat16), w_ref[...],
                preferred_element_type=jnp.float32) + b_ref[...]
    if activation == "relu":
        y = jnp.maximum(y, 0.0)
    o_ref[...] = y


def pallas_ln_linear(x, gamma, beta, w, b, activation=None, eps=_LN_EPS):
    """Fused LayerNorm + matmul.  x: (M, K) -> (M, N)."""
    M, K = x.shape
    N = w.shape[1]
    tm = _row_tile(M)
    return pl.pallas_call(
        functools.partial(_ln_linear_kernel, eps=eps, activation=activation),
        out_shape=jax.ShapeDtypeStruct((M, N), jnp.float32),
        grid=(M // tm,),
        in_specs=[
            pl.BlockSpec((tm, K), lambda i: (i, 0)),
            pl.BlockSpec((1, K), lambda i: (0, 0)),
            pl.BlockSpec((1, K), lambda i: (0, 0)),
            pl.BlockSpec((K, N), lambda i: (0, 0)),
            pl.BlockSpec((1, N), lambda i: (0, 0)),
        ],
        out_specs=pl.BlockSpec((tm, N), lambda i: (i, 0)),
        compiler_params=_parallel1(),
    )(x, gamma.reshape(1, K), beta.reshape(1, K), w, b.reshape(1, N))


def _linear_kernel(x_ref, w_ref, b_ref, o_ref, *, activation):
    y = jnp.dot(x_ref[...].astype(jnp.bfloat16), w_ref[...],
                preferred_element_type=jnp.float32) + b_ref[...]
    if activation == "relu":
        y = jnp.maximum(y, 0.0)
    o_ref[...] = y


def pallas_linear(x, w, b, activation=None):
    """Plain matmul + bias (+ReLU).  x: (M, K) -> (M, N)."""
    M, K = x.shape
    N = w.shape[1]
    tm = _row_tile(M)
    return pl.pallas_call(
        functools.partial(_linear_kernel, activation=activation),
        out_shape=jax.ShapeDtypeStruct((M, N), jnp.float32),
        grid=(M // tm,),
        in_specs=[
            pl.BlockSpec((tm, K), lambda i: (i, 0)),
            pl.BlockSpec((K, N), lambda i: (0, 0)),
            pl.BlockSpec((1, N), lambda i: (0, 0)),
        ],
        out_specs=pl.BlockSpec((tm, N), lambda i: (i, 0)),
        compiler_params=_parallel1(),
    )(x, w, b.reshape(1, N))


def _linear_res_kernel(x_ref, w_ref, b_ref, r_ref, o_ref):
    y = jnp.dot(x_ref[...].astype(jnp.bfloat16), w_ref[...],
                preferred_element_type=jnp.float32) + b_ref[...]
    o_ref[...] = y + r_ref[...]


def pallas_linear_residual(x, w, b, res):
    """Fused matmul + bias + residual add.  out = res + x @ w + b."""
    M, K = x.shape
    N = w.shape[1]
    tm = _row_tile(M)
    return pl.pallas_call(
        _linear_res_kernel,
        out_shape=jax.ShapeDtypeStruct((M, N), jnp.float32),
        grid=(M // tm,),
        in_specs=[
            pl.BlockSpec((tm, K), lambda i: (i, 0)),
            pl.BlockSpec((K, N), lambda i: (0, 0)),
            pl.BlockSpec((1, N), lambda i: (0, 0)),
            pl.BlockSpec((tm, N), lambda i: (i, 0)),
        ],
        out_specs=pl.BlockSpec((tm, N), lambda i: (i, 0)),
        compiler_params=_parallel1(),
    )(x, w, b.reshape(1, N), res)


def _ln_ffn_res_kernel(x_ref, g_ref, bt_ref, w1_ref, b1_ref, w2_ref, b2_ref, o_ref, *, eps):
    x = x_ref[...]
    h = _layernorm(x, g_ref[...], bt_ref[...], eps)
    f = jnp.dot(h.astype(jnp.bfloat16), w1_ref[...],
                preferred_element_type=jnp.float32) + b1_ref[...]
    f = jnp.maximum(f, 0.0)
    y = jnp.dot(f.astype(jnp.bfloat16), w2_ref[...],
                preferred_element_type=jnp.float32) + b2_ref[...]
    o_ref[...] = x + y


def pallas_ln_ffn_residual(x, gamma, beta, w1, b1, w2, b2, eps=_LN_EPS):
    """Fused LayerNorm + FFN (W1, ReLU, W2) + residual; the (tm, Dff) intermediate
    never leaves VMEM."""
    M, D = x.shape
    Dff = w1.shape[1]
    tm = _row_tile(M)
    return pl.pallas_call(
        functools.partial(_ln_ffn_res_kernel, eps=eps),
        out_shape=jax.ShapeDtypeStruct((M, D), jnp.float32),
        grid=(M // tm,),
        in_specs=[
            pl.BlockSpec((tm, D), lambda i: (i, 0)),
            pl.BlockSpec((1, D), lambda i: (0, 0)),
            pl.BlockSpec((1, D), lambda i: (0, 0)),
            pl.BlockSpec((D, Dff), lambda i: (0, 0)),
            pl.BlockSpec((1, Dff), lambda i: (0, 0)),
            pl.BlockSpec((Dff, D), lambda i: (0, 0)),
            pl.BlockSpec((1, D), lambda i: (0, 0)),
        ],
        out_specs=pl.BlockSpec((tm, D), lambda i: (i, 0)),
        compiler_params=_parallel1(),
    )(x, gamma.reshape(1, D), beta.reshape(1, D), w1, b1.reshape(1, Dff),
      w2, b2.reshape(1, D))


def _ln_kernel(x_ref, g_ref, bt_ref, o_ref, *, eps):
    o_ref[...] = _layernorm(x_ref[...], g_ref[...], bt_ref[...], eps)


def pallas_layernorm(x, gamma, beta, eps=_LN_EPS):
    M, D = x.shape
    tm = _row_tile(M)
    return pl.pallas_call(
        functools.partial(_ln_kernel, eps=eps),
        out_shape=jax.ShapeDtypeStruct((M, D), jnp.float32),
        grid=(M // tm,),
        in_specs=[
            pl.BlockSpec((tm, D), lambda i: (i, 0)),
            pl.BlockSpec((1, D), lambda i: (0, 0)),
            pl.BlockSpec((1, D), lambda i: (0, 0)),
        ],
        out_specs=pl.BlockSpec((tm, D), lambda i: (i, 0)),
        compiler_params=_parallel1(),
    )(x, gamma.reshape(1, D), beta.reshape(1, D))


def _frontend_kernel(x_ref, w_ref, b_ref, pe_ref, o_ref):
    y = jnp.dot(x_ref[0].astype(jnp.bfloat16), w_ref[...],
                preferred_element_type=jnp.float32) + b_ref[...]
    o_ref[0] = jnp.maximum(y, 0.0) + pe_ref[...]


def pallas_frontend(frames, w, b, pe):
    """Simplified visual frontend: per-frame linear+ReLU, positional encoding fused in.
    frames: (B, T, H*W) -> (B, T, D)."""
    B, T, F = frames.shape
    D = w.shape[1]
    return pl.pallas_call(
        _frontend_kernel,
        out_shape=jax.ShapeDtypeStruct((B, T, D), jnp.float32),
        grid=(B,),
        in_specs=[
            pl.BlockSpec((1, T, F), lambda i: (i, 0, 0)),
            pl.BlockSpec((F, D), lambda i: (0, 0)),
            pl.BlockSpec((1, D), lambda i: (0, 0)),
            pl.BlockSpec((T, D), lambda i: (0, 0)),
        ],
        out_specs=pl.BlockSpec((1, T, D), lambda i: (i, 0, 0)),
        compiler_params=_parallel1(),
    )(frames, w, b.reshape(1, D), pe)


def _mha_kernel(q_ref, kv_ref, o_ref, *, n_heads, causal, scale):
    q = q_ref[0]                       # (Tq, D) f32
    kv = kv_ref[0]                     # (Tk, 2D) f32
    d = q.shape[-1]
    tq, tk = q.shape[0], kv.shape[0]
    dh = d // n_heads

    qs = (q * scale).astype(jnp.bfloat16)      # fold 1/sqrt(dh) into q (Tq*dh work)
    kb = kv[:, :d].astype(jnp.bfloat16)
    vb = kv[:, d:].astype(jnp.bfloat16)

    if causal:
        row = jax.lax.broadcasted_iota(jnp.int32, (tq, tk), 0)
        col = jax.lax.broadcasted_iota(jnp.int32, (tq, tk), 1)
        allow = col <= row                      # in-kernel mask: no HBM traffic

    ctx = []
    for h in range(n_heads):                    # all heads of one batch element
        sl = slice(h * dh, (h + 1) * dh)
        s = jnp.dot(qs[:, sl], kb[:, sl].T, preferred_element_type=jnp.float32)
        if causal:
            s = jnp.where(allow, s, -1e9)
        m = jnp.max(s, axis=-1, keepdims=True)
        p = jnp.exp(s - m)                      # f32 softmax statistics
        inv = pl.reciprocal(jnp.sum(p, axis=-1, keepdims=True), approx=True)
        c = jnp.dot(p.astype(jnp.bfloat16), vb[:, sl],
                    preferred_element_type=jnp.float32)
        ctx.append(c * inv)
    o_ref[0] = jnp.concatenate(ctx, axis=-1)    # single lane-dense store


def pallas_mha(q, kv, n_heads, causal):
    """q: (B, Tq, D), kv: (B, Tk, 2D) -> (B, Tq, D). One grid step per batch element,
    all heads processed inside the kernel (no wrapper transposes)."""
    B, Tq, D = q.shape
    Tk = kv.shape[1]
    scale = 1.0 / math.sqrt(D // n_heads)
    return pl.pallas_call(
        functools.partial(_mha_kernel, n_heads=n_heads, causal=causal, scale=scale),
        out_shape=jax.ShapeDtypeStruct((B, Tq, D), jnp.float32),
        grid=(B,),
        in_specs=[
            pl.BlockSpec((1, Tq, D), lambda i: (i, 0, 0)),
            pl.BlockSpec((1, Tk, 2 * D), lambda i: (i, 0, 0)),
        ],
        out_specs=pl.BlockSpec((1, Tq, D), lambda i: (i, 0, 0)),
        compiler_params=_parallel1(),
    )(q, kv)


# ----------------------------------------------------------------------------- model glue

def sinusoid_pe(length, d_model):
    pos = jnp.arange(length, dtype=jnp.float32)[:, None]
    i = jnp.arange(d_model)[None, :]
    angle = pos / jnp.power(10000.0, (2 * (i // 2)).astype(jnp.float32) / d_model)
    return jnp.where(i % 2 == 0, jnp.sin(angle), jnp.cos(angle)).astype(jnp.float32)


def encoder_layer(x, p, n_heads):
    B, T, D = x.shape
    xf = x.reshape(B * T, D)
    # pre-LN self-attention (LN fused into the QKV matmul, no mask needed)
    q, kv = pallas_ln_qkv(xf, p["ln1"]["g"], p["ln1"]["b"],
                          p["mha"]["wqkv"], p["mha"]["bqkv"])
    ctx = pallas_mha(q.reshape(B, T, D), kv.reshape(B, T, 2 * D), n_heads, causal=False)
    xf = pallas_linear_residual(ctx.reshape(B * T, D), p["mha"]["wo"], p["mha"]["bo"], xf)
    # pre-LN FFN (LN + both matmuls + residual in one kernel)
    xf = pallas_ln_ffn_residual(xf, p["ln2"]["g"], p["ln2"]["b"],
                                p["ffn"]["w1"], p["ffn"]["b1"],
                                p["ffn"]["w2"], p["ffn"]["b2"])
    return xf.reshape(B, T, D)


def decoder_layer(y, enc_out, p, n_heads):
    B, Td, D = y.shape
    T = enc_out.shape[1]
    yf = y.reshape(B * Td, D)
    # causal self-attention
    q, kv = pallas_ln_qkv(yf, p["ln1"]["g"], p["ln1"]["b"],
                          p["self_mha"]["wqkv"], p["self_mha"]["bqkv"])
    ctx = pallas_mha(q.reshape(B, Td, D), kv.reshape(B, Td, 2 * D), n_heads, causal=True)
    yf = pallas_linear_residual(ctx.reshape(B * Td, D),
                                p["self_mha"]["wo"], p["self_mha"]["bo"], yf)
    # cross-attention (q from decoder stream with fused LN, fused K|V from encoder)
    qc = pallas_ln_linear(yf, p["ln2"]["g"], p["ln2"]["b"],
                          p["cross_mha"]["wq"], p["cross_mha"]["bq"])
    kvc = pallas_linear(enc_out.reshape(B * T, D),
                        p["cross_mha"]["wkv"], p["cross_mha"]["bkv"])
    ctx = pallas_mha(qc.reshape(B, Td, D), kvc.reshape(B, T, 2 * D), n_heads, causal=False)
    yf = pallas_linear_residual(ctx.reshape(B * Td, D),
                                p["cross_mha"]["wo"], p["cross_mha"]["bo"], yf)
    # FFN
    yf = pallas_ln_ffn_residual(yf, p["ln3"]["g"], p["ln3"]["b"],
                                p["ffn"]["w1"], p["ffn"]["b1"],
                                p["ffn"]["w2"], p["ffn"]["b2"])
    return yf.reshape(B, Td, D)


def transformer_forward(params, padded_input_visual, padded_target, *,
                        n_heads, sos_id, eos_id):
    B, T, H, W = padded_input_visual.shape
    D = params["frontend"]["w"].shape[1]

    # visual frontend (simplified, see TODO) with positional encoding fused in
    feat = pallas_frontend(padded_input_visual.reshape(B, T, H * W).astype(jnp.float32),
                           params["frontend"]["w"], params["frontend"]["b"],
                           sinusoid_pe(T, D))                      # (B, T, D)

    # encoder (input_lengths are all == T in the reference forward, so no padding mask)
    x = feat
    for lp in params["encoder"]["layers"]:
        x = encoder_layer(x, lp, n_heads)
    enc_out = pallas_layernorm(x.reshape(B * T, D),
                               params["encoder"]["ln_f"]["g"],
                               params["encoder"]["ln_f"]["b"]).reshape(B, T, D)

    # decoder target preprocessing: ys_in = <sos> + target, gold = target + <eos>
    To = padded_target.shape[1]
    sos = jnp.full((B, 1), sos_id, dtype=padded_target.dtype)
    eos = jnp.full((B, 1), eos_id, dtype=padded_target.dtype)
    ys_in = jnp.concatenate([sos, padded_target], axis=1)          # (B, To+1)
    gold = jnp.concatenate([padded_target, eos], axis=1)           # (B, To+1)
    Td = To + 1

    emb = jnp.take(params["decoder"]["embed"], ys_in, axis=0) * math.sqrt(D)
    y = emb + sinusoid_pe(Td, D)[None]
    for lp in params["decoder"]["layers"]:
        y = decoder_layer(y, enc_out, lp, n_heads)

    # final LayerNorm fused into the vocab projection
    pred = pallas_ln_linear(y.reshape(B * Td, D),
                            params["decoder"]["ln_f"]["g"], params["decoder"]["ln_f"]["b"],
                            params["decoder"]["w_out"],
                            params["decoder"]["b_out"]).reshape(B, Td, -1)
    return pred, gold


# ----------------------------------------------------------------------------- params

class _KeyGen:
    def __init__(self, key):
        self._key = key

    def __call__(self):
        self._key, sub = jax.random.split(self._key)
        return sub


def _xavier(kg, shape):
    limit = math.sqrt(6.0 / (shape[0] + shape[1]))
    return jax.random.uniform(kg(), shape, jnp.float32, -limit, limit)


def _init_ln(d):
    return {"g": jnp.ones((d,), jnp.float32), "b": jnp.zeros((d,), jnp.float32)}


def _init_self_mha(kg, d):
    wq, wk, wv = _xavier(kg, (d, d)), _xavier(kg, (d, d)), _xavier(kg, (d, d))
    return {"wqkv": jnp.concatenate([wq, wk, wv], axis=1).astype(jnp.bfloat16),
            "bqkv": jnp.zeros((3 * d,), jnp.float32),
            "wo": _xavier(kg, (d, d)).astype(jnp.bfloat16),
            "bo": jnp.zeros((d,), jnp.float32)}


def _init_cross_mha(kg, d):
    wq, wk, wv = _xavier(kg, (d, d)), _xavier(kg, (d, d)), _xavier(kg, (d, d))
    return {"wq": wq.astype(jnp.bfloat16), "bq": jnp.zeros((d,), jnp.float32),
            "wkv": jnp.concatenate([wk, wv], axis=1).astype(jnp.bfloat16),
            "bkv": jnp.zeros((2 * d,), jnp.float32),
            "wo": _xavier(kg, (d, d)).astype(jnp.bfloat16),
            "bo": jnp.zeros((d,), jnp.float32)}


def _init_ffn(kg, d, dff):
    return {"w1": _xavier(kg, (d, dff)).astype(jnp.bfloat16),
            "b1": jnp.zeros((dff,), jnp.float32),
            "w2": _xavier(kg, (dff, d)).astype(jnp.bfloat16),
            "b2": jnp.zeros((d,), jnp.float32)}


def init_params(key, *, frame_dim, d_model, d_ff, n_heads, n_enc, n_dec, vocab):
    kg = _KeyGen(key)
    enc_layers = [{"ln1": _init_ln(d_model), "mha": _init_self_mha(kg, d_model),
                   "ln2": _init_ln(d_model), "ffn": _init_ffn(kg, d_model, d_ff)}
                  for _ in range(n_enc)]
    dec_layers = [{"ln1": _init_ln(d_model), "self_mha": _init_self_mha(kg, d_model),
                   "ln2": _init_ln(d_model), "cross_mha": _init_cross_mha(kg, d_model),
                   "ln3": _init_ln(d_model), "ffn": _init_ffn(kg, d_model, d_ff)}
                  for _ in range(n_dec)]
    return {
        "frontend": {"w": _xavier(kg, (frame_dim, d_model)).astype(jnp.bfloat16),
                     "b": jnp.zeros((d_model,), jnp.float32)},
        "encoder": {"layers": enc_layers, "ln_f": _init_ln(d_model)},
        "decoder": {"embed": _xavier(kg, (vocab, d_model)),
                    "layers": dec_layers, "ln_f": _init_ln(d_model),
                    "w_out": _xavier(kg, (d_model, vocab)).astype(jnp.bfloat16),
                    "b_out": jnp.zeros((vocab,), jnp.float32)},
    }


# ----------------------------------------------------------------------------- main

if __name__ == "__main__":
    B, T, H, W = 2, 8, 16, 16
    D_MODEL, D_FF, N_HEADS = 32, 64, 4
    N_ENC, N_DEC = 2, 2
    VOCAB, TO = 40, 6
    SOS_ID, EOS_ID = 1, 2

    root = jax.random.PRNGKey(0)
    k_vid, k_tgt, k_par = jax.random.split(root, 3)

    padded_input_visual = jax.random.normal(k_vid, (B, T, H, W), jnp.float32)
    padded_target = jax.random.randint(k_tgt, (B, TO), 3, VOCAB, dtype=jnp.int32)

    params = init_params(k_par, frame_dim=H * W, d_model=D_MODEL, d_ff=D_FF,
                         n_heads=N_HEADS, n_enc=N_ENC, n_dec=N_DEC, vocab=VOCAB)

    fwd = jax.jit(functools.partial(transformer_forward, n_heads=N_HEADS,
                                    sos_id=SOS_ID, eos_id=EOS_ID))
    pred, gold = fwd(params, padded_input_visual, padded_target)
    jax.block_until_ready((pred, gold))

    assert pred.shape == (B, TO + 1, VOCAB) and pred.dtype == jnp.float32
    assert gold.shape == (B, TO + 1)
    assert bool(jnp.all(jnp.isfinite(pred)))
    print("KERNEL_OK")
</pallas_src>

<mosaic_0001>
module attributes {stable_mosaic.version = 11 : i64} {
  func.func @_frontend_kernel(%arg0: i32, %arg1: memref<1x8x256xf32, #tpu.memory_space<vmem>>, %arg2: memref<256x32xbf16, #tpu.memory_space<vmem>>, %arg3: memref<1x32xf32, #tpu.memory_space<vmem>>, %arg4: memref<8x32xf32, #tpu.memory_space<vmem>>, %arg5: memref<1x8x32xf32, #tpu.memory_space<vmem>>) attributes {dimension_semantics = [#tpu.dimension_semantics<parallel>], iteration_bounds = array<i64: 2>, scalar_prefetch = 0 : i64, scratch_operands = 0 : i64, tpu.core_type = #tpu.core_type<tc>, window_params = [{transform_indices = @transform_0, window_bounds = array<i64: 1, 8, 256>}, {pipeline_mode = #tpu.pipeline_mode<synchronous>, transform_indices = @transform_1, window_bounds = array<i64: 256, 32>}, {pipeline_mode = #tpu.pipeline_mode<synchronous>, transform_indices = @transform_2, window_bounds = array<i64: 1, 32>}, {pipeline_mode = #tpu.pipeline_mode<synchronous>, transform_indices = @transform_3, window_bounds = array<i64: 8, 32>}, {transform_indices = @transform_4, window_bounds = array<i64: 1, 8, 32>}]} {
    %c0 = arith.constant 0 : index
    %c0_0 = arith.constant 0 : index
    %c0_1 = arith.constant 0 : index
    %0 = vector.load %arg1[%c0, %c0_0, %c0_1] : memref<1x8x256xf32, #tpu.memory_space<vmem>>, vector<1x8x256xf32>
    %1 = vector.shape_cast %0 : vector<1x8x256xf32> to vector<8x256xf32>
    %2 = arith.truncf %1 : vector<8x256xf32> to vector<8x256xbf16>
    %c0_2 = arith.constant 0 : index
    %c0_3 = arith.constant 0 : index
    %3 = vector.load %arg2[%c0_2, %c0_3] : memref<256x32xbf16, #tpu.memory_space<vmem>>, vector<256x32xbf16>
    %cst = arith.constant dense<0.000000e+00> : vector<8x32xf32>
    %4 = tpu.matmul %2, %3, %cst {dimension_numbers = #tpu.dot_dimension_numbers<[1], [0], [0], [1], [0, 0, 1, 1], [], []>} : vector<8x256xbf16>, vector<256x32xbf16>, vector<8x32xf32> -> vector<8x32xf32>
    %c0_4 = arith.constant 0 : index
    %c0_5 = arith.constant 0 : index
    %5 = vector.load %arg3[%c0_4, %c0_5] : memref<1x32xf32, #tpu.memory_space<vmem>>, vector<1x32xf32>
    %6 = vector.broadcast %5 : vector<1x32xf32> to vector<8x32xf32>
    %7 = arith.addf %4, %6 : vector<8x32xf32>
    %cst_6 = arith.constant 0.000000e+00 : f32
    %8 = vector.broadcast %cst_6 : f32 to vector<8x32xf32>
    %9 = arith.maximumf %7, %8 : vector<8x32xf32>
    %c0_7 = arith.constant 0 : index
    %c0_8 = arith.constant 0 : index
    %10 = vector.load %arg4[%c0_7, %c0_8] : memref<8x32xf32, #tpu.memory_space<vmem>>, vector<8x32xf32>
    %11 = arith.addf %9, %10 : vector<8x32xf32>
    %c0_9 = arith.constant 0 : index
    %c0_10 = arith.constant 0 : index
    %c0_11 = arith.constant 0 : index
    %12 = vector.load %arg5[%c0_9, %c0_10, %c0_11] : memref<1x8x32xf32, #tpu.memory_space<vmem>>, vector<1x8x32xf32>
    %13 = vector.shape_cast %12 : vector<1x8x32xf32> to vector<8x32xf32>
    %14 = vector.shape_cast %11 : vector<8x32xf32> to vector<1x8x32xf32>
    tpu.vector_store %arg5[%c0_9, %c0_10, %c0_11], %14 {strides = array<i32>} : memref<1x8x32xf32, #tpu.memory_space<vmem>>, vector<1x8x32xf32>,
    return
  }
  func.func @transform_0(%arg0: i32) -> (i32, i32, i32) {
    %c0_i32 = arith.constant 0 : i32
    %c0_i32_0 = arith.constant 0 : i32
    %c0_i32_1 = arith.constant 0 : i32
    return %arg0, %c0_i32, %c0_i32_0 : i32, i32, i32
  }
  func.func @transform_1(%arg0: i32) -> (i32, i32) {
    %c0_i32 = arith.constant 0 : i32
    %c0_i32_0 = arith.constant 0 : i32
    %c0_i32_1 = arith.constant 0 : i32
    return %c0_i32, %c0_i32_0 : i32, i32
  }
  func.func @transform_2(%arg0: i32) -> (i32, i32) {
    %c0_i32 = arith.constant 0 : i32
    %c0_i32_0 = arith.constant 0 : i32
    %c0_i32_1 = arith.constant 0 : i32
    return %c0_i32, %c0_i32_0 : i32, i32
  }
  func.func @transform_3(%arg0: i32) -> (i32, i32) {
    %c0_i32 = arith.constant 0 : i32
    %c0_i32_0 = arith.constant 0 : i32
    %c0_i32_1 = arith.constant 0 : i32
    return %c0_i32, %c0_i32_0 : i32, i32
  }
  func.func @transform_4(%arg0: i32) -> (i32, i32, i32) {
    %c0_i32 = arith.constant 0 : i32
    %c0_i32_0 = arith.constant 0 : i32
    %c0_i32_1 = arith.constant 0 : i32
    return %arg0, %c0_i32, %c0_i32_0 : i32, i32, i32
  }
}

module attributes {stable_mosaic.version = 11 : i64} {
  func.func @_mha_kernel(%arg0: i32, %arg1: memref<1x8x32xf32, #tpu.memory_space<vmem>>, %arg2: memref<1x8x64xf32, #tpu.memory_space<vmem>>, %arg3: memref<1x8x32xf32, #tpu.memory_space<vmem>>) attributes {dimension_semantics = [#tpu.dimension_semantics<parallel>], iteration_bounds = array<i64: 2>, scalar_prefetch = 0 : i64, scratch_operands = 0 : i64, tpu.core_type = #tpu.core_type<tc>, window_params = [{transform_indices = @transform_0, window_bounds = array<i64: 1, 8, 32>}, {transform_indices = @transform_1, window_bounds = array<i64: 1, 8, 64>}, {transform_indices = @transform_2, window_bounds = array<i64: 1, 8, 32>}]} {
    %c0 = arith.constant 0 : index
    %c0_0 = arith.constant 0 : index
    %c0_1 = arith.constant 0 : index
    %0 = vector.load %arg1[%c0, %c0_0, %c0_1] : memref<1x8x32xf32, #tpu.memory_space<vmem>>, vector<1x8x32xf32>
    %1 = vector.shape_cast %0 : vector<1x8x32xf32> to vector<8x32xf32>
    %c0_2 = arith.constant 0 : index
    %c0_3 = arith.constant 0 : index
    %c0_4 = arith.constant 0 : index
    %2 = vector.load %arg2[%c0_2, %c0_3, %c0_4] : memref<1x8x64xf32, #tpu.memory_space<vmem>>, vector<1x8x64xf32>
    %3 = vector.shape_cast %2 : vector<1x8x64xf32> to vector<8x64xf32>
    %cst = arith.constant 0.353553385 : f32
    %4 = vector.broadcast %cst : f32 to vector<8x32xf32>
    %5 = arith.mulf %1, %4 : vector<8x32xf32>
    %6 = arith.truncf %5 : vector<8x32xf32> to vector<8x32xbf16>
    %7 = vector.extract_strided_slice %3 {offsets = [0, 0], sizes = [8, 32], strides = [1, 1]} : vector<8x64xf32> to vector<8x32xf32>
    %8 = arith.truncf %7 : vector<8x32xf32> to vector<8x32xbf16>
    %9 = vector.extract_strided_slice %3 {offsets = [0, 32], sizes = [8, 32], strides = [1, 1]} : vector<8x64xf32> to vector<8x32xf32>
    %10 = arith.truncf %9 : vector<8x32xf32> to vector<8x32xbf16>
    %11 = vector.extract_strided_slice %6 {offsets = [0, 0], sizes = [8, 8], strides = [1, 1]} : vector<8x32xbf16> to vector<8x8xbf16>
    %12 = vector.extract_strided_slice %8 {offsets = [0, 0], sizes = [8, 8], strides = [1, 1]} : vector<8x32xbf16> to vector<8x8xbf16>
    %13 = tpu.transpose %12, [1, 0] : vector<8x8xbf16> -> vector<8x8xbf16>
    %cst_5 = arith.constant dense<0.000000e+00> : vector<8x8xf32>
    %14 = tpu.matmul %11, %13, %cst_5 {dimension_numbers = #tpu.dot_dimension_numbers<[1], [0], [0], [1], [0, 0, 1, 1], [], []>} : vector<8x8xbf16>, vector<8x8xbf16>, vector<8x8xf32> -> vector<8x8xf32>
    %cst_6 = arith.constant dense<0xFF800000> : vector<8xf32>
    %15 = vector.multi_reduction <maximumf>, %14, %cst_6 [1] : vector<8x8xf32> to vector<8xf32>
    %16 = vector.shape_cast %15 : vector<8xf32> to vector<8x1xf32>
    %17 = vector.broadcast %16 : vector<8x1xf32> to vector<8x8xf32>
    %18 = arith.subf %14, %17 : vector<8x8xf32>
    %19 = math.exp %18 : vector<8x8xf32>
    %cst_7 = arith.constant dense<0.000000e+00> : vector<8xf32>
    %20 = vector.multi_reduction <add>, %19, %cst_7 [1] : vector<8x8xf32> to vector<8xf32>
    %21 = vector.shape_cast %20 : vector<8xf32> to vector<8x1xf32>
    %22 = tpu.reciprocal %21 {approx = true} : vector<8x1xf32> -> vector<8x1xf32>
    %23 = arith.truncf %19 : vector<8x8xf32> to vector<8x8xbf16>
    %24 = vector.extract_strided_slice %10 {offsets = [0, 0], sizes = [8, 8], strides = [1, 1]} : vector<8x32xbf16> to vector<8x8xbf16>
    %cst_8 = arith.constant dense<0.000000e+00> : vector<8x8xf32>
    %25 = tpu.matmul %23, %24, %cst_8 {dimension_numbers = #tpu.dot_dimension_numbers<[1], [0], [0], [1], [0, 0, 1, 1], [], []>} : vector<8x8xbf16>, vector<8x8xbf16>, vector<8x8xf32> -> vector<8x8xf32>
    %26 = vector.broadcast %22 : vector<8x1xf32> to vector<8x8xf32>
    %27 = arith.mulf %25, %26 : vector<8x8xf32>
    %28 = vector.extract_strided_slice %6 {offsets = [0, 8], sizes = [8, 8], strides = [1, 1]} : vector<8x32xbf16> to vector<8x8xbf16>
    %29 = vector.extract_strided_slice %8 {offsets = [0, 8], sizes = [8, 8], strides = [1, 1]} : vector<8x32xbf16> to vector<8x8xbf16>
    %30 = tpu.transpose %29, [1, 0] : vector<8x8xbf16> -> vector<8x8xbf16>
    %cst_9 = arith.constant dense<0.000000e+00> : vector<8x8xf32>
    %31 = tpu.matmul %28, %30, %cst_9 {dimension_numbers = #tpu.dot_dimension_numbers<[1], [0], [0], [1], [0, 0, 1, 1], [], []>} : vector<8x8xbf16>, vector<8x8xbf16>, vector<8x8xf32> -> vector<8x8xf32>
    %cst_10 = arith.constant dense<0xFF800000> : vector<8xf32>
    %32 = vector.multi_reduction <maximumf>, %31, %cst_10 [1] : vector<8x8xf32> to vector<8xf32>
    %33 = vector.shape_cast %32 : vector<8xf32> to vector<8x1xf32>
    %34 = vector.broadcast %33 : vector<8x1xf32> to vector<8x8xf32>
    %35 = arith.subf %31, %34 : vector<8x8xf32>
    %36 = math.exp %35 : vector<8x8xf32>
    %cst_11 = arith.constant dense<0.000000e+00> : vector<8xf32>
    %37 = vector.multi_reduction <add>, %36, %cst_11 [1] : vector<8x8xf32> to vector<8xf32>
    %38 = vector.shape_cast %37 : vector<8xf32> to vector<8x1xf32>
    %39 = tpu.reciprocal %38 {approx = true} : vector<8x1xf32> -> vector<8x1xf32>
    %40 = arith.truncf %36 : vector<8x8xf32> to vector<8x8xbf16>
    %41 = vector.extract_strided_slice %10 {offsets = [0, 8], sizes = [8, 8], strides = [1, 1]} : vector<8x32xbf16> to vector<8x8xbf16>
    %cst_12 = arith.constant dense<0.000000e+00> : vector<8x8xf32>
    %42 = tpu.matmul %40, %41, %cst_12 {dimension_numbers = #tpu.dot_dimension_numbers<[1], [0], [0], [1], [0, 0, 1, 1], [], []>} : vector<8x8xbf16>, vector<8x8xbf16>, vector<8x8xf32> -> vector<8x8xf32>
    %43 = vector.broadcast %39 : vector<8x1xf32> to vector<8x8xf32>
    %44 = arith.mulf %42, %43 : vector<8x8xf32>
    %45 = vector.extract_strided_slice %6 {offsets = [0, 16], sizes = [8, 8], strides = [1, 1]} : vector<8x32xbf16> to vector<8x8xbf16>
    %46 = vector.extract_strided_slice %8 {offsets = [0, 16], sizes = [8, 8], strides = [1, 1]} : vector<8x32xbf16> to vector<8x8xbf16>
    %47 = tpu.transpose %46, [1, 0] : vector<8x8xbf16> -> vector<8x8xbf16>
    %cst_13 = arith.constant dense<0.000000e+00> : vector<8x8xf32>
    %48 = tpu.matmul %45, %47, %cst_13 {dimension_numbers = #tpu.dot_dimension_numbers<[1], [0], [0], [1], [0, 0, 1, 1], [], []>} : vector<8x8xbf16>, vector<8x8xbf16>, vector<8x8xf32> -> vector<8x8xf32>
    %cst_14 = arith.constant dense<0xFF800000> : vector<8xf32>
    %49 = vector.multi_reduction <maximumf>, %48, %cst_14 [1] : vector<8x8xf32> to vector<8xf32>
    %50 = vector.shape_cast %49 : vector<8xf32> to vector<8x1xf32>
    %51 = vector.broadcast %50 : vector<8x1xf32> to vector<8x8xf32>
    %52 = arith.subf %48, %51 : vector<8x8xf32>
    %53 = math.exp %52 : vector<8x8xf32>
    %cst_15 = arith.constant dense<0.000000e+00> : vector<8xf32>
    %54 = vector.multi_reduction <add>, %53, %cst_15 [1] : vector<8x8xf32> to vector<8xf32>
    %55 = vector.shape_cast %54 : vector<8xf32> to vector<8x1xf32>
    %56 = tpu.reciprocal %55 {approx = true} : vector<8x1xf32> -> vector<8x1xf32>
    %57 = arith.truncf %53 : vector<8x8xf32> to vector<8x8xbf16>
    %58 = vector.extract_strided_slice %10 {offsets = [0, 16], sizes = [8, 8], strides = [1, 1]} : vector<8x32xbf16> to vector<8x8xbf16>
    %cst_16 = arith.constant dense<0.000000e+00> : vector<8x8xf32>
    %59 = tpu.matmul %57, %58, %cst_16 {dimension_numbers = #tpu.dot_dimension_numbers<[1], [0], [0], [1], [0, 0, 1, 1], [], []>} : vector<8x8xbf16>, vector<8x8xbf16>, vector<8x8xf32> -> vector<8x8xf32>
    %60 = vector.broadcast %56 : vector<8x1xf32> to vector<8x8xf32>
    %61 = arith.mulf %59, %60 : vector<8x8xf32>
    %62 = vector.extract_strided_slice %6 {offsets = [0, 24], sizes = [8, 8], strides = [1, 1]} : vector<8x32xbf16> to vector<8x8xbf16>
    %63 = vector.extract_strided_slice %8 {offsets = [0, 24], sizes = [8, 8], strides = [1, 1]} : vector<8x32xbf16> to vector<8x8xbf16>
    %64 = tpu.transpose %63, [1, 0] : vector<8x8xbf16> -> vector<8x8xbf16>
    %cst_17 = arith.constant dense<0.000000e+00> : vector<8x8xf32>
    %65 = tpu.matmul %62, %64, %cst_17 {dimension_numbers = #tpu.dot_dimension_numbers<[1], [0], [0], [1], [0, 0, 1, 1], [], []>} : vector<8x8xbf16>, vector<8x8xbf16>, vector<8x8xf32> -> vector<8x8xf32>
    %cst_18 = arith.constant dense<0xFF800000> : vector<8xf32>
    %66 = vector.multi_reduction <maximumf>, %65, %cst_18 [1] : vector<8x8xf32> to vector<8xf32>
    %67 = vector.shape_cast %66 : vector<8xf32> to vector<8x1xf32>
    %68 = vector.broadcast %67 : vector<8x1xf32> to vector<8x8xf32>
    %69 = arith.subf %65, %68 : vector<8x8xf32>
    %70 = math.exp %69 : vector<8x8xf32>
    %cst_19 = arith.constant dense<0.000000e+00> : vector<8xf32>
    %71 = vector.multi_reduction <add>, %70, %cst_19 [1] : vector<8x8xf32> to vector<8xf32>
    %72 = vector.shape_cast %71 : vector<8xf32> to vector<8x1xf32>
    %73 = tpu.reciprocal %72 {approx = true} : vector<8x1xf32> -> vector<8x1xf32>
    %74 = arith.truncf %70 : vector<8x8xf32> to vector<8x8xbf16>
    %75 = vector.extract_strided_slice %10 {offsets = [0, 24], sizes = [8, 8], strides = [1, 1]} : vector<8x32xbf16> to vector<8x8xbf16>
    %cst_20 = arith.constant dense<0.000000e+00> : vector<8x8xf32>
    %76 = tpu.matmul %74, %75, %cst_20 {dimension_numbers = #tpu.dot_dimension_numbers<[1], [0], [0], [1], [0, 0, 1, 1], [], []>} : vector<8x8xbf16>, vector<8x8xbf16>, vector<8x8xf32> -> vector<8x8xf32>
    %77 = vector.broadcast %73 : vector<8x1xf32> to vector<8x8xf32>
    %78 = arith.mulf %76, %77 : vector<8x8xf32>
    %79 = tpu.concatenate %27, %44, %61, %78 in 1 : vector<8x8xf32>, vector<8x8xf32>, vector<8x8xf32>, vector<8x8xf32> -> vector<8x32xf32>
    %c0_21 = arith.constant 0 : index
    %c0_22 = arith.constant 0 : index
    %c0_23 = arith.constant 0 : index
    %80 = vector.load %arg3[%c0_21, %c0_22, %c0_23] : memref<1x8x32xf32, #tpu.memory_space<vmem>>, vector<1x8x32xf32>
    %81 = vector.shape_cast %80 : vector<1x8x32xf32> to vector<8x32xf32>
    %82 = vector.shape_cast %79 : vector<8x32xf32> to vector<1x8x32xf32>
    tpu.vector_store %arg3[%c0_21, %c0_22, %c0_23], %82 {strides = array<i32>} : memref<1x8x32xf32, #tpu.memory_space<vmem>>, vector<1x8x32xf32>,
    return
  }
  func.func @transform_0(%arg0: i32) -> (i32, i32, i32) {
    %c0_i32 = arith.constant 0 : i32
    %c0_i32_0 = arith.constant 0 : i32
    %c0_i32_1 = arith.constant 0 : i32
    return %arg0, %c0_i32, %c0_i32_0 : i32, i32, i32
  }
  func.func @transform_1(%arg0: i32) -> (i32, i32, i32) {
    %c0_i32 = arith.constant 0 : i32
    %c0_i32_0 = arith.constant 0 : i32
    %c0_i32_1 = arith.constant 0 : i32
    return %arg0, %c0_i32, %c0_i32_0 : i32, i32, i32
  }
  func.func @transform_2(%arg0: i32) -> (i32, i32, i32) {
    %c0_i32 = arith.constant 0 : i32
    %c0_i32_0 = arith.constant 0 : i32
    %c0_i32_1 = arith.constant 0 : i32
    return %arg0, %c0_i32, %c0_i32_0 : i32, i32, i32
  }
}

module attributes {stable_mosaic.version = 11 : i64} {
  func.func @_ln_qkv_kernel(%arg0: i32, %arg1: memref<16x32xf32, #tpu.memory_space<vmem>>, %arg2: memref<1x32xf32, #tpu.memory_space<vmem>>, %arg3: memref<1x32xf32, #tpu.memory_space<vmem>>, %arg4: memref<32x96xbf16, #tpu.memory_space<vmem>>, %arg5: memref<1x96xf32, #tpu.memory_space<vmem>>, %arg6: memref<16x32xf32, #tpu.memory_space<vmem>>, %arg7: memref<16x64xf32, #tpu.memory_space<vmem>>) attributes {dimension_semantics = [#tpu.dimension_semantics<parallel>], iteration_bounds = array<i64: 1>, scalar_prefetch = 0 : i64, scratch_operands = 0 : i64, tpu.core_type = #tpu.core_type<tc>, window_params = [{transform_indices = @transform_0, window_bounds = array<i64: 16, 32>}, {pipeline_mode = #tpu.pipeline_mode<synchronous>, transform_indices = @transform_1, window_bounds = array<i64: 1, 32>}, {pipeline_mode = #tpu.pipeline_mode<synchronous>, transform_indices = @transform_2, window_bounds = array<i64: 1, 32>}, {pipeline_mode = #tpu.pipeline_mode<synchronous>, transform_indices = @transform_3, window_bounds = array<i64: 32, 96>}, {pipeline_mode = #tpu.pipeline_mode<synchronous>, transform_indices = @transform_4, window_bounds = array<i64: 1, 96>}, {transform_indices = @transform_5, window_bounds = array<i64: 16, 32>}, {transform_indices = @transform_6, window_bounds = array<i64: 16, 64>}]} {
    %c0 = arith.constant 0 : index
    %c0_0 = arith.constant 0 : index
    %0 = vector.load %arg1[%c0, %c0_0] : memref<16x32xf32, #tpu.memory_space<vmem>>, vector<16x32xf32>
    %c0_1 = arith.constant 0 : index
    %c0_2 = arith.constant 0 : index
    %1 = vector.load %arg2[%c0_1, %c0_2] : memref<1x32xf32, #tpu.memory_space<vmem>>, vector<1x32xf32>
    %c0_3 = arith.constant 0 : index
    %c0_4 = arith.constant 0 : index
    %2 = vector.load %arg3[%c0_3, %c0_4] : memref<1x32xf32, #tpu.memory_space<vmem>>, vector<1x32xf32>
    %cst = arith.constant dense<0.000000e+00> : vector<16xf32>
    %3 = vector.multi_reduction <add>, %0, %cst [1] : vector<16x32xf32> to vector<16xf32>
    %4 = vector.shape_cast %3 : vector<16xf32> to vector<16x1xf32>
    %cst_5 = arith.constant 3.200000e+01 : f32
    %5 = vector.broadcast %cst_5 : f32 to vector<16x1xf32>
    %6 = arith.divf %4, %5 : vector<16x1xf32>
    %7 = vector.broadcast %6 : vector<16x1xf32> to vector<16x32xf32>
    %8 = arith.subf %0, %7 : vector<16x32xf32>
    %9 = arith.mulf %8, %8 : vector<16x32xf32>
    %cst_6 = arith.constant dense<0.000000e+00> : vector<16xf32>
    %10 = vector.multi_reduction <add>, %9, %cst_6 [1] : vector<16x32xf32> to vector<16xf32>
    %11 = vector.shape_cast %10 : vector<16xf32> to vector<16x1xf32>
    %cst_7 = arith.constant 3.200000e+01 : f32
    %12 = vector.broadcast %cst_7 : f32 to vector<16x1xf32>
    %13 = arith.divf %11, %12 : vector<16x1xf32>
    %cst_8 = arith.constant 9.99999974E-6 : f32
    %14 = vector.broadcast %cst_8 : f32 to vector<16x1xf32>
    %15 = arith.addf %13, %14 : vector<16x1xf32>
    %16 = math.rsqrt %15 : vector<16x1xf32>
    %17 = vector.broadcast %16 : vector<16x1xf32> to vector<16x32xf32>
    %18 = arith.mulf %8, %17 : vector<16x32xf32>
    %19 = vector.broadcast %1 : vector<1x32xf32> to vector<16x32xf32>
    %20 = arith.mulf %18, %19 : vector<16x32xf32>
    %21 = vector.broadcast %2 : vector<1x32xf32> to vector<16x32xf32>
    %22 = arith.addf %20, %21 : vector<16x32xf32>
    %23 = arith.truncf %22 : vector<16x32xf32> to vector<16x32xbf16>
    %c0_9 = arith.constant 0 : index
    %c0_10 = arith.constant 0 : index
    %24 = vector.load %arg4[%c0_9, %c0_10] : memref<32x96xbf16, #tpu.memory_space<vmem>>, vector<32x96xbf16>
    %cst_11 = arith.constant dense<0.000000e+00> : vector<16x96xf32>
    %25 = tpu.matmul %23, %24, %cst_11 {dimension_numbers = #tpu.dot_dimension_numbers<[1], [0], [0], [1], [0, 0, 1, 1], [], []>} : vector<16x32xbf16>, vector<32x96xbf16>, vector<16x96xf32> -> vector<16x96xf32>
    %c0_12 = arith.constant 0 : index
    %c0_13 = arith.constant 0 : index
    %26 = vector.load %arg5[%c0_12, %c0_13] : memref<1x96xf32, #tpu.memory_space<vmem>>, vector<1x96xf32>
    %27 = vector.broadcast %26 : vector<1x96xf32> to vector<16x96xf32>
    %28 = arith.addf %25, %27 : vector<16x96xf32>
    %29 = vector.extract_strided_slice %28 {offsets = [0, 0], sizes = [16, 32], strides = [1, 1]} : vector<16x96xf32> to vector<16x32xf32>
    %c0_14 = arith.constant 0 : index
    %c0_15 = arith.constant 0 : index
    %30 = vector.load %arg6[%c0_14, %c0_15] : memref<16x32xf32, #tpu.memory_space<vmem>>, vector<16x32xf32>
    tpu.vector_store %arg6[%c0_14, %c0_15], %29 {strides = array<i32>} : memref<16x32xf32, #tpu.memory_space<vmem>>, vector<16x32xf32>,
    %31 = vector.extract_strided_slice %28 {offsets = [0, 32], sizes = [16, 64], strides = [1, 1]} : vector<16x96xf32> to vector<16x64xf32>
    %c0_16 = arith.constant 0 : index
    %c0_17 = arith.constant 0 : index
    %32 = vector.load %arg7[%c0_16, %c0_17] : memref<16x64xf32, #tpu.memory_space<vmem>>, vector<16x64xf32>
    tpu.vector_store %arg7[%c0_16, %c0_17], %31 {strides = array<i32>} : memref<16x64xf32, #tpu.memory_space<vmem>>, vector<16x64xf32>,
    return
  }
  func.func @transform_0(%arg0: i32) -> (i32, i32) {
    %c0_i32 = arith.constant 0 : i32
    %c0_i32_0 = arith.constant 0 : i32
    return %arg0, %c0_i32 : i32, i32
  }
  func.func @transform_1(%arg0: i32) -> (i32, i32) {
    %c0_i32 = arith.constant 0 : i32
    %c0_i32_0 = arith.constant 0 : i32
    %c0_i32_1 = arith.constant 0 : i32
    return %c0_i32, %c0_i32_0 : i32, i32
  }
  func.func @transform_2(%arg0: i32) -> (i32, i32) {
    %c0_i32 = arith.constant 0 : i32
    %c0_i32_0 = arith.constant 0 : i32
    %c0_i32_1 = arith.constant 0 : i32
    return %c0_i32, %c0_i32_0 : i32, i32
  }
  func.func @transform_3(%arg0: i32) -> (i32, i32) {
    %c0_i32 = arith.constant 0 : i32
    %c0_i32_0 = arith.constant 0 : i32
    %c0_i32_1 = arith.constant 0 : i32
    return %c0_i32, %c0_i32_0 : i32, i32
  }
  func.func @transform_4(%arg0: i32) -> (i32, i32) {
    %c0_i32 = arith.constant 0 : i32
    %c0_i32_0 = arith.constant 0 : i32
    %c0_i32_1 = arith.constant 0 : i32
    return %c0_i32, %c0_i32_0 : i32, i32
  }
  func.func @transform_5(%arg0: i32) -> (i32, i32) {
    %c0_i32 = arith.constant 0 : i32
    %c0_i32_0 = arith.constant 0 : i32
    return %arg0, %c0_i32 : i32, i32
  }
  func.func @transform_6(%arg0: i32) -> (i32, i32) {
    %c0_i32 = arith.constant 0 : i32
    %c0_i32_0 = arith.constant 0 : i32
    return %arg0, %c0_i32 : i32, i32
  }
}

module attributes {stable_mosaic.version = 11 : i64} {
  func.func @_linear_res_kernel(%arg0: i32, %arg1: memref<16x32xf32, #tpu.memory_space<vmem>>, %arg2: memref<32x32xbf16, #tpu.memory_space<vmem>>, %arg3: memref<1x32xf32, #tpu.memory_space<vmem>>, %arg4: memref<16x32xf32, #tpu.memory_space<vmem>>, %arg5: memref<16x32xf32, #tpu.memory_space<vmem>>) attributes {dimension_semantics = [#tpu.dimension_semantics<parallel>], iteration_bounds = array<i64: 1>, scalar_prefetch = 0 : i64, scratch_operands = 0 : i64, tpu.core_type = #tpu.core_type<tc>, window_params = [{transform_indices = @transform_0, window_bounds = array<i64: 16, 32>}, {pipeline_mode = #tpu.pipeline_mode<synchronous>, transform_indices = @transform_1, window_bounds = array<i64: 32, 32>}, {pipeline_mode = #tpu.pipeline_mode<synchronous>, transform_indices = @transform_2, window_bounds = array<i64: 1, 32>}, {transform_indices = @transform_3, window_bounds = array<i64: 16, 32>}, {transform_indices = @transform_4, window_bounds = array<i64: 16, 32>}]} {
    %c0 = arith.constant 0 : index
    %c0_0 = arith.constant 0 : index
    %0 = vector.load %arg1[%c0, %c0_0] : memref<16x32xf32, #tpu.memory_space<vmem>>, vector<16x32xf32>
    %1 = arith.truncf %0 : vector<16x32xf32> to vector<16x32xbf16>
    %c0_1 = arith.constant 0 : index
    %c0_2 = arith.constant 0 : index
    %2 = vector.load %arg2[%c0_1, %c0_2] : memref<32x32xbf16, #tpu.memory_space<vmem>>, vector<32x32xbf16>
    %cst = arith.constant dense<0.000000e+00> : vector<16x32xf32>
    %3 = tpu.matmul %1, %2, %cst {dimension_numbers = #tpu.dot_dimension_numbers<[1], [0], [0], [1], [0, 0, 1, 1], [], []>} : vector<16x32xbf16>, vector<32x32xbf16>, vector<16x32xf32> -> vector<16x32xf32>
    %c0_3 = arith.constant 0 : index
    %c0_4 = arith.constant 0 : index
    %4 = vector.load %arg3[%c0_3, %c0_4] : memref<1x32xf32, #tpu.memory_space<vmem>>, vector<1x32xf32>
    %5 = vector.broadcast %4 : vector<1x32xf32> to vector<16x32xf32>
    %6 = arith.addf %3, %5 : vector<16x32xf32>
    %c0_5 = arith.constant 0 : index
    %c0_6 = arith.constant 0 : index
    %7 = vector.load %arg4[%c0_5, %c0_6] : memref<16x32xf32, #tpu.memory_space<vmem>>, vector<16x32xf32>
    %8 = arith.addf %6, %7 : vector<16x32xf32>
    %c0_7 = arith.constant 0 : index
    %c0_8 = arith.constant 0 : index
    %9 = vector.load %arg5[%c0_7, %c0_8] : memref<16x32xf32, #tpu.memory_space<vmem>>, vector<16x32xf32>
    tpu.vector_store %arg5[%c0_7, %c0_8], %8 {strides = array<i32>} : memref<16x32xf32, #tpu.memory_space<vmem>>, vector<16x32xf32>,
    return
  }
  func.func @transform_0(%arg0: i32) -> (i32, i32) {
    %c0_i32 = arith.constant 0 : i32
    %c0_i32_0 = arith.constant 0 : i32
    return %arg0, %c0_i32 : i32, i32
  }
  func.func @transform_1(%arg0: i32) -> (i32, i32) {
    %c0_i32 = arith.constant 0 : i32
    %c0_i32_0 = arith.constant 0 : i32
    %c0_i32_1 = arith.constant 0 : i32
    return %c0_i32, %c0_i32_0 : i32, i32
  }
  func.func @transform_2(%arg0: i32) -> (i32, i32) {
    %c0_i32 = arith.constant 0 : i32
    %c0_i32_0 = arith.constant 0 : i32
    %c0_i32_1 = arith.constant 0 : i32
    return %c0_i32, %c0_i32_0 : i32, i32
  }
  func.func @transform_3(%arg0: i32) -> (i32, i32) {
    %c0_i32 = arith.constant 0 : i32
    %c0_i32_0 = arith.constant 0 : i32
    return %arg0, %c0_i32 : i32, i32
  }
  func.func @transform_4(%arg0: i32) -> (i32, i32) {
    %c0_i32 = arith.constant 0 : i32
    %c0_i32_0 = arith.constant 0 : i32
    return %arg0, %c0_i32 : i32, i32
  }
}

module attributes {stable_mosaic.version = 11 : i64} {
  func.func @_ln_ffn_res_kernel(%arg0: i32, %arg1: memref<16x32xf32, #tpu.memory_space<vmem>>, %arg2: memref<1x32xf32, #tpu.memory_space<vmem>>, %arg3: memref<1x32xf32, #tpu.memory_space<vmem>>, %arg4: memref<32x64xbf16, #tpu.memory_space<vmem>>, %arg5: memref<1x64xf32, #tpu.memory_space<vmem>>, %arg6: memref<64x32xbf16, #tpu.memory_space<vmem>>, %arg7: memref<1x32xf32, #tpu.memory_space<vmem>>, %arg8: memref<16x32xf32, #tpu.memory_space<vmem>>) attributes {dimension_semantics = [#tpu.dimension_semantics<parallel>], iteration_bounds = array<i64: 1>, scalar_prefetch = 0 : i64, scratch_operands = 0 : i64, tpu.core_type = #tpu.core_type<tc>, window_params = [{transform_indices = @transform_0, window_bounds = array<i64: 16, 32>}, {pipeline_mode = #tpu.pipeline_mode<synchronous>, transform_indices = @transform_1, window_bounds = array<i64: 1, 32>}, {pipeline_mode = #tpu.pipeline_mode<synchronous>, transform_indices = @transform_2, window_bounds = array<i64: 1, 32>}, {pipeline_mode = #tpu.pipeline_mode<synchronous>, transform_indices = @transform_3, window_bounds = array<i64: 32, 64>}, {pipeline_mode = #tpu.pipeline_mode<synchronous>, transform_indices = @transform_4, window_bounds = array<i64: 1, 64>}, {pipeline_mode = #tpu.pipeline_mode<synchronous>, transform_indices = @transform_5, window_bounds = array<i64: 64, 32>}, {pipeline_mode = #tpu.pipeline_mode<synchronous>, transform_indices = @transform_6, window_bounds = array<i64: 1, 32>}, {transform_indices = @transform_7, window_bounds = array<i64: 16, 32>}]} {
    %c0 = arith.constant 0 : index
    %c0_0 = arith.constant 0 : index
    %0 = vector.load %arg1[%c0, %c0_0] : memref<16x32xf32, #tpu.memory_space<vmem>>, vector<16x32xf32>
    %c0_1 = arith.constant 0 : index
    %c0_2 = arith.constant 0 : index
    %1 = vector.load %arg2[%c0_1, %c0_2] : memref<1x32xf32, #tpu.memory_space<vmem>>, vector<1x32xf32>
    %c0_3 = arith.constant 0 : index
    %c0_4 = arith.constant 0 : index
    %2 = vector.load %arg3[%c0_3, %c0_4] : memref<1x32xf32, #tpu.memory_space<vmem>>, vector<1x32xf32>
    %cst = arith.constant dense<0.000000e+00> : vector<16xf32>
    %3 = vector.multi_reduction <add>, %0, %cst [1] : vector<16x32xf32> to vector<16xf32>
    %4 = vector.shape_cast %3 : vector<16xf32> to vector<16x1xf32>
    %cst_5 = arith.constant 3.200000e+01 : f32
    %5 = vector.broadcast %cst_5 : f32 to vector<16x1xf32>
    %6 = arith.divf %4, %5 : vector<16x1xf32>
    %7 = vector.broadcast %6 : vector<16x1xf32> to vector<16x32xf32>
    %8 = arith.subf %0, %7 : vector<16x32xf32>
    %9 = arith.mulf %8, %8 : vector<16x32xf32>
    %cst_6 = arith.constant dense<0.000000e+00> : vector<16xf32>
    %10 = vector.multi_reduction <add>, %9, %cst_6 [1] : vector<16x32xf32> to vector<16xf32>
    %11 = vector.shape_cast %10 : vector<16xf32> to vector<16x1xf32>
    %cst_7 = arith.constant 3.200000e+01 : f32
    %12 = vector.broadcast %cst_7 : f32 to vector<16x1xf32>
    %13 = arith.divf %11, %12 : vector<16x1xf32>
    %cst_8 = arith.constant 9.99999974E-6 : f32
    %14 = vector.broadcast %cst_8 : f32 to vector<16x1xf32>
    %15 = arith.addf %13, %14 : vector<16x1xf32>
    %16 = math.rsqrt %15 : vector<16x1xf32>
    %17 = vector.broadcast %16 : vector<16x1xf32> to vector<16x32xf32>
    %18 = arith.mulf %8, %17 : vector<16x32xf32>
    %19 = vector.broadcast %1 : vector<1x32xf32> to vector<16x32xf32>
    %20 = arith.mulf %18, %19 : vector<16x32xf32>
    %21 = vector.broadcast %2 : vector<1x32xf32> to vector<16x32xf32>
    %22 = arith.addf %20, %21 : vector<16x32xf32>
    %23 = arith.truncf %22 : vector<16x32xf32> to vector<16x32xbf16>
    %c0_9 = arith.constant 0 : index
    %c0_10 = arith.constant 0 : index
    %24 = vector.load %arg4[%c0_9, %c0_10] : memref<32x64xbf16, #tpu.memory_space<vmem>>, vector<32x64xbf16>
    %cst_11 = arith.constant dense<0.000000e+00> : vector<16x64xf32>
    %25 = tpu.matmul %23, %24, %cst_11 {dimension_numbers = #tpu.dot_dimension_numbers<[1], [0], [0], [1], [0, 0, 1, 1], [], []>} : vector<16x32xbf16>, vector<32x64xbf16>, vector<16x64xf32> -> vector<16x64xf32>
    %c0_12 = arith.constant 0 : index
    %c0_13 = arith.constant 0 : index
    %26 = vector.load %arg5[%c0_12, %c0_13] : memref<1x64xf32, #tpu.memory_space<vmem>>, vector<1x64xf32>
    %27 = vector.broadcast %26 : vector<1x64xf32> to vector<16x64xf32>
    %28 = arith.addf %25, %27 : vector<16x64xf32>
    %cst_14 = arith.constant 0.000000e+00 : f32
    %29 = vector.broadcast %cst_14 : f32 to vector<16x64xf32>
    %30 = arith.maximumf %28, %29 : vector<16x64xf32>
    %31 = arith.truncf %30 : vector<16x64xf32> to vector<16x64xbf16>
    %c0_15 = arith.constant 0 : index
    %c0_16 = arith.constant 0 : index
    %32 = vector.load %arg6[%c0_15, %c0_16] : memref<64x32xbf16, #tpu.memory_space<vmem>>, vector<64x32xbf16>
    %cst_17 = arith.constant dense<0.000000e+00> : vector<16x32xf32>
    %33 = tpu.matmul %31, %32, %cst_17 {dimension_numbers = #tpu.dot_dimension_numbers<[1], [0], [0], [1], [0, 0, 1, 1], [], []>} : vector<16x64xbf16>, vector<64x32xbf16>, vector<16x32xf32> -> vector<16x32xf32>
    %c0_18 = arith.constant 0 : index
    %c0_19 = arith.constant 0 : index
    %34 = vector.load %arg7[%c0_18, %c0_19] : memref<1x32xf32, #tpu.memory_space<vmem>>, vector<1x32xf32>
    %35 = vector.broadcast %34 : vector<1x32xf32> to vector<16x32xf32>
    %36 = arith.addf %33, %35 : vector<16x32xf32>
    %37 = arith.addf %0, %36 : vector<16x32xf32>
    %c0_20 = arith.constant 0 : index
    %c0_21 = arith.constant 0 : index
    %38 = vector.load %arg8[%c0_20, %c0_21] : memref<16x32xf32, #tpu.memory_space<vmem>>, vector<16x32xf32>
    tpu.vector_store %arg8[%c0_20, %c0_21], %37 {strides = array<i32>} : memref<16x32xf32, #tpu.memory_space<vmem>>, vector<16x32xf32>,
    return
  }
  func.func @transform_0(%arg0: i32) -> (i32, i32) {
    %c0_i32 = arith.constant 0 : i32
    %c0_i32_0 = arith.constant 0 : i32
    return %arg0, %c0_i32 : i32, i32
  }
  func.func @transform_1(%arg0: i32) -> (i32, i32) {
    %c0_i32 = arith.constant 0 : i32
    %c0_i32_0 = arith.constant 0 : i32
    %c0_i32_1 = arith.constant 0 : i32
    return %c0_i32, %c0_i32_0 : i32, i32
  }
  func.func @transform_2(%arg0: i32) -> (i32, i32) {
    %c0_i32 = arith.constant 0 : i32
    %c0_i32_0 = arith.constant 0 : i32
    %c0_i32_1 = arith.constant 0 : i32
    return %c0_i32, %c0_i32_0 : i32, i32
  }
  func.func @transform_3(%arg0: i32) -> (i32, i32) {
    %c0_i32 = arith.constant 0 : i32
    %c0_i32_0 = arith.constant 0 : i32
    %c0_i32_1 = arith.constant 0 : i32
    return %c0_i32, %c0_i32_0 : i32, i32
  }
  func.func @transform_4(%arg0: i32) -> (i32, i32) {
    %c0_i32 = arith.constant 0 : i32
    %c0_i32_0 = arith.constant 0 : i32
    %c0_i32_1 = arith.constant 0 : i32
    return %c0_i32, %c0_i32_0 : i32, i32
  }
  func.func @transform_5(%arg0: i32) -> (i32, i32) {
    %c0_i32 = arith.constant 0 : i32
    %c0_i32_0 = arith.constant 0 : i32
    %c0_i32_1 = arith.constant 0 : i32
    return %c0_i32, %c0_i32_0 : i32, i32
  }
  func.func @transform_6(%arg0: i32) -> (i32, i32) {
    %c0_i32 = arith.constant 0 : i32
    %c0_i32_0 = arith.constant 0 : i32
    %c0_i32_1 = arith.constant 0 : i32
    return %c0_i32, %c0_i32_0 : i32, i32
  }
  func.func @transform_7(%arg0: i32) -> (i32, i32) {
    %c0_i32 = arith.constant 0 : i32
    %c0_i32_0 = arith.constant 0 : i32
    return %arg0, %c0_i32 : i32, i32
  }
}

module attributes {stable_mosaic.version = 11 : i64} {
  func.func @_ln_kernel(%arg0: i32, %arg1: memref<16x32xf32, #tpu.memory_space<vmem>>, %arg2: memref<1x32xf32, #tpu.memory_space<vmem>>, %arg3: memref<1x32xf32, #tpu.memory_space<vmem>>, %arg4: memref<16x32xf32, #tpu.memory_space<vmem>>) attributes {dimension_semantics = [#tpu.dimension_semantics<parallel>], iteration_bounds = array<i64: 1>, scalar_prefetch = 0 : i64, scratch_operands = 0 : i64, tpu.core_type = #tpu.core_type<tc>, window_params = [{transform_indices = @transform_0, window_bounds = array<i64: 16, 32>}, {pipeline_mode = #tpu.pipeline_mode<synchronous>, transform_indices = @transform_1, window_bounds = array<i64: 1, 32>}, {pipeline_mode = #tpu.pipeline_mode<synchronous>, transform_indices = @transform_2, window_bounds = array<i64: 1, 32>}, {transform_indices = @transform_3, window_bounds = array<i64: 16, 32>}]} {
    %c0 = arith.constant 0 : index
    %c0_0 = arith.constant 0 : index
    %0 = vector.load %arg1[%c0, %c0_0] : memref<16x32xf32, #tpu.memory_space<vmem>>, vector<16x32xf32>
    %c0_1 = arith.constant 0 : index
    %c0_2 = arith.constant 0 : index
    %1 = vector.load %arg2[%c0_1, %c0_2] : memref<1x32xf32, #tpu.memory_space<vmem>>, vector<1x32xf32>
    %c0_3 = arith.constant 0 : index
    %c0_4 = arith.constant 0 : index
    %2 = vector.load %arg3[%c0_3, %c0_4] : memref<1x32xf32, #tpu.memory_space<vmem>>, vector<1x32xf32>
    %cst = arith.constant dense<0.000000e+00> : vector<16xf32>
    %3 = vector.multi_reduction <add>, %0, %cst [1] : vector<16x32xf32> to vector<16xf32>
    %4 = vector.shape_cast %3 : vector<16xf32> to vector<16x1xf32>
    %cst_5 = arith.constant 3.200000e+01 : f32
    %5 = vector.broadcast %cst_5 : f32 to vector<16x1xf32>
    %6 = arith.divf %4, %5 : vector<16x1xf32>
    %7 = vector.broadcast %6 : vector<16x1xf32> to vector<16x32xf32>
    %8 = arith.subf %0, %7 : vector<16x32xf32>
    %9 = arith.mulf %8, %8 : vector<16x32xf32>
    %cst_6 = arith.constant dense<0.000000e+00> : vector<16xf32>
    %10 = vector.multi_reduction <add>, %9, %cst_6 [1] : vector<16x32xf32> to vector<16xf32>
    %11 = vector.shape_cast %10 : vector<16xf32> to vector<16x1xf32>
    %cst_7 = arith.constant 3.200000e+01 : f32
    %12 = vector.broadcast %cst_7 : f32 to vector<16x1xf32>
    %13 = arith.divf %11, %12 : vector<16x1xf32>
    %cst_8 = arith.constant 9.99999974E-6 : f32
    %14 = vector.broadcast %cst_8 : f32 to vector<16x1xf32>
    %15 = arith.addf %13, %14 : vector<16x1xf32>
    %16 = math.rsqrt %15 : vector<16x1xf32>
    %17 = vector.broadcast %16 : vector<16x1xf32> to vector<16x32xf32>
    %18 = arith.mulf %8, %17 : vector<16x32xf32>
    %19 = vector.broadcast %1 : vector<1x32xf32> to vector<16x32xf32>
    %20 = arith.mulf %18, %19 : vector<16x32xf32>
    %21 = vector.broadcast %2 : vector<1x32xf32> to vector<16x32xf32>
    %22 = arith.addf %20, %21 : vector<16x32xf32>
    %c0_9 = arith.constant 0 : index
    %c0_10 = arith.constant 0 : index
    %23 = vector.load %arg4[%c0_9, %c0_10] : memref<16x32xf32, #tpu.memory_space<vmem>>, vector<16x32xf32>
    tpu.vector_store %arg4[%c0_9, %c0_10], %22 {strides = array<i32>} : memref<16x32xf32, #tpu.memory_space<vmem>>, vector<16x32xf32>,
    return
  }
  func.func @transform_0(%arg0: i32) -> (i32, i32) {
    %c0_i32 = arith.constant 0 : i32
    %c0_i32_0 = arith.constant 0 : i32
    return %arg0, %c0_i32 : i32, i32
  }
  func.func @transform_1(%arg0: i32) -> (i32, i32) {
    %c0_i32 = arith.constant 0 : i32
    %c0_i32_0 = arith.constant 0 : i32
    %c0_i32_1 = arith.constant 0 : i32
    return %c0_i32, %c0_i32_0 : i32, i32
  }
  func.func @transform_2(%arg0: i32) -> (i32, i32) {
    %c0_i32 = arith.constant 0 : i32
    %c0_i32_0 = arith.constant 0 : i32
    %c0_i32_1 = arith.constant 0 : i32
    return %c0_i32, %c0_i32_0 : i32, i32
  }
  func.func @transform_3(%arg0: i32) -> (i32, i32) {
    %c0_i32 = arith.constant 0 : i32
    %c0_i32_0 = arith.constant 0 : i32
    return %arg0, %c0_i32 : i32, i32
  }
}

module attributes {stable_mosaic.version = 11 : i64} {
  func.func @_linear_kernel(%arg0: i32, %arg1: memref<16x32xf32, #tpu.memory_space<vmem>>, %arg2: memref<32x64xbf16, #tpu.memory_space<vmem>>, %arg3: memref<1x64xf32, #tpu.memory_space<vmem>>, %arg4: memref<16x64xf32, #tpu.memory_space<vmem>>) attributes {dimension_semantics = [#tpu.dimension_semantics<parallel>], iteration_bounds = array<i64: 1>, scalar_prefetch = 0 : i64, scratch_operands = 0 : i64, tpu.core_type = #tpu.core_type<tc>, window_params = [{transform_indices = @transform_0, window_bounds = array<i64: 16, 32>}, {pipeline_mode = #tpu.pipeline_mode<synchronous>, transform_indices = @transform_1, window_bounds = array<i64: 32, 64>}, {pipeline_mode = #tpu.pipeline_mode<synchronous>, transform_indices = @transform_2, window_bounds = array<i64: 1, 64>}, {transform_indices = @transform_3, window_bounds = array<i64: 16, 64>}]} {
    %c0 = arith.constant 0 : index
    %c0_0 = arith.constant 0 : index
    %0 = vector.load %arg1[%c0, %c0_0] : memref<16x32xf32, #tpu.memory_space<vmem>>, vector<16x32xf32>
    %1 = arith.truncf %0 : vector<16x32xf32> to vector<16x32xbf16>
    %c0_1 = arith.constant 0 : index
    %c0_2 = arith.constant 0 : index
    %2 = vector.load %arg2[%c0_1, %c0_2] : memref<32x64xbf16, #tpu.memory_space<vmem>>, vector<32x64xbf16>
    %cst = arith.constant dense<0.000000e+00> : vector<16x64xf32>
    %3 = tpu.matmul %1, %2, %cst {dimension_numbers = #tpu.dot_dimension_numbers<[1], [0], [0], [1], [0, 0, 1, 1], [], []>} : vector<16x32xbf16>, vector<32x64xbf16>, vector<16x64xf32> -> vector<16x64xf32>
    %c0_3 = arith.constant 0 : index
    %c0_4 = arith.constant 0 : index
    %4 = vector.load %arg3[%c0_3, %c0_4] : memref<1x64xf32, #tpu.memory_space<vmem>>, vector<1x64xf32>
    %5 = vector.broadcast %4 : vector<1x64xf32> to vector<16x64xf32>
    %6 = arith.addf %3, %5 : vector<16x64xf32>
    %c0_5 = arith.constant 0 : index
    %c0_6 = arith.constant 0 : index
    %7 = vector.load %arg4[%c0_5, %c0_6] : memref<16x64xf32, #tpu.memory_space<vmem>>, vector<16x64xf32>
    tpu.vector_store %arg4[%c0_5, %c0_6], %6 {strides = array<i32>} : memref<16x64xf32, #tpu.memory_space<vmem>>, vector<16x64xf32>,
    return
  }
  func.func @transform_0(%arg0: i32) -> (i32, i32) {
    %c0_i32 = arith.constant 0 : i32
    %c0_i32_0 = arith.constant 0 : i32
    return %arg0, %c0_i32 : i32, i32
  }
  func.func @transform_1(%arg0: i32) -> (i32, i32) {
    %c0_i32 = arith.constant 0 : i32
    %c0_i32_0 = arith.constant 0 : i32
    %c0_i32_1 = arith.constant 0 : i32
    return %c0_i32, %c0_i32_0 : i32, i32
  }
  func.func @transform_2(%arg0: i32) -> (i32, i32) {
    %c0_i32 = arith.constant 0 : i32
    %c0_i32_0 = arith.constant 0 : i32
    %c0_i32_1 = arith.constant 0 : i32
    return %c0_i32, %c0_i32_0 : i32, i32
  }
  func.func @transform_3(%arg0: i32) -> (i32, i32) {
    %c0_i32 = arith.constant 0 : i32
    %c0_i32_0 = arith.constant 0 : i32
    return %arg0, %c0_i32 : i32, i32
  }
}

module attributes {stable_mosaic.version = 11 : i64} {
  func.func @_ln_qkv_kernel(%arg0: i32, %arg1: memref<14x32xf32, #tpu.memory_space<vmem>>, %arg2: memref<1x32xf32, #tpu.memory_space<vmem>>, %arg3: memref<1x32xf32, #tpu.memory_space<vmem>>, %arg4: memref<32x96xbf16, #tpu.memory_space<vmem>>, %arg5: memref<1x96xf32, #tpu.memory_space<vmem>>, %arg6: memref<14x32xf32, #tpu.memory_space<vmem>>, %arg7: memref<14x64xf32, #tpu.memory_space<vmem>>) attributes {dimension_semantics = [#tpu.dimension_semantics<parallel>], iteration_bounds = array<i64: 1>, scalar_prefetch = 0 : i64, scratch_operands = 0 : i64, tpu.core_type = #tpu.core_type<tc>, window_params = [{transform_indices = @transform_0, window_bounds = array<i64: 14, 32>}, {pipeline_mode = #tpu.pipeline_mode<synchronous>, transform_indices = @transform_1, window_bounds = array<i64: 1, 32>}, {pipeline_mode = #tpu.pipeline_mode<synchronous>, transform_indices = @transform_2, window_bounds = array<i64: 1, 32>}, {pipeline_mode = #tpu.pipeline_mode<synchronous>, transform_indices = @transform_3, window_bounds = array<i64: 32, 96>}, {pipeline_mode = #tpu.pipeline_mode<synchronous>, transform_indices = @transform_4, window_bounds = array<i64: 1, 96>}, {transform_indices = @transform_5, window_bounds = array<i64: 14, 32>}, {transform_indices = @transform_6, window_bounds = array<i64: 14, 64>}]} {
    %c0 = arith.constant 0 : index
    %c0_0 = arith.constant 0 : index
    %0 = vector.load %arg1[%c0, %c0_0] : memref<14x32xf32, #tpu.memory_space<vmem>>, vector<14x32xf32>
    %c0_1 = arith.constant 0 : index
    %c0_2 = arith.constant 0 : index
    %1 = vector.load %arg2[%c0_1, %c0_2] : memref<1x32xf32, #tpu.memory_space<vmem>>, vector<1x32xf32>
    %c0_3 = arith.constant 0 : index
    %c0_4 = arith.constant 0 : index
    %2 = vector.load %arg3[%c0_3, %c0_4] : memref<1x32xf32, #tpu.memory_space<vmem>>, vector<1x32xf32>
    %cst = arith.constant dense<0.000000e+00> : vector<14xf32>
    %3 = vector.multi_reduction <add>, %0, %cst [1] : vector<14x32xf32> to vector<14xf32>
    %4 = vector.shape_cast %3 : vector<14xf32> to vector<14x1xf32>
    %cst_5 = arith.constant 3.200000e+01 : f32
    %5 = vector.broadcast %cst_5 : f32 to vector<14x1xf32>
    %6 = arith.divf %4, %5 : vector<14x1xf32>
    %7 = vector.broadcast %6 : vector<14x1xf32> to vector<14x32xf32>
    %8 = arith.subf %0, %7 : vector<14x32xf32>
    %9 = arith.mulf %8, %8 : vector<14x32xf32>
    %cst_6 = arith.constant dense<0.000000e+00> : vector<14xf32>
    %10 = vector.multi_reduction <add>, %9, %cst_6 [1] : vector<14x32xf32> to vector<14xf32>
    %11 = vector.shape_cast %10 : vector<14xf32> to vector<14x1xf32>
    %cst_7 = arith.constant 3.200000e+01 : f32
    %12 = vector.broadcast %cst_7 : f32 to vector<14x1xf32>
    %13 = arith.divf %11, %12 : vector<14x1xf32>
    %cst_8 = arith.constant 9.99999974E-6 : f32
    %14 = vector.broadcast %cst_8 : f32 to vector<14x1xf32>
    %15 = arith.addf %13, %14 : vector<14x1xf32>
    %16 = math.rsqrt %15 : vector<14x1xf32>
    %17 = vector.broadcast %16 : vector<14x1xf32> to vector<14x32xf32>
    %18 = arith.mulf %8, %17 : vector<14x32xf32>
    %19 = vector.broadcast %1 : vector<1x32xf32> to vector<14x32xf32>
    %20 = arith.mulf %18, %19 : vector<14x32xf32>
    %21 = vector.broadcast %2 : vector<1x32xf32> to vector<14x32xf32>
    %22 = arith.addf %20, %21 : vector<14x32xf32>
    %23 = arith.truncf %22 : vector<14x32xf32> to vector<14x32xbf16>
    %c0_9 = arith.constant 0 : index
    %c0_10 = arith.constant 0 : index
    %24 = vector.load %arg4[%c0_9, %c0_10] : memref<32x96xbf16, #tpu.memory_space<vmem>>, vector<32x96xbf16>
    %cst_11 = arith.constant dense<0.000000e+00> : vector<14x96xf32>
    %25 = tpu.matmul %23, %24, %cst_11 {dimension_numbers = #tpu.dot_dimension_numbers<[1], [0], [0], [1], [0, 0, 1, 1], [], []>} : vector<14x32xbf16>, vector<32x96xbf16>, vector<14x96xf32> -> vector<14x96xf32>
    %c0_12 = arith.constant 0 : index
    %c0_13 = arith.constant 0 : index
    %26 = vector.load %arg5[%c0_12, %c0_13] : memref<1x96xf32, #tpu.memory_space<vmem>>, vector<1x96xf32>
    %27 = vector.broadcast %26 : vector<1x96xf32> to vector<14x96xf32>
    %28 = arith.addf %25, %27 : vector<14x96xf32>
    %29 = vector.extract_strided_slice %28 {offsets = [0, 0], sizes = [14, 32], strides = [1, 1]} : vector<14x96xf32> to vector<14x32xf32>
    %c0_14 = arith.constant 0 : index
    %c0_15 = arith.constant 0 : index
    %30 = vector.load %arg6[%c0_14, %c0_15] : memref<14x32xf32, #tpu.memory_space<vmem>>, vector<14x32xf32>
    tpu.vector_store %arg6[%c0_14, %c0_15], %29 {strides = array<i32>} : memref<14x32xf32, #tpu.memory_space<vmem>>, vector<14x32xf32>,
    %31 = vector.extract_strided_slice %28 {offsets = [0, 32], sizes = [14, 64], strides = [1, 1]} : vector<14x96xf32> to vector<14x64xf32>
    %c0_16 = arith.constant 0 : index
    %c0_17 = arith.constant 0 : index
    %32 = vector.load %arg7[%c0_16, %c0_17] : memref<14x64xf32, #tpu.memory_space<vmem>>, vector<14x64xf32>
    tpu.vector_store %arg7[%c0_16, %c0_17], %31 {strides = array<i32>} : memref<14x64xf32, #tpu.memory_space<vmem>>, vector<14x64xf32>,
    return
  }
  func.func @transform_0(%arg0: i32) -> (i32, i32) {
    %c0_i32 = arith.constant 0 : i32
    %c0_i32_0 = arith.constant 0 : i32
    return %arg0, %c0_i32 : i32, i32
  }
  func.func @transform_1(%arg0: i32) -> (i32, i32) {
    %c0_i32 = arith.constant 0 : i32
    %c0_i32_0 = arith.constant 0 : i32
    %c0_i32_1 = arith.constant 0 : i32
    return %c0_i32, %c0_i32_0 : i32, i32
  }
  func.func @transform_2(%arg0: i32) -> (i32, i32) {
    %c0_i32 = arith.constant 0 : i32
    %c0_i32_0 = arith.constant 0 : i32
    %c0_i32_1 = arith.constant 0 : i32
    return %c0_i32, %c0_i32_0 : i32, i32
  }
  func.func @transform_3(%arg0: i32) -> (i32, i32) {
    %c0_i32 = arith.constant 0 : i32
    %c0_i32_0 = arith.constant 0 : i32
    %c0_i32_1 = arith.constant 0 : i32
    return %c0_i32, %c0_i32_0 : i32, i32
  }
  func.func @transform_4(%arg0: i32) -> (i32, i32) {
    %c0_i32 = arith.constant 0 : i32
    %c0_i32_0 = arith.constant 0 : i32
    %c0_i32_1 = arith.constant 0 : i32
    return %c0_i32, %c0_i32_0 : i32, i32
  }
  func.func @transform_5(%arg0: i32) -> (i32, i32) {
    %c0_i32 = arith.constant 0 : i32
    %c0_i32_0 = arith.constant 0 : i32
    return %arg0, %c0_i32 : i32, i32
  }
  func.func @transform_6(%arg0: i32) -> (i32, i32) {
    %c0_i32 = arith.constant 0 : i32
    %c0_i32_0 = arith.constant 0 : i32
    return %arg0, %c0_i32 : i32, i32
  }
}

module attributes {stable_mosaic.version = 11 : i64} {
  func.func @_ln_linear_kernel(%arg0: i32, %arg1: memref<14x32xf32, #tpu.memory_space<vmem>>, %arg2: memref<1x32xf32, #tpu.memory_space<vmem>>, %arg3: memref<1x32xf32, #tpu.memory_space<vmem>>, %arg4: memref<32x32xbf16, #tpu.memory_space<vmem>>, %arg5: memref<1x32xf32, #tpu.memory_space<vmem>>, %arg6: memref<14x32xf32, #tpu.memory_space<vmem>>) attributes {dimension_semantics = [#tpu.dimension_semantics<parallel>], iteration_bounds = array<i64: 1>, scalar_prefetch = 0 : i64, scratch_operands = 0 : i64, tpu.core_type = #tpu.core_type<tc>, window_params = [{transform_indices = @transform_0, window_bounds = array<i64: 14, 32>}, {pipeline_mode = #tpu.pipeline_mode<synchronous>, transform_indices = @transform_1, window_bounds = array<i64: 1, 32>}, {pipeline_mode = #tpu.pipeline_mode<synchronous>, transform_indices = @transform_2, window_bounds = array<i64: 1, 32>}, {pipeline_mode = #tpu.pipeline_mode<synchronous>, transform_indices = @transform_3, window_bounds = array<i64: 32, 32>}, {pipeline_mode = #tpu.pipeline_mode<synchronous>, transform_indices = @transform_4, window_bounds = array<i64: 1, 32>}, {transform_indices = @transform_5, window_bounds = array<i64: 14, 32>}]} {
    %c0 = arith.constant 0 : index
    %c0_0 = arith.constant 0 : index
    %0 = vector.load %arg1[%c0, %c0_0] : memref<14x32xf32, #tpu.memory_space<vmem>>, vector<14x32xf32>
    %c0_1 = arith.constant 0 : index
    %c0_2 = arith.constant 0 : index
    %1 = vector.load %arg2[%c0_1, %c0_2] : memref<1x32xf32, #tpu.memory_space<vmem>>, vector<1x32xf32>
    %c0_3 = arith.constant 0 : index
    %c0_4 = arith.constant 0 : index
    %2 = vector.load %arg3[%c0_3, %c0_4] : memref<1x32xf32, #tpu.memory_space<vmem>>, vector<1x32xf32>
    %cst = arith.constant dense<0.000000e+00> : vector<14xf32>
    %3 = vector.multi_reduction <add>, %0, %cst [1] : vector<14x32xf32> to vector<14xf32>
    %4 = vector.shape_cast %3 : vector<14xf32> to vector<14x1xf32>
    %cst_5 = arith.constant 3.200000e+01 : f32
    %5 = vector.broadcast %cst_5 : f32 to vector<14x1xf32>
    %6 = arith.divf %4, %5 : vector<14x1xf32>
    %7 = vector.broadcast %6 : vector<14x1xf32> to vector<14x32xf32>
    %8 = arith.subf %0, %7 : vector<14x32xf32>
    %9 = arith.mulf %8, %8 : vector<14x32xf32>
    %cst_6 = arith.constant dense<0.000000e+00> : vector<14xf32>
    %10 = vector.multi_reduction <add>, %9, %cst_6 [1] : vector<14x32xf32> to vector<14xf32>
    %11 = vector.shape_cast %10 : vector<14xf32> to vector<14x1xf32>
    %cst_7 = arith.constant 3.200000e+01 : f32
    %12 = vector.broadcast %cst_7 : f32 to vector<14x1xf32>
    %13 = arith.divf %11, %12 : vector<14x1xf32>
    %cst_8 = arith.constant 9.99999974E-6 : f32
    %14 = vector.broadcast %cst_8 : f32 to vector<14x1xf32>
    %15 = arith.addf %13, %14 : vector<14x1xf32>
    %16 = math.rsqrt %15 : vector<14x1xf32>
    %17 = vector.broadcast %16 : vector<14x1xf32> to vector<14x32xf32>
    %18 = arith.mulf %8, %17 : vector<14x32xf32>
    %19 = vector.broadcast %1 : vector<1x32xf32> to vector<14x32xf32>
    %20 = arith.mulf %18, %19 : vector<14x32xf32>
    %21 = vector.broadcast %2 : vector<1x32xf32> to vector<14x32xf32>
    %22 = arith.addf %20, %21 : vector<14x32xf32>
    %23 = arith.truncf %22 : vector<14x32xf32> to vector<14x32xbf16>
    %c0_9 = arith.constant 0 : index
    %c0_10 = arith.constant 0 : index
    %24 = vector.load %arg4[%c0_9, %c0_10] : memref<32x32xbf16, #tpu.memory_space<vmem>>, vector<32x32xbf16>
    %cst_11 = arith.constant dense<0.000000e+00> : vector<14x32xf32>
    %25 = tpu.matmul %23, %24, %cst_11 {dimension_numbers = #tpu.dot_dimension_numbers<[1], [0], [0], [1], [0, 0, 1, 1], [], []>} : vector<14x32xbf16>, vector<32x32xbf16>, vector<14x32xf32> -> vector<14x32xf32>
    %c0_12 = arith.constant 0 : index
    %c0_13 = arith.constant 0 : index
    %26 = vector.load %arg5[%c0_12, %c0_13] : memref<1x32xf32, #tpu.memory_space<vmem>>, vector<1x32xf32>
    %27 = vector.broadcast %26 : vector<1x32xf32> to vector<14x32xf32>
    %28 = arith.addf %25, %27 : vector<14x32xf32>
    %c0_14 = arith.constant 0 : index
    %c0_15 = arith.constant 0 : index
    %29 = vector.load %arg6[%c0_14, %c0_15] : memref<14x32xf32, #tpu.memory_space<vmem>>, vector<14x32xf32>
    tpu.vector_store %arg6[%c0_14, %c0_15], %28 {strides = array<i32>} : memref<14x32xf32, #tpu.memory_space<vmem>>, vector<14x32xf32>,
    return
  }
  func.func @transform_0(%arg0: i32) -> (i32, i32) {
    %c0_i32 = arith.constant 0 : i32
    %c0_i32_0 = arith.constant 0 : i32
    return %arg0, %c0_i32 : i32, i32
  }
  func.func @transform_1(%arg0: i32) -> (i32, i32) {
    %c0_i32 = arith.constant 0 : i32
    %c0_i32_0 = arith.constant 0 : i32
    %c0_i32_1 = arith.constant 0 : i32
    return %c0_i32, %c0_i32_0 : i32, i32
  }
  func.func @transform_2(%arg0: i32) -> (i32, i32) {
    %c0_i32 = arith.constant 0 : i32
    %c0_i32_0 = arith.constant 0 : i32
    %c0_i32_1 = arith.constant 0 : i32
    return %c0_i32, %c0_i32_0 : i32, i32
  }
  func.func @transform_3(%arg0: i32) -> (i32, i32) {
    %c0_i32 = arith.constant 0 : i32
    %c0_i32_0 = arith.constant 0 : i32
    %c0_i32_1 = arith.constant 0 : i32
    return %c0_i32, %c0_i32_0 : i32, i32
  }
  func.func @transform_4(%arg0: i32) -> (i32, i32) {
    %c0_i32 = arith.constant 0 : i32
    %c0_i32_0 = arith.constant 0 : i32
    %c0_i32_1 = arith.constant 0 : i32
    return %c0_i32, %c0_i32_0 : i32, i32
  }
  func.func @transform_5(%arg0: i32) -> (i32, i32) {
    %c0_i32 = arith.constant 0 : i32
    %c0_i32_0 = arith.constant 0 : i32
    return %arg0, %c0_i32 : i32, i32
  }
}

module attributes {stable_mosaic.version = 11 : i64} {
  func.func @_linear_res_kernel(%arg0: i32, %arg1: memref<14x32xf32, #tpu.memory_space<vmem>>, %arg2: memref<32x32xbf16, #tpu.memory_space<vmem>>, %arg3: memref<1x32xf32, #tpu.memory_space<vmem>>, %arg4: memref<14x32xf32, #tpu.memory_space<vmem>>, %arg5: memref<14x32xf32, #tpu.memory_space<vmem>>) attributes {dimension_semantics = [#tpu.dimension_semantics<parallel>], iteration_bounds = array<i64: 1>, scalar_prefetch = 0 : i64, scratch_operands = 0 : i64, tpu.core_type = #tpu.core_type<tc>, window_params = [{transform_indices = @transform_0, window_bounds = array<i64: 14, 32>}, {pipeline_mode = #tpu.pipeline_mode<synchronous>, transform_indices = @transform_1, window_bounds = array<i64: 32, 32>}, {pipeline_mode = #tpu.pipeline_mode<synchronous>, transform_indices = @transform_2, window_bounds = array<i64: 1, 32>}, {transform_indices = @transform_3, window_bounds = array<i64: 14, 32>}, {transform_indices = @transform_4, window_bounds = array<i64: 14, 32>}]} {
    %c0 = arith.constant 0 : index
    %c0_0 = arith.constant 0 : index
    %0 = vector.load %arg1[%c0, %c0_0] : memref<14x32xf32, #tpu.memory_space<vmem>>, vector<14x32xf32>
    %1 = arith.truncf %0 : vector<14x32xf32> to vector<14x32xbf16>
    %c0_1 = arith.constant 0 : index
    %c0_2 = arith.constant 0 : index
    %2 = vector.load %arg2[%c0_1, %c0_2] : memref<32x32xbf16, #tpu.memory_space<vmem>>, vector<32x32xbf16>
    %cst = arith.constant dense<0.000000e+00> : vector<14x32xf32>
    %3 = tpu.matmul %1, %2, %cst {dimension_numbers = #tpu.dot_dimension_numbers<[1], [0], [0], [1], [0, 0, 1, 1], [], []>} : vector<14x32xbf16>, vector<32x32xbf16>, vector<14x32xf32> -> vector<14x32xf32>
    %c0_3 = arith.constant 0 : index
    %c0_4 = arith.constant 0 : index
    %4 = vector.load %arg3[%c0_3, %c0_4] : memref<1x32xf32, #tpu.memory_space<vmem>>, vector<1x32xf32>
    %5 = vector.broadcast %4 : vector<1x32xf32> to vector<14x32xf32>
    %6 = arith.addf %3, %5 : vector<14x32xf32>
    %c0_5 = arith.constant 0 : index
    %c0_6 = arith.constant 0 : index
    %7 = vector.load %arg4[%c0_5, %c0_6] : memref<14x32xf32, #tpu.memory_space<vmem>>, vector<14x32xf32>
    %8 = arith.addf %6, %7 : vector<14x32xf32>
    %c0_7 = arith.constant 0 : index
    %c0_8 = arith.constant 0 : index
    %9 = vector.load %arg5[%c0_7, %c0_8] : memref<14x32xf32, #tpu.memory_space<vmem>>, vector<14x32xf32>
    tpu.vector_store %arg5[%c0_7, %c0_8], %8 {strides = array<i32>} : memref<14x32xf32, #tpu.memory_space<vmem>>, vector<14x32xf32>,
    return
  }
  func.func @transform_0(%arg0: i32) -> (i32, i32) {
    %c0_i32 = arith.constant 0 : i32
    %c0_i32_0 = arith.constant 0 : i32
    return %arg0, %c0_i32 : i32, i32
  }
  func.func @transform_1(%arg0: i32) -> (i32, i32) {
    %c0_i32 = arith.constant 0 : i32
    %c0_i32_0 = arith.constant 0 : i32
    %c0_i32_1 = arith.constant 0 : i32
    return %c0_i32, %c0_i32_0 : i32, i32
  }
  func.func @transform_2(%arg0: i32) -> (i32, i32) {
    %c0_i32 = arith.constant 0 : i32
    %c0_i32_0 = arith.constant 0 : i32
    %c0_i32_1 = arith.constant 0 : i32
    return %c0_i32, %c0_i32_0 : i32, i32
  }
  func.func @transform_3(%arg0: i32) -> (i32, i32) {
    %c0_i32 = arith.constant 0 : i32
    %c0_i32_0 = arith.constant 0 : i32
    return %arg0, %c0_i32 : i32, i32
  }
  func.func @transform_4(%arg0: i32) -> (i32, i32) {
    %c0_i32 = arith.constant 0 : i32
    %c0_i32_0 = arith.constant 0 : i32
    return %arg0, %c0_i32 : i32, i32
  }
}

module attributes {stable_mosaic.version = 11 : i64} {
  func.func @_mha_kernel(%arg0: i32, %arg1: memref<1x7x32xf32, #tpu.memory_space<vmem>>, %arg2: memref<1x7x64xf32, #tpu.memory_space<vmem>>, %arg3: memref<1x7x32xf32, #tpu.memory_space<vmem>>) attributes {dimension_semantics = [#tpu.dimension_semantics<parallel>], iteration_bounds = array<i64: 2>, scalar_prefetch = 0 : i64, scratch_operands = 0 : i64, tpu.core_type = #tpu.core_type<tc>, window_params = [{transform_indices = @transform_0, window_bounds = array<i64: 1, 7, 32>}, {transform_indices = @transform_1, window_bounds = array<i64: 1, 7, 64>}, {transform_indices = @transform_2, window_bounds = array<i64: 1, 7, 32>}]} {
    %c0 = arith.constant 0 : index
    %c0_0 = arith.constant 0 : index
    %c0_1 = arith.constant 0 : index
    %0 = vector.load %arg1[%c0, %c0_0, %c0_1] : memref<1x7x32xf32, #tpu.memory_space<vmem>>, vector<1x7x32xf32>
    %1 = vector.shape_cast %0 : vector<1x7x32xf32> to vector<7x32xf32>
    %c0_2 = arith.constant 0 : index
    %c0_3 = arith.constant 0 : index
    %c0_4 = arith.constant 0 : index
    %2 = vector.load %arg2[%c0_2, %c0_3, %c0_4] : memref<1x7x64xf32, #tpu.memory_space<vmem>>, vector<1x7x64xf32>
    %3 = vector.shape_cast %2 : vector<1x7x64xf32> to vector<7x64xf32>
    %cst = arith.constant 0.353553385 : f32
    %4 = vector.broadcast %cst : f32 to vector<7x32xf32>
    %5 = arith.mulf %1, %4 : vector<7x32xf32>
    %6 = arith.truncf %5 : vector<7x32xf32> to vector<7x32xbf16>
    %7 = vector.extract_strided_slice %3 {offsets = [0, 0], sizes = [7, 32], strides = [1, 1]} : vector<7x64xf32> to vector<7x32xf32>
    %8 = arith.truncf %7 : vector<7x32xf32> to vector<7x32xbf16>
    %9 = vector.extract_strided_slice %3 {offsets = [0, 32], sizes = [7, 32], strides = [1, 1]} : vector<7x64xf32> to vector<7x32xf32>
    %10 = arith.truncf %9 : vector<7x32xf32> to vector<7x32xbf16>
    %11 = tpu.iota {dimensions = array<i32: 0>} : vector<7x7xi32>
    %12 = tpu.iota {dimensions = array<i32: 1>} : vector<7x7xi32>
    %13 = arith.cmpi sle, %12, %11 : vector<7x7xi32>
    %14 = vector.extract_strided_slice %6 {offsets = [0, 0], sizes = [7, 8], strides = [1, 1]} : vector<7x32xbf16> to vector<7x8xbf16>
    %15 = vector.extract_strided_slice %8 {offsets = [0, 0], sizes = [7, 8], strides = [1, 1]} : vector<7x32xbf16> to vector<7x8xbf16>
    %16 = tpu.transpose %15, [1, 0] : vector<7x8xbf16> -> vector<8x7xbf16>
    %cst_5 = arith.constant dense<0.000000e+00> : vector<7x7xf32>
    %17 = tpu.matmul %14, %16, %cst_5 {dimension_numbers = #tpu.dot_dimension_numbers<[1], [0], [0], [1], [0, 0, 1, 1], [], []>} : vector<7x8xbf16>, vector<8x7xbf16>, vector<7x7xf32> -> vector<7x7xf32>
    %cst_6 = arith.constant -1.000000e+09 : f32
    %18 = vector.broadcast %cst_6 : f32 to vector<7x7xf32>
    %19 = arith.select %13, %17, %18 : vector<7x7xi1>, vector<7x7xf32>
    %cst_7 = arith.constant dense<0xFF800000> : vector<7xf32>
    %20 = vector.multi_reduction <maximumf>, %19, %cst_7 [1] : vector<7x7xf32> to vector<7xf32>
    %21 = vector.shape_cast %20 : vector<7xf32> to vector<7x1xf32>
    %22 = vector.broadcast %21 : vector<7x1xf32> to vector<7x7xf32>
    %23 = arith.subf %19, %22 : vector<7x7xf32>
    %24 = math.exp %23 : vector<7x7xf32>
    %cst_8 = arith.constant dense<0.000000e+00> : vector<7xf32>
    %25 = vector.multi_reduction <add>, %24, %cst_8 [1] : vector<7x7xf32> to vector<7xf32>
    %26 = vector.shape_cast %25 : vector<7xf32> to vector<7x1xf32>
    %27 = tpu.reciprocal %26 {approx = true} : vector<7x1xf32> -> vector<7x1xf32>
    %28 = arith.truncf %24 : vector<7x7xf32> to vector<7x7xbf16>
    %29 = vector.extract_strided_slice %10 {offsets = [0, 0], sizes = [7, 8], strides = [1, 1]} : vector<7x32xbf16> to vector<7x8xbf16>
    %cst_9 = arith.constant dense<0.000000e+00> : vector<7x8xf32>
    %30 = tpu.matmul %28, %29, %cst_9 {dimension_numbers = #tpu.dot_dimension_numbers<[1], [0], [0], [1], [0, 0, 1, 1], [], []>} : vector<7x7xbf16>, vector<7x8xbf16>, vector<7x8xf32> -> vector<7x8xf32>
    %31 = vector.broadcast %27 : vector<7x1xf32> to vector<7x8xf32>
    %32 = arith.mulf %30, %31 : vector<7x8xf32>
    %33 = vector.extract_strided_slice %6 {offsets = [0, 8], sizes = [7, 8], strides = [1, 1]} : vector<7x32xbf16> to vector<7x8xbf16>
    %34 = vector.extract_strided_slice %8 {offsets = [0, 8], sizes = [7, 8], strides = [1, 1]} : vector<7x32xbf16> to vector<7x8xbf16>
    %35 = tpu.transpose %34, [1, 0] : vector<7x8xbf16> -> vector<8x7xbf16>
    %cst_10 = arith.constant dense<0.000000e+00> : vector<7x7xf32>
    %36 = tpu.matmul %33, %35, %cst_10 {dimension_numbers = #tpu.dot_dimension_numbers<[1], [0], [0], [1], [0, 0, 1, 1], [], []>} : vector<7x8xbf16>, vector<8x7xbf16>, vector<7x7xf32> -> vector<7x7xf32>
    %cst_11 = arith.constant -1.000000e+09 : f32
    %37 = vector.broadcast %cst_11 : f32 to vector<7x7xf32>
    %38 = arith.select %13, %36, %37 : vector<7x7xi1>, vector<7x7xf32>
    %cst_12 = arith.constant dense<0xFF800000> : vector<7xf32>
    %39 = vector.multi_reduction <maximumf>, %38, %cst_12 [1] : vector<7x7xf32> to vector<7xf32>
    %40 = vector.shape_cast %39 : vector<7xf32> to vector<7x1xf32>
    %41 = vector.broadcast %40 : vector<7x1xf32> to vector<7x7xf32>
    %42 = arith.subf %38, %41 : vector<7x7xf32>
    %43 = math.exp %42 : vector<7x7xf32>
    %cst_13 = arith.constant dense<0.000000e+00> : vector<7xf32>
    %44 = vector.multi_reduction <add>, %43, %cst_13 [1] : vector<7x7xf32> to vector<7xf32>
    %45 = vector.shape_cast %44 : vector<7xf32> to vector<7x1xf32>
    %46 = tpu.reciprocal %45 {approx = true} : vector<7x1xf32> -> vector<7x1xf32>
    %47 = arith.truncf %43 : vector<7x7xf32> to vector<7x7xbf16>
    %48 = vector.extract_strided_slice %10 {offsets = [0, 8], sizes = [7, 8], strides = [1, 1]} : vector<7x32xbf16> to vector<7x8xbf16>
    %cst_14 = arith.constant dense<0.000000e+00> : vector<7x8xf32>
    %49 = tpu.matmul %47, %48, %cst_14 {dimension_numbers = #tpu.dot_dimension_numbers<[1], [0], [0], [1], [0, 0, 1, 1], [], []>} : vector<7x7xbf16>, vector<7x8xbf16>, vector<7x8xf32> -> vector<7x8xf32>
    %50 = vector.broadcast %46 : vector<7x1xf32> to vector<7x8xf32>
    %51 = arith.mulf %49, %50 : vector<7x8xf32>
    %52 = vector.extract_strided_slice %6 {offsets = [0, 16], sizes = [7, 8], strides = [1, 1]} : vector<7x32xbf16> to vector<7x8xbf16>
    %53 = vector.extract_strided_slice %8 {offsets = [0, 16], sizes = [7, 8], strides = [1, 1]} : vector<7x32xbf16> to vector<7x8xbf16>
    %54 = tpu.transpose %53, [1, 0] : vector<7x8xbf16> -> vector<8x7xbf16>
    %cst_15 = arith.constant dense<0.000000e+00> : vector<7x7xf32>
    %55 = tpu.matmul %52, %54, %cst_15 {dimension_numbers = #tpu.dot_dimension_numbers<[1], [0], [0], [1], [0, 0, 1, 1], [], []>} : vector<7x8xbf16>, vector<8x7xbf16>, vector<7x7xf32> -> vector<7x7xf32>
    %cst_16 = arith.constant -1.000000e+09 : f32
    %56 = vector.broadcast %cst_16 : f32 to vector<7x7xf32>
    %57 = arith.select %13, %55, %56 : vector<7x7xi1>, vector<7x7xf32>
    %cst_17 = arith.constant dense<0xFF800000> : vector<7xf32>
    %58 = vector.multi_reduction <maximumf>, %57, %cst_17 [1] : vector<7x7xf32> to vector<7xf32>
    %59 = vector.shape_cast %58 : vector<7xf32> to vector<7x1xf32>
    %60 = vector.broadcast %59 : vector<7x1xf32> to vector<7x7xf32>
    %61 = arith.subf %57, %60 : vector<7x7xf32>
    %62 = math.exp %61 : vector<7x7xf32>
    %cst_18 = arith.constant dense<0.000000e+00> : vector<7xf32>
    %63 = vector.multi_reduction <add>, %62, %cst_18 [1] : vector<7x7xf32> to vector<7xf32>
    %64 = vector.shape_cast %63 : vector<7xf32> to vector<7x1xf32>
    %65 = tpu.reciprocal %64 {approx = true} : vector<7x1xf32> -> vector<7x1xf32>
    %66 = arith.truncf %62 : vector<7x7xf32> to vector<7x7xbf16>
    %67 = vector.extract_strided_slice %10 {offsets = [0, 16], sizes = [7, 8], strides = [1, 1]} : vector<7x32xbf16> to vector<7x8xbf16>
    %cst_19 = arith.constant dense<0.000000e+00> : vector<7x8xf32>
    %68 = tpu.matmul %66, %67, %cst_19 {dimension_numbers = #tpu.dot_dimension_numbers<[1], [0], [0], [1], [0, 0, 1, 1], [], []>} : vector<7x7xbf16>, vector<7x8xbf16>, vector<7x8xf32> -> vector<7x8xf32>
    %69 = vector.broadcast %65 : vector<7x1xf32> to vector<7x8xf32>
    %70 = arith.mulf %68, %69 : vector<7x8xf32>
    %71 = vector.extract_strided_slice %6 {offsets = [0, 24], sizes = [7, 8], strides = [1, 1]} : vector<7x32xbf16> to vector<7x8xbf16>
    %72 = vector.extract_strided_slice %8 {offsets = [0, 24], sizes = [7, 8], strides = [1, 1]} : vector<7x32xbf16> to vector<7x8xbf16>
    %73 = tpu.transpose %72, [1, 0] : vector<7x8xbf16> -> vector<8x7xbf16>
    %cst_20 = arith.constant dense<0.000000e+00> : vector<7x7xf32>
    %74 = tpu.matmul %71, %73, %cst_20 {dimension_numbers = #tpu.dot_dimension_numbers<[1], [0], [0], [1], [0, 0, 1, 1], [], []>} : vector<7x8xbf16>, vector<8x7xbf16>, vector<7x7xf32> -> vector<7x7xf32>
    %cst_21 = arith.constant -1.000000e+09 : f32
    %75 = vector.broadcast %cst_21 : f32 to vector<7x7xf32>
    %76 = arith.select %13, %74, %75 : vector<7x7xi1>, vector<7x7xf32>
    %cst_22 = arith.constant dense<0xFF800000> : vector<7xf32>
    %77 = vector.multi_reduction <maximumf>, %76, %cst_22 [1] : vector<7x7xf32> to vector<7xf32>
    %78 = vector.shape_cast %77 : vector<7xf32> to vector<7x1xf32>
    %79 = vector.broadcast %78 : vector<7x1xf32> to vector<7x7xf32>
    %80 = arith.subf %76, %79 : vector<7x7xf32>
    %81 = math.exp %80 : vector<7x7xf32>
    %cst_23 = arith.constant dense<0.000000e+00> : vector<7xf32>
    %82 = vector.multi_reduction <add>, %81, %cst_23 [1] : vector<7x7xf32> to vector<7xf32>
    %83 = vector.shape_cast %82 : vector<7xf32> to vector<7x1xf32>
    %84 = tpu.reciprocal %83 {approx = true} : vector<7x1xf32> -> vector<7x1xf32>
    %85 = arith.truncf %81 : vector<7x7xf32> to vector<7x7xbf16>
    %86 = vector.extract_strided_slice %10 {offsets = [0, 24], sizes = [7, 8], strides = [1, 1]} : vector<7x32xbf16> to vector<7x8xbf16>
    %cst_24 = arith.constant dense<0.000000e+00> : vector<7x8xf32>
    %87 = tpu.matmul %85, %86, %cst_24 {dimension_numbers = #tpu.dot_dimension_numbers<[1], [0], [0], [1], [0, 0, 1, 1], [], []>} : vector<7x7xbf16>, vector<7x8xbf16>, vector<7x8xf32> -> vector<7x8xf32>
    %88 = vector.broadcast %84 : vector<7x1xf32> to vector<7x8xf32>
    %89 = arith.mulf %87, %88 : vector<7x8xf32>
    %90 = tpu.concatenate %32, %51, %70, %89 in 1 : vector<7x8xf32>, vector<7x8xf32>, vector<7x8xf32>, vector<7x8xf32> -> vector<7x32xf32>
    %c0_25 = arith.constant 0 : index
    %c0_26 = arith.constant 0 : index
    %c0_27 = arith.constant 0 : index
    %91 = vector.load %arg3[%c0_25, %c0_26, %c0_27] : memref<1x7x32xf32, #tpu.memory_space<vmem>>, vector<1x7x32xf32>
    %92 = vector.shape_cast %91 : vector<1x7x32xf32> to vector<7x32xf32>
    %93 = vector.shape_cast %90 : vector<7x32xf32> to vector<1x7x32xf32>
    tpu.vector_store %arg3[%c0_25, %c0_26, %c0_27], %93 {strides = array<i32>} : memref<1x7x32xf32, #tpu.memory_space<vmem>>, vector<1x7x32xf32>,
    return
  }
  func.func @transform_0(%arg0: i32) -> (i32, i32, i32) {
    %c0_i32 = arith.constant 0 : i32
    %c0_i32_0 = arith.constant 0 : i32
    %c0_i32_1 = arith.constant 0 : i32
    return %arg0, %c0_i32, %c0_i32_0 : i32, i32, i32
  }
  func.func @transform_1(%arg0: i32) -> (i32, i32, i32) {
    %c0_i32 = arith.constant 0 : i32
    %c0_i32_0 = arith.constant 0 : i32
    %c0_i32_1 = arith.constant 0 : i32
    return %arg0, %c0_i32, %c0_i32_0 : i32, i32, i32
  }
  func.func @transform_2(%arg0: i32) -> (i32, i32, i32) {
    %c0_i32 = arith.constant 0 : i32
    %c0_i32_0 = arith.constant 0 : i32
    %c0_i32_1 = arith.constant 0 : i32
    return %arg0, %c0_i32, %c0_i32_0 : i32, i32, i32
  }
}

module attributes {stable_mosaic.version = 11 : i64} {
  func.func @_mha_kernel(%arg0: i32, %arg1: memref<1x7x32xf32, #tpu.memory_space<vmem>>, %arg2: memref<1x8x64xf32, #tpu.memory_space<vmem>>, %arg3: memref<1x7x32xf32, #tpu.memory_space<vmem>>) attributes {dimension_semantics = [#tpu.dimension_semantics<parallel>], iteration_bounds = array<i64: 2>, scalar_prefetch = 0 : i64, scratch_operands = 0 : i64, tpu.core_type = #tpu.core_type<tc>, window_params = [{transform_indices = @transform_0, window_bounds = array<i64: 1, 7, 32>}, {transform_indices = @transform_1, window_bounds = array<i64: 1, 8, 64>}, {transform_indices = @transform_2, window_bounds = array<i64: 1, 7, 32>}]} {
    %c0 = arith.constant 0 : index
    %c0_0 = arith.constant 0 : index
    %c0_1 = arith.constant 0 : index
    %0 = vector.load %arg1[%c0, %c0_0, %c0_1] : memref<1x7x32xf32, #tpu.memory_space<vmem>>, vector<1x7x32xf32>
    %1 = vector.shape_cast %0 : vector<1x7x32xf32> to vector<7x32xf32>
    %c0_2 = arith.constant 0 : index
    %c0_3 = arith.constant 0 : index
    %c0_4 = arith.constant 0 : index
    %2 = vector.load %arg2[%c0_2, %c0_3, %c0_4] : memref<1x8x64xf32, #tpu.memory_space<vmem>>, vector<1x8x64xf32>
    %3 = vector.shape_cast %2 : vector<1x8x64xf32> to vector<8x64xf32>
    %cst = arith.constant 0.353553385 : f32
    %4 = vector.broadcast %cst : f32 to vector<7x32xf32>
    %5 = arith.mulf %1, %4 : vector<7x32xf32>
    %6 = arith.truncf %5 : vector<7x32xf32> to vector<7x32xbf16>
    %7 = vector.extract_strided_slice %3 {offsets = [0, 0], sizes = [8, 32], strides = [1, 1]} : vector<8x64xf32> to vector<8x32xf32>
    %8 = arith.truncf %7 : vector<8x32xf32> to vector<8x32xbf16>
    %9 = vector.extract_strided_slice %3 {offsets = [0, 32], sizes = [8, 32], strides = [1, 1]} : vector<8x64xf32> to vector<8x32xf32>
    %10 = arith.truncf %9 : vector<8x32xf32> to vector<8x32xbf16>
    %11 = vector.extract_strided_slice %6 {offsets = [0, 0], sizes = [7, 8], strides = [1, 1]} : vector<7x32xbf16> to vector<7x8xbf16>
    %12 = vector.extract_strided_slice %8 {offsets = [0, 0], sizes = [8, 8], strides = [1, 1]} : vector<8x32xbf16> to vector<8x8xbf16>
    %13 = tpu.transpose %12, [1, 0] : vector<8x8xbf16> -> vector<8x8xbf16>
    %cst_5 = arith.constant dense<0.000000e+00> : vector<7x8xf32>
    %14 = tpu.matmul %11, %13, %cst_5 {dimension_numbers = #tpu.dot_dimension_numbers<[1], [0], [0], [1], [0, 0, 1, 1], [], []>} : vector<7x8xbf16>, vector<8x8xbf16>, vector<7x8xf32> -> vector<7x8xf32>
    %cst_6 = arith.constant dense<0xFF800000> : vector<7xf32>
    %15 = vector.multi_reduction <maximumf>, %14, %cst_6 [1] : vector<7x8xf32> to vector<7xf32>
    %16 = vector.shape_cast %15 : vector<7xf32> to vector<7x1xf32>
    %17 = vector.broadcast %16 : vector<7x1xf32> to vector<7x8xf32>
    %18 = arith.subf %14, %17 : vector<7x8xf32>
    %19 = math.exp %18 : vector<7x8xf32>
    %cst_7 = arith.constant dense<0.000000e+00> : vector<7xf32>
    %20 = vector.multi_reduction <add>, %19, %cst_7 [1] : vector<7x8xf32> to vector<7xf32>
    %21 = vector.shape_cast %20 : vector<7xf32> to vector<7x1xf32>
    %22 = tpu.reciprocal %21 {approx = true} : vector<7x1xf32> -> vector<7x1xf32>
    %23 = arith.truncf %19 : vector<7x8xf32> to vector<7x8xbf16>
    %24 = vector.extract_strided_slice %10 {offsets = [0, 0], sizes = [8, 8], strides = [1, 1]} : vector<8x32xbf16> to vector<8x8xbf16>
    %cst_8 = arith.constant dense<0.000000e+00> : vector<7x8xf32>
    %25 = tpu.matmul %23, %24, %cst_8 {dimension_numbers = #tpu.dot_dimension_numbers<[1], [0], [0], [1], [0, 0, 1, 1], [], []>} : vector<7x8xbf16>, vector<8x8xbf16>, vector<7x8xf32> -> vector<7x8xf32>
    %26 = vector.broadcast %22 : vector<7x1xf32> to vector<7x8xf32>
    %27 = arith.mulf %25, %26 : vector<7x8xf32>
    %28 = vector.extract_strided_slice %6 {offsets = [0, 8], sizes = [7, 8], strides = [1, 1]} : vector<7x32xbf16> to vector<7x8xbf16>
    %29 = vector.extract_strided_slice %8 {offsets = [0, 8], sizes = [8, 8], strides = [1, 1]} : vector<8x32xbf16> to vector<8x8xbf16>
    %30 = tpu.transpose %29, [1, 0] : vector<8x8xbf16> -> vector<8x8xbf16>
    %cst_9 = arith.constant dense<0.000000e+00> : vector<7x8xf32>
    %31 = tpu.matmul %28, %30, %cst_9 {dimension_numbers = #tpu.dot_dimension_numbers<[1], [0], [0], [1], [0, 0, 1, 1], [], []>} : vector<7x8xbf16>, vector<8x8xbf16>, vector<7x8xf32> -> vector<7x8xf32>
    %cst_10 = arith.constant dense<0xFF800000> : vector<7xf32>
    %32 = vector.multi_reduction <maximumf>, %31, %cst_10 [1] : vector<7x8xf32> to vector<7xf32>
    %33 = vector.shape_cast %32 : vector<7xf32> to vector<7x1xf32>
    %34 = vector.broadcast %33 : vector<7x1xf32> to vector<7x8xf32>
    %35 = arith.subf %31, %34 : vector<7x8xf32>
    %36 = math.exp %35 : vector<7x8xf32>
    %cst_11 = arith.constant dense<0.000000e+00> : vector<7xf32>
    %37 = vector.multi_reduction <add>, %36, %cst_11 [1] : vector<7x8xf32> to vector<7xf32>
    %38 = vector.shape_cast %37 : vector<7xf32> to vector<7x1xf32>
    %39 = tpu.reciprocal %38 {approx = true} : vector<7x1xf32> -> vector<7x1xf32>
    %40 = arith.truncf %36 : vector<7x8xf32> to vector<7x8xbf16>
    %41 = vector.extract_strided_slice %10 {offsets = [0, 8], sizes = [8, 8], strides = [1, 1]} : vector<8x32xbf16> to vector<8x8xbf16>
    %cst_12 = arith.constant dense<0.000000e+00> : vector<7x8xf32>
    %42 = tpu.matmul %40, %41, %cst_12 {dimension_numbers = #tpu.dot_dimension_numbers<[1], [0], [0], [1], [0, 0, 1, 1], [], []>} : vector<7x8xbf16>, vector<8x8xbf16>, vector<7x8xf32> -> vector<7x8xf32>
    %43 = vector.broadcast %39 : vector<7x1xf32> to vector<7x8xf32>
    %44 = arith.mulf %42, %43 : vector<7x8xf32>
    %45 = vector.extract_strided_slice %6 {offsets = [0, 16], sizes = [7, 8], strides = [1, 1]} : vector<7x32xbf16> to vector<7x8xbf16>
    %46 = vector.extract_strided_slice %8 {offsets = [0, 16], sizes = [8, 8], strides = [1, 1]} : vector<8x32xbf16> to vector<8x8xbf16>
    %47 = tpu.transpose %46, [1, 0] : vector<8x8xbf16> -> vector<8x8xbf16>
    %cst_13 = arith.constant dense<0.000000e+00> : vector<7x8xf32>
    %48 = tpu.matmul %45, %47, %cst_13 {dimension_numbers = #tpu.dot_dimension_numbers<[1], [0], [0], [1], [0, 0, 1, 1], [], []>} : vector<7x8xbf16>, vector<8x8xbf16>, vector<7x8xf32> -> vector<7x8xf32>
    %cst_14 = arith.constant dense<0xFF800000> : vector<7xf32>
    %49 = vector.multi_reduction <maximumf>, %48, %cst_14 [1] : vector<7x8xf32> to vector<7xf32>
    %50 = vector.shape_cast %49 : vector<7xf32> to vector<7x1xf32>
    %51 = vector.broadcast %50 : vector<7x1xf32> to vector<7x8xf32>
    %52 = arith.subf %48, %51 : vector<7x8xf32>
    %53 = math.exp %52 : vector<7x8xf32>
    %cst_15 = arith.constant dense<0.000000e+00> : vector<7xf32>
    %54 = vector.multi_reduction <add>, %53, %cst_15 [1] : vector<7x8xf32> to vector<7xf32>
    %55 = vector.shape_cast %54 : vector<7xf32> to vector<7x1xf32>
    %56 = tpu.reciprocal %55 {approx = true} : vector<7x1xf32> -> vector<7x1xf32>
    %57 = arith.truncf %53 : vector<7x8xf32> to vector<7x8xbf16>
    %58 = vector.extract_strided_slice %10 {offsets = [0, 16], sizes = [8, 8], strides = [1, 1]} : vector<8x32xbf16> to vector<8x8xbf16>
    %cst_16 = arith.constant dense<0.000000e+00> : vector<7x8xf32>
    %59 = tpu.matmul %57, %58, %cst_16 {dimension_numbers = #tpu.dot_dimension_numbers<[1], [0], [0], [1], [0, 0, 1, 1], [], []>} : vector<7x8xbf16>, vector<8x8xbf16>, vector<7x8xf32> -> vector<7x8xf32>
    %60 = vector.broadcast %56 : vector<7x1xf32> to vector<7x8xf32>
    %61 = arith.mulf %59, %60 : vector<7x8xf32>
    %62 = vector.extract_strided_slice %6 {offsets = [0, 24], sizes = [7, 8], strides = [1, 1]} : vector<7x32xbf16> to vector<7x8xbf16>
    %63 = vector.extract_strided_slice %8 {offsets = [0, 24], sizes = [8, 8], strides = [1, 1]} : vector<8x32xbf16> to vector<8x8xbf16>
    %64 = tpu.transpose %63, [1, 0] : vector<8x8xbf16> -> vector<8x8xbf16>
    %cst_17 = arith.constant dense<0.000000e+00> : vector<7x8xf32>
    %65 = tpu.matmul %62, %64, %cst_17 {dimension_numbers = #tpu.dot_dimension_numbers<[1], [0], [0], [1], [0, 0, 1, 1], [], []>} : vector<7x8xbf16>, vector<8x8xbf16>, vector<7x8xf32> -> vector<7x8xf32>
    %cst_18 = arith.constant dense<0xFF800000> : vector<7xf32>
    %66 = vector.multi_reduction <maximumf>, %65, %cst_18 [1] : vector<7x8xf32> to vector<7xf32>
    %67 = vector.shape_cast %66 : vector<7xf32> to vector<7x1xf32>
    %68 = vector.broadcast %67 : vector<7x1xf32> to vector<7x8xf32>
    %69 = arith.subf %65, %68 : vector<7x8xf32>
    %70 = math.exp %69 : vector<7x8xf32>
    %cst_19 = arith.constant dense<0.000000e+00> : vector<7xf32>
    %71 = vector.multi_reduction <add>, %70, %cst_19 [1] : vector<7x8xf32> to vector<7xf32>
    %72 = vector.shape_cast %71 : vector<7xf32> to vector<7x1xf32>
    %73 = tpu.reciprocal %72 {approx = true} : vector<7x1xf32> -> vector<7x1xf32>
    %74 = arith.truncf %70 : vector<7x8xf32> to vector<7x8xbf16>
    %75 = vector.extract_strided_slice %10 {offsets = [0, 24], sizes = [8, 8], strides = [1, 1]} : vector<8x32xbf16> to vector<8x8xbf16>
    %cst_20 = arith.constant dense<0.000000e+00> : vector<7x8xf32>
    %76 = tpu.matmul %74, %75, %cst_20 {dimension_numbers = #tpu.dot_dimension_numbers<[1], [0], [0], [1], [0, 0, 1, 1], [], []>} : vector<7x8xbf16>, vector<8x8xbf16>, vector<7x8xf32> -> vector<7x8xf32>
    %77 = vector.broadcast %73 : vector<7x1xf32> to vector<7x8xf32>
    %78 = arith.mulf %76, %77 : vector<7x8xf32>
    %79 = tpu.concatenate %27, %44, %61, %78 in 1 : vector<7x8xf32>, vector<7x8xf32>, vector<7x8xf32>, vector<7x8xf32> -> vector<7x32xf32>
    %c0_21 = arith.constant 0 : index
    %c0_22 = arith.constant 0 : index
    %c0_23 = arith.constant 0 : index
    %80 = vector.load %arg3[%c0_21, %c0_22, %c0_23] : memref<1x7x32xf32, #tpu.memory_space<vmem>>, vector<1x7x32xf32>
    %81 = vector.shape_cast %80 : vector<1x7x32xf32> to vector<7x32xf32>
    %82 = vector.shape_cast %79 : vector<7x32xf32> to vector<1x7x32xf32>
    tpu.vector_store %arg3[%c0_21, %c0_22, %c0_23], %82 {strides = array<i32>} : memref<1x7x32xf32, #tpu.memory_space<vmem>>, vector<1x7x32xf32>,
    return
  }
  func.func @transform_0(%arg0: i32) -> (i32, i32, i32) {
    %c0_i32 = arith.constant 0 : i32
    %c0_i32_0 = arith.constant 0 : i32
    %c0_i32_1 = arith.constant 0 : i32
    return %arg0, %c0_i32, %c0_i32_0 : i32, i32, i32
  }
  func.func @transform_1(%arg0: i32) -> (i32, i32, i32) {
    %c0_i32 = arith.constant 0 : i32
    %c0_i32_0 = arith.constant 0 : i32
    %c0_i32_1 = arith.constant 0 : i32
    return %arg0, %c0_i32, %c0_i32_0 : i32, i32, i32
  }
  func.func @transform_2(%arg0: i32) -> (i32, i32, i32) {
    %c0_i32 = arith.constant 0 : i32
    %c0_i32_0 = arith.constant 0 : i32
    %c0_i32_1 = arith.constant 0 : i32
    return %arg0, %c0_i32, %c0_i32_0 : i32, i32, i32
  }
}

module attributes {stable_mosaic.version = 11 : i64} {
  func.func @_ln_ffn_res_kernel(%arg0: i32, %arg1: memref<14x32xf32, #tpu.memory_space<vmem>>, %arg2: memref<1x32xf32, #tpu.memory_space<vmem>>, %arg3: memref<1x32xf32, #tpu.memory_space<vmem>>, %arg4: memref<32x64xbf16, #tpu.memory_space<vmem>>, %arg5: memref<1x64xf32, #tpu.memory_space<vmem>>, %arg6: memref<64x32xbf16, #tpu.memory_space<vmem>>, %arg7: memref<1x32xf32, #tpu.memory_space<vmem>>, %arg8: memref<14x32xf32, #tpu.memory_space<vmem>>) attributes {dimension_semantics = [#tpu.dimension_semantics<parallel>], iteration_bounds = array<i64: 1>, scalar_prefetch = 0 : i64, scratch_operands = 0 : i64, tpu.core_type = #tpu.core_type<tc>, window_params = [{transform_indices = @transform_0, window_bounds = array<i64: 14, 32>}, {pipeline_mode = #tpu.pipeline_mode<synchronous>, transform_indices = @transform_1, window_bounds = array<i64: 1, 32>}, {pipeline_mode = #tpu.pipeline_mode<synchronous>, transform_indices = @transform_2, window_bounds = array<i64: 1, 32>}, {pipeline_mode = #tpu.pipeline_mode<synchronous>, transform_indices = @transform_3, window_bounds = array<i64: 32, 64>}, {pipeline_mode = #tpu.pipeline_mode<synchronous>, transform_indices = @transform_4, window_bounds = array<i64: 1, 64>}, {pipeline_mode = #tpu.pipeline_mode<synchronous>, transform_indices = @transform_5, window_bounds = array<i64: 64, 32>}, {pipeline_mode = #tpu.pipeline_mode<synchronous>, transform_indices = @transform_6, window_bounds = array<i64: 1, 32>}, {transform_indices = @transform_7, window_bounds = array<i64: 14, 32>}]} {
    %c0 = arith.constant 0 : index
    %c0_0 = arith.constant 0 : index
    %0 = vector.load %arg1[%c0, %c0_0] : memref<14x32xf32, #tpu.memory_space<vmem>>, vector<14x32xf32>
    %c0_1 = arith.constant 0 : index
    %c0_2 = arith.constant 0 : index
    %1 = vector.load %arg2[%c0_1, %c0_2] : memref<1x32xf32, #tpu.memory_space<vmem>>, vector<1x32xf32>
    %c0_3 = arith.constant 0 : index
    %c0_4 = arith.constant 0 : index
    %2 = vector.load %arg3[%c0_3, %c0_4] : memref<1x32xf32, #tpu.memory_space<vmem>>, vector<1x32xf32>
    %cst = arith.constant dense<0.000000e+00> : vector<14xf32>
    %3 = vector.multi_reduction <add>, %0, %cst [1] : vector<14x32xf32> to vector<14xf32>
    %4 = vector.shape_cast %3 : vector<14xf32> to vector<14x1xf32>
    %cst_5 = arith.constant 3.200000e+01 : f32
    %5 = vector.broadcast %cst_5 : f32 to vector<14x1xf32>
    %6 = arith.divf %4, %5 : vector<14x1xf32>
    %7 = vector.broadcast %6 : vector<14x1xf32> to vector<14x32xf32>
    %8 = arith.subf %0, %7 : vector<14x32xf32>
    %9 = arith.mulf %8, %8 : vector<14x32xf32>
    %cst_6 = arith.constant dense<0.000000e+00> : vector<14xf32>
    %10 = vector.multi_reduction <add>, %9, %cst_6 [1] : vector<14x32xf32> to vector<14xf32>
    %11 = vector.shape_cast %10 : vector<14xf32> to vector<14x1xf32>
    %cst_7 = arith.constant 3.200000e+01 : f32
    %12 = vector.broadcast %cst_7 : f32 to vector<14x1xf32>
    %13 = arith.divf %11, %12 : vector<14x1xf32>
    %cst_8 = arith.constant 9.99999974E-6 : f32
    %14 = vector.broadcast %cst_8 : f32 to vector<14x1xf32>
    %15 = arith.addf %13, %14 : vector<14x1xf32>
    %16 = math.rsqrt %15 : vector<14x1xf32>
    %17 = vector.broadcast %16 : vector<14x1xf32> to vector<14x32xf32>
    %18 = arith.mulf %8, %17 : vector<14x32xf32>
    %19 = vector.broadcast %1 : vector<1x32xf32> to vector<14x32xf32>
    %20 = arith.mulf %18, %19 : vector<14x32xf32>
    %21 = vector.broadcast %2 : vector<1x32xf32> to vector<14x32xf32>
    %22 = arith.addf %20, %21 : vector<14x32xf32>
    %23 = arith.truncf %22 : vector<14x32xf32> to vector<14x32xbf16>
    %c0_9 = arith.constant 0 : index
    %c0_10 = arith.constant 0 : index
    %24 = vector.load %arg4[%c0_9, %c0_10] : memref<32x64xbf16, #tpu.memory_space<vmem>>, vector<32x64xbf16>
    %cst_11 = arith.constant dense<0.000000e+00> : vector<14x64xf32>
    %25 = tpu.matmul %23, %24, %cst_11 {dimension_numbers = #tpu.dot_dimension_numbers<[1], [0], [0], [1], [0, 0, 1, 1], [], []>} : vector<14x32xbf16>, vector<32x64xbf16>, vector<14x64xf32> -> vector<14x64xf32>
    %c0_12 = arith.constant 0 : index
    %c0_13 = arith.constant 0 : index
    %26 = vector.load %arg5[%c0_12, %c0_13] : memref<1x64xf32, #tpu.memory_space<vmem>>, vector<1x64xf32>
    %27 = vector.broadcast %26 : vector<1x64xf32> to vector<14x64xf32>
    %28 = arith.addf %25, %27 : vector<14x64xf32>
    %cst_14 = arith.constant 0.000000e+00 : f32
    %29 = vector.broadcast %cst_14 : f32 to vector<14x64xf32>
    %30 = arith.maximumf %28, %29 : vector<14x64xf32>
    %31 = arith.truncf %30 : vector<14x64xf32> to vector<14x64xbf16>
    %c0_15 = arith.constant 0 : index
    %c0_16 = arith.constant 0 : index
    %32 = vector.load %arg6[%c0_15, %c0_16] : memref<64x32xbf16, #tpu.memory_space<vmem>>, vector<64x32xbf16>
    %cst_17 = arith.constant dense<0.000000e+00> : vector<14x32xf32>
    %33 = tpu.matmul %31, %32, %cst_17 {dimension_numbers = #tpu.dot_dimension_numbers<[1], [0], [0], [1], [0, 0, 1, 1], [], []>} : vector<14x64xbf16>, vector<64x32xbf16>, vector<14x32xf32> -> vector<14x32xf32>
    %c0_18 = arith.constant 0 : index
    %c0_19 = arith.constant 0 : index
    %34 = vector.load %arg7[%c0_18, %c0_19] : memref<1x32xf32, #tpu.memory_space<vmem>>, vector<1x32xf32>
    %35 = vector.broadcast %34 : vector<1x32xf32> to vector<14x32xf32>
    %36 = arith.addf %33, %35 : vector<14x32xf32>
    %37 = arith.addf %0, %36 : vector<14x32xf32>
    %c0_20 = arith.constant 0 : index
    %c0_21 = arith.constant 0 : index
    %38 = vector.load %arg8[%c0_20, %c0_21] : memref<14x32xf32, #tpu.memory_space<vmem>>, vector<14x32xf32>
    tpu.vector_store %arg8[%c0_20, %c0_21], %37 {strides = array<i32>} : memref<14x32xf32, #tpu.memory_space<vmem>>, vector<14x32xf32>,
    return
  }
  func.func @transform_0(%arg0: i32) -> (i32, i32) {
    %c0_i32 = arith.constant 0 : i32
    %c0_i32_0 = arith.constant 0 : i32
    return %arg0, %c0_i32 : i32, i32
  }
  func.func @transform_1(%arg0: i32) -> (i32, i32) {
    %c0_i32 = arith.constant 0 : i32
    %c0_i32_0 = arith.constant 0 : i32
    %c0_i32_1 = arith.constant 0 : i32
    return %c0_i32, %c0_i32_0 : i32, i32
  }
  func.func @transform_2(%arg0: i32) -> (i32, i32) {
    %c0_i32 = arith.constant 0 : i32
    %c0_i32_0 = arith.constant 0 : i32
    %c0_i32_1 = arith.constant 0 : i32
    return %c0_i32, %c0_i32_0 : i32, i32
  }
  func.func @transform_3(%arg0: i32) -> (i32, i32) {
    %c0_i32 = arith.constant 0 : i32
    %c0_i32_0 = arith.constant 0 : i32
    %c0_i32_1 = arith.constant 0 : i32
    return %c0_i32, %c0_i32_0 : i32, i32
  }
  func.func @transform_4(%arg0: i32) -> (i32, i32) {
    %c0_i32 = arith.constant 0 : i32
    %c0_i32_0 = arith.constant 0 : i32
    %c0_i32_1 = arith.constant 0 : i32
    return %c0_i32, %c0_i32_0 : i32, i32
  }
  func.func @transform_5(%arg0: i32) -> (i32, i32) {
    %c0_i32 = arith.constant 0 : i32
    %c0_i32_0 = arith.constant 0 : i32
    %c0_i32_1 = arith.constant 0 : i32
    return %c0_i32, %c0_i32_0 : i32, i32
  }
  func.func @transform_6(%arg0: i32) -> (i32, i32) {
    %c0_i32 = arith.constant 0 : i32
    %c0_i32_0 = arith.constant 0 : i32
    %c0_i32_1 = arith.constant 0 : i32
    return %c0_i32, %c0_i32_0 : i32, i32
  }
  func.func @transform_7(%arg0: i32) -> (i32, i32) {
    %c0_i32 = arith.constant 0 : i32
    %c0_i32_0 = arith.constant 0 : i32
    return %arg0, %c0_i32 : i32, i32
  }
}

module attributes {stable_mosaic.version = 11 : i64} {
  func.func @_ln_linear_kernel(%arg0: i32, %arg1: memref<14x32xf32, #tpu.memory_space<vmem>>, %arg2: memref<1x32xf32, #tpu.memory_space<vmem>>, %arg3: memref<1x32xf32, #tpu.memory_space<vmem>>, %arg4: memref<32x40xbf16, #tpu.memory_space<vmem>>, %arg5: memref<1x40xf32, #tpu.memory_space<vmem>>, %arg6: memref<14x40xf32, #tpu.memory_space<vmem>>) attributes {dimension_semantics = [#tpu.dimension_semantics<parallel>], iteration_bounds = array<i64: 1>, scalar_prefetch = 0 : i64, scratch_operands = 0 : i64, tpu.core_type = #tpu.core_type<tc>, window_params = [{transform_indices = @transform_0, window_bounds = array<i64: 14, 32>}, {pipeline_mode = #tpu.pipeline_mode<synchronous>, transform_indices = @transform_1, window_bounds = array<i64: 1, 32>}, {pipeline_mode = #tpu.pipeline_mode<synchronous>, transform_indices = @transform_2, window_bounds = array<i64: 1, 32>}, {pipeline_mode = #tpu.pipeline_mode<synchronous>, transform_indices = @transform_3, window_bounds = array<i64: 32, 40>}, {pipeline_mode = #tpu.pipeline_mode<synchronous>, transform_indices = @transform_4, window_bounds = array<i64: 1, 40>}, {transform_indices = @transform_5, window_bounds = array<i64: 14, 40>}]} {
    %c0 = arith.constant 0 : index
    %c0_0 = arith.constant 0 : index
    %0 = vector.load %arg1[%c0, %c0_0] : memref<14x32xf32, #tpu.memory_space<vmem>>, vector<14x32xf32>
    %c0_1 = arith.constant 0 : index
    %c0_2 = arith.constant 0 : index
    %1 = vector.load %arg2[%c0_1, %c0_2] : memref<1x32xf32, #tpu.memory_space<vmem>>, vector<1x32xf32>
    %c0_3 = arith.constant 0 : index
    %c0_4 = arith.constant 0 : index
    %2 = vector.load %arg3[%c0_3, %c0_4] : memref<1x32xf32, #tpu.memory_space<vmem>>, vector<1x32xf32>
    %cst = arith.constant dense<0.000000e+00> : vector<14xf32>
    %3 = vector.multi_reduction <add>, %0, %cst [1] : vector<14x32xf32> to vector<14xf32>
    %4 = vector.shape_cast %3 : vector<14xf32> to vector<14x1xf32>
    %cst_5 = arith.constant 3.200000e+01 : f32
    %5 = vector.broadcast %cst_5 : f32 to vector<14x1xf32>
    %6 = arith.divf %4, %5 : vector<14x1xf32>
    %7 = vector.broadcast %6 : vector<14x1xf32> to vector<14x32xf32>
    %8 = arith.subf %0, %7 : vector<14x32xf32>
    %9 = arith.mulf %8, %8 : vector<14x32xf32>
    %cst_6 = arith.constant dense<0.000000e+00> : vector<14xf32>
    %10 = vector.multi_reduction <add>, %9, %cst_6 [1] : vector<14x32xf32> to vector<14xf32>
    %11 = vector.shape_cast %10 : vector<14xf32> to vector<14x1xf32>
    %cst_7 = arith.constant 3.200000e+01 : f32
    %12 = vector.broadcast %cst_7 : f32 to vector<14x1xf32>
    %13 = arith.divf %11, %12 : vector<14x1xf32>
    %cst_8 = arith.constant 9.99999974E-6 : f32
    %14 = vector.broadcast %cst_8 : f32 to vector<14x1xf32>
    %15 = arith.addf %13, %14 : vector<14x1xf32>
    %16 = math.rsqrt %15 : vector<14x1xf32>
    %17 = vector.broadcast %16 : vector<14x1xf32> to vector<14x32xf32>
    %18 = arith.mulf %8, %17 : vector<14x32xf32>
    %19 = vector.broadcast %1 : vector<1x32xf32> to vector<14x32xf32>
    %20 = arith.mulf %18, %19 : vector<14x32xf32>
    %21 = vector.broadcast %2 : vector<1x32xf32> to vector<14x32xf32>
    %22 = arith.addf %20, %21 : vector<14x32xf32>
    %23 = arith.truncf %22 : vector<14x32xf32> to vector<14x32xbf16>
    %c0_9 = arith.constant 0 : index
    %c0_10 = arith.constant 0 : index
    %24 = vector.load %arg4[%c0_9, %c0_10] : memref<32x40xbf16, #tpu.memory_space<vmem>>, vector<32x40xbf16>
    %cst_11 = arith.constant dense<0.000000e+00> : vector<14x40xf32>
    %25 = tpu.matmul %23, %24, %cst_11 {dimension_numbers = #tpu.dot_dimension_numbers<[1], [0], [0], [1], [0, 0, 1, 1], [], []>} : vector<14x32xbf16>, vector<32x40xbf16>, vector<14x40xf32> -> vector<14x40xf32>
    %c0_12 = arith.constant 0 : index
    %c0_13 = arith.constant 0 : index
    %26 = vector.load %arg5[%c0_12, %c0_13] : memref<1x40xf32, #tpu.memory_space<vmem>>, vector<1x40xf32>
    %27 = vector.broadcast %26 : vector<1x40xf32> to vector<14x40xf32>
    %28 = arith.addf %25, %27 : vector<14x40xf32>
    %c0_14 = arith.constant 0 : index
    %c0_15 = arith.constant 0 : index
    %29 = vector.load %arg6[%c0_14, %c0_15] : memref<14x40xf32, #tpu.memory_space<vmem>>, vector<14x40xf32>
    tpu.vector_store %arg6[%c0_14, %c0_15], %28 {strides = array<i32>} : memref<14x40xf32, #tpu.memory_space<vmem>>, vector<14x40xf32>,
    return
  }
  func.func @transform_0(%arg0: i32) -> (i32, i32) {
    %c0_i32 = arith.constant 0 : i32
    %c0_i32_0 = arith.constant 0 : i32
    return %arg0, %c0_i32 : i32, i32
  }
  func.func @transform_1(%arg0: i32) -> (i32, i32) {
    %c0_i32 = arith.constant 0 : i32
    %c0_i32_0 = arith.constant 0 : i32
    %c0_i32_1 = arith.constant 0 : i32
    return %c0_i32, %c0_i32_0 : i32, i32
  }
  func.func @transform_2(%arg0: i32) -> (i32, i32) {
    %c0_i32 = arith.constant 0 : i32
    %c0_i32_0 = arith.constant 0 : i32
    %c0_i32_1 = arith.constant 0 : i32
    return %c0_i32, %c0_i32_0 : i32, i32
  }
  func.func @transform_3(%arg0: i32) -> (i32, i32) {
    %c0_i32 = arith.constant 0 : i32
    %c0_i32_0 = arith.constant 0 : i32
    %c0_i32_1 = arith.constant 0 : i32
    return %c0_i32, %c0_i32_0 : i32, i32
  }
  func.func @transform_4(%arg0: i32) -> (i32, i32) {
    %c0_i32 = arith.constant 0 : i32
    %c0_i32_0 = arith.constant 0 : i32
    %c0_i32_1 = arith.constant 0 : i32
    return %c0_i32, %c0_i32_0 : i32, i32
  }
  func.func @transform_5(%arg0: i32) -> (i32, i32) {
    %c0_i32 = arith.constant 0 : i32
    %c0_i32_0 = arith.constant 0 : i32
    return %arg0, %c0_i32 : i32, i32
  }
}

</mosaic_0001>

<llo_original>
// kernel: transformer_forward.28
$region0: #{transformer_forward.28}
  #allocation0 [shape = 'u32[]', space=smem, size = 0x4, offset = 0x4, fixed_abs, tag = 'smem constant byte address 0x4 - core index']
  #allocation1 [shape = 'u32[144,128]{1,0:T(1,128)}', space=vmem, size = 0x12000, scoped, tag = 'internal scratch']
  %s0 = inlined_call_operand.vmem [shape: f32[16,32], index: 0, kind: input, shape index: {}]
  %s1 = inlined_call_operand.vmem [shape: f32[1,32], index: 1, kind: input, shape index: {}]
  %s2 = inlined_call_operand.vmem [shape: f32[1,32], index: 2, kind: input, shape index: {}]
  %s3 = inlined_call_operand.vmem [shape: bf16[32,96], index: 3, kind: input, shape index: {}]
  %s4 = inlined_call_operand.vmem [shape: f32[1,96], index: 4, kind: input, shape index: {}]
  %s5 = inlined_call_operand.vmem [shape: f32[16,32], index: 5, kind: output, shape index: {0}]
  %s6 = inlined_call_operand.vmem [shape: f32[16,64], index: 6, kind: output, shape index: {1}]
  %7 = xla_tuple %s5, %s6
  %s8 = sld [smem:[#allocation0]]
  $region38: #{transformer_forward.28} parent=0
    _
  %s10 = ssub.s32 1, %s8
  %s11 = scalar_select 0, %s10, %s8
  // Predicated region
  $region2: #{transformer_forward.28} parent=0 // pred_check
    _
  $region3: #{transformer_forward.28} parent=0 // pred_check_branch
    %13 = sbr.rel (0) target = $region5
  $region4: #{transformer_forward.28} parent=0 // pred_region
    _
  $region5: #{transformer_forward.28} parent=0 // pred_fallthru
    _
  // Predicated region
  $region6: #{transformer_forward.28} parent=0 // pred_check
    _
  $region7: #{transformer_forward.28} parent=0 // pred_check_branch
    %15 = sbr.rel (0) target = $region9
  $region8: #{transformer_forward.28} parent=0 // pred_region
    _
  $region9: #{transformer_forward.28} parent=0 // pred_fallthru
    _
  // Predicated region
  $region10: #{transformer_forward.28} parent=0 // pred_check
    _
  $region11: #{transformer_forward.28} parent=0 // pred_check_branch
    %17 = sbr.rel (0) target = $region13
  $region12: #{transformer_forward.28} parent=0 // pred_region
    _
  $region13: #{transformer_forward.28} parent=0 // pred_fallthru
    _
  // Predicated region
  $region14: #{transformer_forward.28} parent=0 // pred_check
    _
  $region15: #{transformer_forward.28} parent=0 // pred_check_branch
    %19 = sbr.rel (0) target = $region17
  $region16: #{transformer_forward.28} parent=0 // pred_region
    _
  $region17: #{transformer_forward.28} parent=0 // pred_fallthru
    _
  // Predicated region
  $region18: #{transformer_forward.28} parent=0 // pred_check
    _
  $region19: #{transformer_forward.28} parent=0 // pred_check_branch
    %21 = sbr.rel (0) target = $region21
  $region20: #{transformer_forward.28} parent=0 // pred_region
    _
  $region21: #{transformer_forward.28} parent=0 // pred_fallthru
    _
  %v23 = vld [vmem:[%s0] sm:$0xff]
  %v24 = vld [vmem:[%s0 + $0x8] sm:$0xff]
  %v25 = vld [vmem:[%s1] sm:$0x1]
  %v26 = vld [vmem:[%s2] sm:$0x1]
  %vm27 = vcmask 261120
  %v28 = vsel %vm27, %v23, 0.0
  %29 = vadd.xlane.f32.xlu0 %v28
  %v30 = vpop.xlane.xlu0 %29
  %v31 = vsel %vm27, %v24, 0.0
  %32 = vadd.xlane.f32.xlu0 %v31
  %v33 = vpop.xlane.xlu0 %32
  %v34 = vrcp.pop 32.0
  %v35 = vmul.f32 %v30, %v34
  %v36 = vmul.f32 %v33, %v34
  %v37 = vsub.f32 %v23, %v35
  %v38 = vsub.f32 %v24, %v36
  %v39 = vmul.f32 %v37, %v37
  %v40 = vmul.f32 %v38, %v38
  %v41 = vsel %vm27, %v39, 0.0
  %42 = vadd.xlane.f32.xlu0 %v41
  %v43 = vpop.xlane.xlu0 %42
  %v44 = vsel %vm27, %v40, 0.0
  %45 = vadd.xlane.f32.xlu0 %v44
  %v46 = vpop.xlane.xlu0 %45
  %v47 = vmul.f32 %v43, %v34
  %v48 = vmul.f32 %v46, %v34
  %v49 = vadd.f32 %v47, 1e-05
  %v50 = vadd.f32 %v48, 1e-05
  %v51 = vrsqrt.pop %v49
  %v52 = vrsqrt.pop %v50
  %v53 = vmul.f32 %v37, %v51
  %v54 = vmul.f32 %v38, %v52
  %v56 = vlaneseq
  %v57 = vshrl.u32 %v56, 7
  %v58 = vsub.s32 0, %v57
  %v59 = vrot.slane %v25, %v58
  %v61 = vmul.f32 %v53, %v59
  %v62 = vmul.f32 %v54, %v59
  %v64 = vlaneseq
  %v65 = vshrl.u32 %v64, 7
  %v66 = vsub.s32 0, %v65
  %v67 = vrot.slane %v26, %v66
  %v69 = vadd.f32 %v61, %v67
  %v70 = vadd.f32 %v62, %v67
  %v71 = vpack.c.bf16 %v70, %v69
  %v72 = vld [vmem:[%s3] sm:$0xf]
  %v73 = vld [vmem:[%s3 + $0x4] sm:$0xf]
  %v74 = vld [vmem:[%s3 + $0x8] sm:$0xf]
  %v75 = vld [vmem:[%s3 + $0xc] sm:$0xf]
  %v76 = vld [vmem:[%s4] sm:$0x1]
  %v78 = vlaneseq
  %v79 = vshrl.u32 %v78, 7
  %v80 = vsub.s32 0, %v79
  %v81 = vrot.slane %v76, %v80
  %v87 = vunpack.c.l.b16 %v72
  %v88 = vunpack.c.l.b16 %v73
  %v89 = vunpack.c.l.b16 %v74
  %v90 = vunpack.c.l.b16 %v75
  %v91 = vpack.c.b16 %v88, %v87
  %v92 = vpack.c.b16 %v90, %v89
  %v96 = vsel %vm27, %v71, 0
  %98 = vmatprep.subr.bf16.mxu0 0
  %99 = vmatpush1.bf16.msra.mxu0 0
  %100 = vmatprep.subr.bf16.mxu0 0
  %101 = vmatpush1.bf16.msra.mxu0 0
  %102 = vmatprep.subr.bf16.mxu0 0
  %103 = vmatpush1.bf16.msra.mxu0 0
  %104 = vmatprep.subr.bf16.mxu0 0
  %105 = vmatpush1.bf16.msra.mxu0 0
  %106 = vmatprep.subr.bf16.mxu0 0
  %107 = vmatpush1.bf16.msra.mxu0 0
  %108 = vmatprep.subr.bf16.mxu0 0
  %109 = vmatpush1.bf16.msra.mxu0 0
  %110 = vmatprep.subr.bf16.mxu0 0
  %111 = vmatpush1.bf16.msra.mxu0 %v92
  %112 = vmatprep.subr.bf16.mxu0 0
  %113 = vmatpush1.bf16.msra.mxu0 %v91
  %114 = vmatprep.subr.bf16.mxu0 0
  %115 = vmatpush2.bf16.msra.mxu0 0
  %116 = vmatprep.subr.bf16.mxu0 0
  %117 = vmatpush2.bf16.msra.mxu0 0
  %118 = vmatprep.subr.bf16.mxu0 0
  %119 = vmatpush2.bf16.msra.mxu0 0
  %120 = vmatprep.subr.bf16.mxu0 0
  %121 = vmatpush2.bf16.msra.mxu0 0
  %122 = vmatprep.subr.bf16.mxu0 0
  %123 = vmatpush2.bf16.msra.mxu0 0
  %124 = vmatprep.subr.bf16.mxu0 0
  %125 = vmatpush2.bf16.msra.mxu0 0
  %126 = vmatprep.subr.bf16.mxu0 0
  %127 = vmatpush2.bf16.msra.mxu0 0
  %128 = vmatprep.subr.bf16.mxu0 0
  %129 = vmatpush2.bf16.msra.mxu0 0
  %130 = vmatprep.mubr.bf16.mxu0 0
  %131 = vmatmul.mubr.bf16.gmra.mxu0 %v96
  %v132 = vpop.f32.mrf.mxu0
  %v133 = vadd.f32 %v81, %v132
  %v134 = vpop.f32.mrf.mxu0
  %v135 = vpop.f32.mrf.mxu0
  %v136 = vadd.f32 %v81, %v135
  %v137 = vpop.f32.mrf.mxu0
  %138 = vdwg.mxu0
  %139 = vst.msk [vmem:[%s5] sm:$0xff] %vm27, %v133
  %140 = vst.msk [vmem:[%s5 + $0x8] sm:$0xff] %vm27, %v136
  %143 = vrot.lane.b32.xlu0 %v133, 96
  %v144 = vpop.permute.xlu0 %143
  %145 = vrot.lane.b32.xlu0 %v136, 96
  %v146 = vpop.permute.xlu0 %145
  %vm149 = vcmask 523264
  %150 = vst.msk [vmem:[%s6] sm:$0xff] %vm149, %v144
  %151 = vst.msk [vmem:[%s6 + $0x8] sm:$0xff] %vm149, %v146
  // Predicated region
  $region22: #{transformer_forward.28} parent=0 // pred_check
    _
  $region23: #{transformer_forward.28} parent=0 // pred_check_branch
    %153 = sbr.rel (0) target = $region25
  $region24: #{transformer_forward.28} parent=0 // pred_region
    _
  $region25: #{transformer_forward.28} parent=0 // pred_fallthru
    _
  // Predicated region
  $region26: #{transformer_forward.28} parent=0 // pred_check
    _
  $region27: #{transformer_forward.28} parent=0 // pred_check_branch
    %155 = sbr.rel (0) target = $region29
  $region28: #{transformer_forward.28} parent=0 // pred_region
    _
  $region29: #{transformer_forward.28} parent=0 // pred_fallthru
    _
  // Predicated region
  $region30: #{transformer_forward.28} parent=0 // pred_check
    _
  $region31: #{transformer_forward.28} parent=0 // pred_check_branch
    %157 = sbr.rel (0) target = $region33
  $region32: #{transformer_forward.28} parent=0 // pred_region
    _
  $region33: #{transformer_forward.28} parent=0 // pred_fallthru
    _
  // Predicated region
  $region34: #{transformer_forward.28} parent=0 // pred_check
    _
  $region35: #{transformer_forward.28} parent=0 // pred_check_branch
    %159 = sbr.rel (0) target = $region37
  $region36: #{transformer_forward.28} parent=0 // pred_region
    _
  $region37: #{transformer_forward.28} parent=0 // pred_fallthru
    _

// kernel: transformer_forward.30
$region0: #{transformer_forward.30}
  #allocation0 [shape = 'u32[]', space=smem, size = 0x4, offset = 0x4, fixed_abs, tag = 'smem constant byte address 0x4 - core index']
  #allocation1 [shape = 'u32[144,128]{1,0:T(1,128)}', space=vmem, size = 0x12000, scoped, tag = 'internal scratch']
  %s0 = inlined_call_operand.vmem [shape: f32[16,32], index: 0, kind: input, shape index: {}]
  %s1 = inlined_call_operand.vmem [shape: bf16[32,32], index: 1, kind: input, shape index: {}]
  %s2 = inlined_call_operand.vmem [shape: f32[1,32], index: 2, kind: input, shape index: {}]
  %s3 = inlined_call_operand.vmem [shape: f32[16,32], index: 3, kind: input, shape index: {}]
  %s4 = inlined_call_operand.vmem [shape: f32[16,32], index: 4, kind: output, shape index: {}]
  %s5 = sld [smem:[#allocation0]]
  $region26: #{transformer_forward.30} parent=0
    _
  %s7 = ssub.s32 1, %s5
  %s8 = scalar_select 0, %s7, %s5
  // Predicated region
  $region2: #{transformer_forward.30} parent=0 // pred_check
    _
  $region3: #{transformer_forward.30} parent=0 // pred_check_branch
    %10 = sbr.rel (0) target = $region5
  $region4: #{transformer_forward.30} parent=0 // pred_region
    _
  $region5: #{transformer_forward.30} parent=0 // pred_fallthru
    _
  // Predicated region
  $region6: #{transformer_forward.30} parent=0 // pred_check
    _
  $region7: #{transformer_forward.30} parent=0 // pred_check_branch
    %12 = sbr.rel (0) target = $region9
  $region8: #{transformer_forward.30} parent=0 // pred_region
    _
  $region9: #{transformer_forward.30} parent=0 // pred_fallthru
    _
  // Predicated region
  $region10: #{transformer_forward.30} parent=0 // pred_check
    _
  $region11: #{transformer_forward.30} parent=0 // pred_check_branch
    %14 = sbr.rel (0) target = $region13
  $region12: #{transformer_forward.30} parent=0 // pred_region
    _
  $region13: #{transformer_forward.30} parent=0 // pred_fallthru
    _
  // Predicated region
  $region14: #{transformer_forward.30} parent=0 // pred_check
    _
  $region15: #{transformer_forward.30} parent=0 // pred_check_branch
    %16 = sbr.rel (0) target = $region17
  $region16: #{transformer_forward.30} parent=0 // pred_region
    _
  $region17: #{transformer_forward.30} parent=0 // pred_fallthru
    _
  %v18 = vld [vmem:[%s0] sm:$0xff]
  %v19 = vld [vmem:[%s0 + $0x8] sm:$0xff]
  %v20 = vpack.c.bf16 %v19, %v18
  %v21 = vld [vmem:[%s1] sm:$0xf]
  %v22 = vld [vmem:[%s1 + $0x4] sm:$0xf]
  %v23 = vld [vmem:[%s1 + $0x8] sm:$0xf]
  %v24 = vld [vmem:[%s1 + $0xc] sm:$0xf]
  %v25 = vld [vmem:[%s2] sm:$0x1]
  %v27 = vlaneseq
  %v28 = vshrl.u32 %v27, 7
  %v29 = vsub.s32 0, %v28
  %v30 = vrot.slane %v25, %v29
  %v36 = vunpack.c.l.b16 %v21
  %v37 = vunpack.c.l.b16 %v22
  %v38 = vunpack.c.l.b16 %v23
  %v39 = vunpack.c.l.b16 %v24
  %v40 = vpack.c.b16 %v37, %v36
  %v41 = vpack.c.b16 %v39, %v38
  %vm44 = vcmask 261120
  %v46 = vsel %vm44, %v20, 0
  %48 = vmatprep.subr.bf16.mxu0 0
  %49 = vmatpush1.bf16.msra.mxu0 0
  %50 = vmatprep.subr.bf16.mxu0 0
  %51 = vmatpush1.bf16.msra.mxu0 0
  %52 = vmatprep.subr.bf16.mxu0 0
  %53 = vmatpush1.bf16.msra.mxu0 0
  %54 = vmatprep.subr.bf16.mxu0 0
  %55 = vmatpush1.bf16.msra.mxu0 0
  %56 = vmatprep.subr.bf16.mxu0 0
  %57 = vmatpush1.bf16.msra.mxu0 0
  %58 = vmatprep.subr.bf16.mxu0 0
  %59 = vmatpush1.bf16.msra.mxu0 0
  %60 = vmatprep.subr.bf16.mxu0 0
  %61 = vmatpush1.bf16.msra.mxu0 %v41
  %62 = vmatprep.subr.bf16.mxu0 0
  %63 = vmatpush1.bf16.msra.mxu0 %v40
  %64 = vmatprep.subr.bf16.mxu0 0
  %65 = vmatpush2.bf16.msra.mxu0 0
  %66 = vmatprep.subr.bf16.mxu0 0
  %67 = vmatpush2.bf16.msra.mxu0 0
  %68 = vmatprep.subr.bf16.mxu0 0
  %69 = vmatpush2.bf16.msra.mxu0 0
  %70 = vmatprep.subr.bf16.mxu0 0
  %71 = vmatpush2.bf16.msra.mxu0 0
  %72 = vmatprep.subr.bf16.mxu0 0
  %73 = vmatpush2.bf16.msra.mxu0 0
  %74 = vmatprep.subr.bf16.mxu0 0
  %75 = vmatpush2.bf16.msra.mxu0 0
  %76 = vmatprep.subr.bf16.mxu0 0
  %77 = vmatpush2.bf16.msra.mxu0 0
  %78 = vmatprep.subr.bf16.mxu0 0
  %79 = vmatpush2.bf16.msra.mxu0 0
  %80 = vmatprep.mubr.bf16.mxu0 0
  %81 = vmatmul.mubr.bf16.gmra.mxu0 %v46
  %v82 = vpop.f32.mrf.mxu0
  %v83 = vadd.f32 %v30, %v82
  %v84 = vpop.f32.mrf.mxu0
  %v85 = vpop.f32.mrf.mxu0
  %v86 = vadd.f32 %v30, %v85
  %v87 = vpop.f32.mrf.mxu0
  %88 = vdwg.mxu0
  %v89 = vld [vmem:[%s3] sm:$0xff]
  %v90 = vld [vmem:[%s3 + $0x8] sm:$0xff]
  %v91 = vadd.f32 %v83, %v89
  %v92 = vadd.f32 %v86, %v90
  %93 = vst.msk [vmem:[%s4] sm:$0xff] %vm44, %v91
  %94 = vst.msk [vmem:[%s4 + $0x8] sm:$0xff] %vm44, %v92
  // Predicated region
  $region18: #{transformer_forward.30} parent=0 // pred_check
    _
  $region19: #{transformer_forward.30} parent=0 // pred_check_branch
    %96 = sbr.rel (0) target = $region21
  $region20: #{transformer_forward.30} parent=0 // pred_region
    _
  $region21: #{transformer_forward.30} parent=0 // pred_fallthru
    _
  // Predicated region
  $region22: #{transformer_forward.30} parent=0 // pred_check
    _
  $region23: #{transformer_forward.30} parent=0 // pred_check_branch
    %98 = sbr.rel (0) target = $region25
  $region24: #{transformer_forward.30} parent=0 // pred_region
    _
  $region25: #{transformer_forward.30} parent=0 // pred_fallthru
    _

// kernel: transformer_forward.27
$region0: #{transformer_forward.27}
  #allocation0 [shape = 'u32[]', space=smem, size = 0x4, offset = 0x4, fixed_abs, tag = 'smem constant byte address 0x4 - core index']
  #allocation1 [shape = 'u32[144,128]{1,0:T(1,128)}', space=vmem, size = 0x12000, scoped, tag = 'internal scratch']
  %s0 = inlined_call_operand.vmem [shape: f32[2,8,256], index: 0, kind: input, shape index: {}]
  %s1 = inlined_call_operand.vmem [shape: bf16[256,32], index: 1, kind: input, shape index: {}]
  %s2 = inlined_call_operand.vmem [shape: f32[1,32], index: 2, kind: input, shape index: {}]
  %s3 = inlined_call_operand.vmem [shape: f32[8,32], index: 3, kind: input, shape index: {}]
  %s4 = inlined_call_operand.vmem [shape: f32[2,8,32], index: 4, kind: output, shape index: {}]
  %s5 = sld [smem:[#allocation0]]
  $region49: #{transformer_forward.27} parent=0
    _
  %s7 = ssub.s32 1, %s5
  %s8 = scalar_select 0, %s7, %s5
  loop: start=0, step=1, limit=4
  $region2: #{transformer_forward.27} parent=0 // loop_pre_header
    _
  $region3: #{transformer_forward.27} parent=0 // loop_header
    %s10 = sphi 0, %s14
    %p11 = scmp.ge.s32.totalorder %s10, 4
    %s20 = sphi 0, %s22
    %s23 = sphi 0, %s20
    %s24 = sphi 0, %s23
    %s40 = sphi 0, %s24
    %s44 = sphi 0, %s44
    %s46 = sphi 0, %s44
    %s47 = sphi 0, %s46
    %s61 = sphi 0, %s47
    %s65 = sphi 0, %s65
    %s67 = sphi 0, %s65
    %s68 = sphi 0, %s67
    %s82 = sphi 0, %s68
    %s86 = sphi 0, %s86
    %s88 = sphi 0, %s86
    %s89 = sphi 0, %s88
    %s103 = sphi 0, %s89
    %s109 = sphi 0, %s111
    %s112 = sphi 0, %s109
    %s113 = sphi 0, %s112
    %s129 = sphi 0, %s113
  $region4: #{transformer_forward.27} parent=0 // loop_header_branch
    %13 = sbr.rel (%p11) target = $region8
  $region5: #{transformer_forward.27} parent=0 // loop_body
    %s15 = ssub.s32 %s10, 1
    %s16 = ssub.s32 %s10, 2
    %s17 = sadd.s32 %s10, 1
    %s18 = ssub.s32 %s10, %s17
    %p19 = scmp.eq.s32.totalorder %s18, 0
    %s21 = sadd.s32 %s20, 1
    %s22 = scalar_select %p19, %s20, %s21
    %p25 = pneg %p19
    %p26 = scmp.eq.s32.totalorder %s10, 1
    %p27 = por %p25, %p26
    %p28 = scmp.ne.s32.totalorder %s20, %s23
    %p29 = scmp.eq.s32.totalorder %s10, 0
    %p30 = por %p28, %p29
    %p31 = scmp.ne.s32.totalorder %s20, %s23
    %p32 = scmp.eq.s32.totalorder %s15, 1
    %p33 = por %p31, %p32
    %p34 = scmp.ne.s32.totalorder %s23, %s24
    %p35 = scmp.eq.s32.totalorder %s15, 0
    %p36 = por %p34, %p35
    %p37 = scmp.ne.s32.totalorder %s23, %s24
    %p38 = scmp.eq.s32.totalorder %s16, 1
    %p39 = por %p37, %p38
    %p41 = scmp.ne.s32.totalorder %s24, %s40
    %p42 = scmp.eq.s32.totalorder %s16, 0
    %p43 = por %p41, %p42
    %s45 = sadd.s32 %s44, 1
    %p48 = scmp.eq.s32.totalorder %s10, 1
    %p49 = scmp.ne.s32.totalorder %s44, %s46
    %p50 = scmp.eq.s32.totalorder %s10, 0
    %p51 = por %p49, %p50
    %p52 = scmp.ne.s32.totalorder %s44, %s46
    %p53 = scmp.eq.s32.totalorder %s15, 1
    %p54 = por %p52, %p53
    %p55 = scmp.ne.s32.totalorder %s46, %s47
    %p56 = scmp.eq.s32.totalorder %s15, 0
    %p57 = por %p55, %p56
    %p58 = scmp.ne.s32.totalorder %s46, %s47
    %p59 = scmp.eq.s32.totalorder %s16, 1
    %p60 = por %p58, %p59
    %p62 = scmp.ne.s32.totalorder %s47, %s61
    %p63 = scmp.eq.s32.totalorder %s16, 0
    %p64 = por %p62, %p63
    %s66 = sadd.s32 %s65, 1
    %p69 = scmp.eq.s32.totalorder %s10, 1
    %p70 = scmp.ne.s32.totalorder %s65, %s67
    %p71 = scmp.eq.s32.totalorder %s10, 0
    %p72 = por %p70, %p71
    %p73 = scmp.ne.s32.totalorder %s65, %s67
    %p74 = scmp.eq.s32.totalorder %s15, 1
    %p75 = por %p73, %p74
    %p76 = scmp.ne.s32.totalorder %s67, %s68
    %p77 = scmp.eq.s32.totalorder %s15, 0
    %p78 = por %p76, %p77
    %p79 = scmp.ne.s32.totalorder %s67, %s68
    %p80 = scmp.eq.s32.totalorder %s16, 1
    %p81 = por %p79, %p80
    %p83 = scmp.ne.s32.totalorder %s68, %s82
    %p84 = scmp.eq.s32.totalorder %s16, 0
    %p85 = por %p83, %p84
    %s87 = sadd.s32 %s86, 1
    %p90 = scmp.eq.s32.totalorder %s10, 1
    %p91 = scmp.ne.s32.totalorder %s86, %s88
    %p92 = scmp.eq.s32.totalorder %s10, 0
    %p93 = por %p91, %p92
    %p94 = scmp.ne.s32.totalorder %s86, %s88
    %p95 = scmp.eq.s32.totalorder %s15, 1
    %p96 = por %p94, %p95
    %p97 = scmp.ne.s32.totalorder %s88, %s89
    %p98 = scmp.eq.s32.totalorder %s15, 0
    %p99 = por %p97, %p98
    %p100 = scmp.ne.s32.totalorder %s88, %s89
    %p101 = scmp.eq.s32.totalorder %s16, 1
    %p102 = por %p100, %p101
    %p104 = scmp.ne.s32.totalorder %s89, %s103
    %p105 = scmp.eq.s32.totalorder %s16, 0
    %p106 = por %p104, %p105
    %s107 = ssub.s32 %s10, %s17
    %p108 = scmp.eq.s32.totalorder %s107, 0
    %s110 = sadd.s32 %s109, 1
    %s111 = scalar_select %p108, %s109, %s110
    %p114 = pneg %p108
    %p115 = scmp.eq.s32.totalorder %s10, 1
    %p116 = por %p114, %p115
    %p117 = scmp.ne.s32.totalorder %s109, %s112
    %p118 = scmp.eq.s32.totalorder %s10, 0
    %p119 = por %p117, %p118
    %p120 = scmp.ne.s32.totalorder %s109, %s112
    %p121 = scmp.eq.s32.totalorder %s15, 1
    %p122 = por %p120, %p121
    %p123 = scmp.ne.s32.totalorder %s112, %s113
    %p124 = scmp.eq.s32.totalorder %s15, 0
    %p125 = por %p123, %p124
    %p126 = scmp.ne.s32.totalorder %s112, %s113
    %p127 = scmp.eq.s32.totalorder %s16, 1
    %p128 = por %p126, %p127
    %p130 = scmp.ne.s32.totalorder %s113, %s129
    %p131 = scmp.eq.s32.totalorder %s16, 0
    %p132 = por %p130, %p131
    %p133 = scmp.le.s32.totalorder 1, %s10
    %p134 = scmp.lt.s32.totalorder %s10, 3
    %p135 = pnand %p133, %p134
    %p136 = pneg %p135
    // Predicated region
    $region9: #{transformer_forward.27} parent=5 // pred_check
      _
    $region10: #{transformer_forward.27} parent=5 // pred_check_branch
      %138 = sbr.rel (%p135) target = $region12
    $region11: #{transformer_forward.27} parent=5 // pred_region
      %s139 = ssub.s32 %s10, 1
      // Predicated region
      $region13: #{transformer_forward.27} parent=11 // pred_check
        %p140 = pneg %p57
      $region14: #{transformer_forward.27} parent=11 // pred_check_branch
        %142 = sbr.rel (%p140) target = $region16
      $region15: #{transformer_forward.27} parent=11 // pred_region
        _
      $region16: #{transformer_forward.27} parent=11 // pred_fallthru
        _
      // Predicated region
      $region17: #{transformer_forward.27} parent=11 // pred_check
        %p143 = pneg %p78
      $region18: #{transformer_forward.27} parent=11 // pred_check_branch
        %145 = sbr.rel (%p143) target = $region20
      $region19: #{transformer_forward.27} parent=11 // pred_region
        _
      $region20: #{transformer_forward.27} parent=11 // pred_fallthru
        _
      // Predicated region
      $region21: #{transformer_forward.27} parent=11 // pred_check
        %p146 = pneg %p99
      $region22: #{transformer_forward.27} parent=11 // pred_check_branch
        %148 = sbr.rel (%p146) target = $region24
      $region23: #{transformer_forward.27} parent=11 // pred_region
        _
      $region24: #{transformer_forward.27} parent=11 // pred_fallthru
        _
    $region12: #{transformer_forward.27} parent=5 // pred_fallthru
      _
    %p149 = scmp.lt.s32.totalorder %s10, 2
    // Predicated region
    $region25: #{transformer_forward.27} parent=5 // pred_check
      %p150 = pneg %p149
    $region26: #{transformer_forward.27} parent=5 // pred_check_branch
      %152 = sbr.rel (%p150) target = $region28
    $region27: #{transformer_forward.27} parent=5 // pred_region
      // Predicated region
      $region29: #{transformer_forward.27} parent=27 // pred_check
        %p153 = pneg %p30
      $region30: #{transformer_forward.27} parent=27 // pred_check_branch
        %155 = sbr.rel (%p153) target = $region32
      $region31: #{transformer_forward.27} parent=27 // pred_region
        %p156 = scmp.lt.s32.totalorder %s10, 1
        %s157 = scalar_select %p156, %s10, 1
        %s158 = smul.addr %s157, 2
        %s159 = smul.addr %s158, 8
        %s160 = scalar_lea.vmem %s0, %s159
      $region32: #{transformer_forward.27} parent=27 // pred_fallthru
        _
    $region28: #{transformer_forward.27} parent=5 // pred_fallthru
      _
    %p161 = scmp.le.s32.totalorder 1, %s10
    %p162 = scmp.lt.s32.totalorder %s10, 3
    %p163 = pnand %p161, %p162
    %p164 = pneg %p163
    // Predicated region
    $region33: #{transformer_forward.27} parent=5 // pred_check
      _
    $region34: #{transformer_forward.27} parent=5 // pred_check_branch
      %166 = sbr.rel (%p163) target = $region36
    $region35: #{transformer_forward.27} parent=5 // pred_region
      %s167 = ssub.s32 %s10, 1
      %p168 = scmp.lt.s32.totalorder %s15, 1
      %s169 = scalar_select %p168, %s15, 1
      %s170 = smul.addr %s169, 2
      %s171 = smul.addr %s170, 8
      %s172 = scalar_lea.vmem %s0, %s171
      %p173 = pneg %p36
      %p174 = pneg %p33
      %p175 = pneg %p57
      %p176 = pneg %p54
      %p177 = pneg %p78
      %p178 = pneg %p75
      %p179 = pneg %p99
      %p180 = pneg %p96
      %p181 = pneg %p125
      %p182 = pneg %p122
      %p183 = scmp.lt.s32.totalorder %s15, 1
      %s184 = scalar_select %p183, %s15, 1
      %s185 = smul.addr %s184, 8
      %s186 = scalar_lea.vmem %s4, %s185
      %p187 = scmp.lt.s32.totalorder %s15, 1
      %s188 = scalar_select %p187, %s15, 1
      %s189 = smul.addr %s188, 2
      %s190 = smul.addr %s189, 8
      %s191 = scalar_lea.vmem %s0, %s190
      %p192 = scmp.lt.s32.totalorder %s15, 1
      %s193 = scalar_select %p192, %s15, 1
      %s194 = smul.addr %s193, 8
      %s195 = scalar_lea.vmem %s4, %s194
      %v197 = vld [vmem:[%s191] sm:$0xff]
      %v198 = vld [vmem:[%s191 + $0x8] sm:$0xff]
      %v199 = vpack.c.bf16 %v197, %v197
      %v200 = vpack.c.bf16 %v198, %v198
      %v201 = vld [vmem:[%s1] sm:$0xf]
      %v202 = vld [vmem:[%s1 + $0x4] sm:$0xf]
      %v203 = vld [vmem:[%s1 + $0x8] sm:$0xf]
      %v204 = vld [vmem:[%s1 + $0xc] sm:$0xf]
      %v205 = vld [vmem:[%s1 + $0x10] sm:$0xf]
      %v206 = vld [vmem:[%s1 + $0x14] sm:$0xf]
      %v207 = vld [vmem:[%s1 + $0x18] sm:$0xf]
      %v208 = vld [vmem:[%s1 + $0x1c] sm:$0xf]
      %v209 = vld [vmem:[%s1 + $0x20] sm:$0xf]
      %v210 = vld [vmem:[%s1 + $0x24] sm:$0xf]
      %v211 = vld [vmem:[%s1 + $0x28] sm:$0xf]
      %v212 = vld [vmem:[%s1 + $0x2c] sm:$0xf]
      %v213 = vld [vmem:[%s1 + $0x30] sm:$0xf]
      %v214 = vld [vmem:[%s1 + $0x34] sm:$0xf]
      %v215 = vld [vmem:[%s1 + $0x38] sm:$0xf]
      %v216 = vld [vmem:[%s1 + $0x3c] sm:$0xf]
      %v217 = vld [vmem:[%s1 + $0x40] sm:$0xf]
      %v218 = vld [vmem:[%s1 + $0x44] sm:$0xf]
      %v219 = vld [vmem:[%s1 + $0x48] sm:$0xf]
      %v220 = vld [vmem:[%s1 + $0x4c] sm:$0xf]
      %v221 = vld [vmem:[%s1 + $0x50] sm:$0xf]
      %v222 = vld [vmem:[%s1 + $0x54] sm:$0xf]
      %v223 = vld [vmem:[%s1 + $0x58] sm:$0xf]
      %v224 = vld [vmem:[%s1 + $0x5c] sm:$0xf]
      %v225 = vld [vmem:[%s1 + $0x60] sm:$0xf]
      %v226 = vld [vmem:[%s1 + $0x64] sm:$0xf]
      %v227 = vld [vmem:[%s1 + $0x68] sm:$0xf]
      %v228 = vld [vmem:[%s1 + $0x6c] sm:$0xf]
      %v229 = vld [vmem:[%s1 + $0x70] sm:$0xf]
      %v230 = vld [vmem:[%s1 + $0x74] sm:$0xf]
      %v231 = vld [vmem:[%s1 + $0x78] sm:$0xf]
      %v232 = vld [vmem:[%s1 + $0x7c] sm:$0xf]
      %v233 = vld [vmem:[%s2] sm:$0x1]
      %v235 = vlaneseq
      %v236 = vshrl.u32 %v235, 7
      %v237 = vsub.s32 0, %v236
      %v238 = vrot.slane %v233, %v237
      %v272 = vunpack.c.l.b16 %v201
      %v273 = vunpack.c.l.b16 %v202
      %v274 = vunpack.c.l.b16 %v203
      %v275 = vunpack.c.l.b16 %v204
      %v276 = vunpack.c.l.b16 %v205
      %v277 = vunpack.c.l.b16 %v206
      %v278 = vunpack.c.l.b16 %v207
      %v279 = vunpack.c.l.b16 %v208
      %v280 = vunpack.c.l.b16 %v209
      %v281 = vunpack.c.l.b16 %v210
      %v282 = vunpack.c.l.b16 %v211
      %v283 = vunpack.c.l.b16 %v212
      %v284 = vunpack.c.l.b16 %v213
      %v285 = vunpack.c.l.b16 %v214
      %v286 = vunpack.c.l.b16 %v215
      %v287 = vunpack.c.l.b16 %v216
      %v288 = vunpack.c.l.b16 %v217
      %v289 = vunpack.c.l.b16 %v218
      %v290 = vunpack.c.l.b16 %v219
      %v291 = vunpack.c.l.b16 %v220
      %v292 = vunpack.c.l.b16 %v221
      %v293 = vunpack.c.l.b16 %v222
      %v294 = vunpack.c.l.b16 %v223
      %v295 = vunpack.c.l.b16 %v224
      %v296 = vunpack.c.l.b16 %v225
      %v297 = vunpack.c.l.b16 %v226
      %v298 = vunpack.c.l.b16 %v227
      %v299 = vunpack.c.l.b16 %v228
      %v300 = vunpack.c.l.b16 %v229
      %v301 = vunpack.c.l.b16 %v230
      %v302 = vunpack.c.l.b16 %v231
      %v303 = vunpack.c.l.b16 %v232
      %v304 = vpack.c.b16 %v273, %v272
      %v305 = vpack.c.b16 %v275, %v274
      %v306 = vpack.c.b16 %v277, %v276
      %v307 = vpack.c.b16 %v279, %v278
      %v308 = vpack.c.b16 %v281, %v280
      %v309 = vpack.c.b16 %v283, %v282
      %v310 = vpack.c.b16 %v285, %v284
      %v311 = vpack.c.b16 %v287, %v286
      %v312 = vpack.c.b16 %v289, %v288
      %v313 = vpack.c.b16 %v291, %v290
      %v314 = vpack.c.b16 %v293, %v292
      %v315 = vpack.c.b16 %v295, %v294
      %v316 = vpack.c.b16 %v297, %v296
      %v317 = vpack.c.b16 %v299, %v298
      %v318 = vpack.c.b16 %v301, %v300
      %v319 = vpack.c.b16 %v303, %v302
      %336 = vmatprep.subr.bf16.mxu0 0
      %337 = vmatpush1.bf16.msra.mxu0 %v311
      %338 = vmatprep.subr.bf16.mxu0 0
      %339 = vmatpush1.bf16.msra.mxu0 %v310
      %340 = vmatprep.subr.bf16.mxu0 0
      %341 = vmatpush1.bf16.msra.mxu0 %v309
      %342 = vmatprep.subr.bf16.mxu0 0
      %343 = vmatpush1.bf16.msra.mxu0 %v308
      %344 = vmatprep.subr.bf16.mxu0 0
      %345 = vmatpush1.bf16.msra.mxu0 %v307
      %346 = vmatprep.subr.bf16.mxu0 0
      %347 = vmatpush1.bf16.msra.mxu0 %v306
      %348 = vmatprep.subr.bf16.mxu0 0
      %349 = vmatpush1.bf16.msra.mxu0 %v305
      %350 = vmatprep.subr.bf16.mxu0 0
      %351 = vmatpush1.bf16.msra.mxu0 %v304
      %352 = vmatprep.subr.bf16.mxu0 0
      %353 = vmatpush2.bf16.msra.mxu0 %v319
      %354 = vmatprep.subr.bf16.mxu0 0
      %355 = vmatpush2.bf16.msra.mxu0 %v318
      %356 = vmatprep.subr.bf16.mxu0 0
      %357 = vmatpush2.bf16.msra.mxu0 %v317
      %358 = vmatprep.subr.bf16.mxu0 0
      %359 = vmatpush2.bf16.msra.mxu0 %v316
      %360 = vmatprep.subr.bf16.mxu0 0
      %361 = vmatpush2.bf16.msra.mxu0 %v315
      %362 = vmatprep.subr.bf16.mxu0 0
      %363 = vmatpush2.bf16.msra.mxu0 %v314
      %364 = vmatprep.subr.bf16.mxu0 0
      %365 = vmatpush2.bf16.msra.mxu0 %v313
      %366 = vmatprep.subr.bf16.mxu0 0
      %367 = vmatpush2.bf16.msra.mxu0 %v312
      %368 = vmatprep.mubr.bf16.mxu0 %v200
      %369 = vmatmul.mubr.bf16.gmra.mxu0 %v199
      %v370 = vpop.f32.mrf.mxu0
      %v371 = vadd.f32 %v238, %v370
      %v372 = vpop.f32.mrf.mxu0
      %v373 = vpop.f32.mrf.mxu0
      %v374 = vpop.f32.mrf.mxu0
      %375 = vdwg.mxu0
      %v376 = vmax.f32 %v371, 0.0
      %v377 = vld [vmem:[%s3] sm:$0xff]
      %v378 = vadd.f32 %v376, %v377
      %vm379 = vcmask 261120
      %380 = vst.msk [vmem:[%s195] sm:$0xff] %vm379, %v378
      %p381 = scmp.lt.s32.totalorder %s15, 1
      %s382 = scalar_select %p381, %s15, 1
      %s383 = smul.addr %s382, 8
      %s384 = scalar_lea.vmem %s4, %s383
      // Predicated region
      $region37: #{transformer_forward.27} parent=35 // pred_check
        %p385 = pneg %p122
      $region38: #{transformer_forward.27} parent=35 // pred_check_branch
        %387 = sbr.rel (%p385) target = $region40
      $region39: #{transformer_forward.27} parent=35 // pred_region
        _
      $region40: #{transformer_forward.27} parent=35 // pred_fallthru
        _
    $region36: #{transformer_forward.27} parent=5 // pred_fallthru
      _
    %p388 = scmp.le.s32.totalorder 2, %s10
    // Predicated region
    $region41: #{transformer_forward.27} parent=5 // pred_check
      %p389 = pneg %p388
    $region42: #{transformer_forward.27} parent=5 // pred_check_branch
      %391 = sbr.rel (%p389) target = $region44
    $region43: #{transformer_forward.27} parent=5 // pred_region
      %s392 = ssub.s32 %s10, 2
      // Predicated region
      $region45: #{transformer_forward.27} parent=43 // pred_check
        %p393 = pneg %p128
      $region46: #{transformer_forward.27} parent=43 // pred_check_branch
        %395 = sbr.rel (%p393) target = $region48
      $region47: #{transformer_forward.27} parent=43 // pred_region
        %p396 = scmp.lt.s32.totalorder %s16, 1
        %s397 = scalar_select %p396, %s16, 1
        %s398 = smul.addr %s397, 8
        %s399 = scalar_lea.vmem %s4, %s398
      $region48: #{transformer_forward.27} parent=43 // pred_fallthru
        _
    $region44: #{transformer_forward.27} parent=5 // pred_fallthru
      _
  $region6: #{transformer_forward.27} parent=0 // loop_footer
    %s14 = sadd.s32 1, %s10
  $region7: #{transformer_forward.27} parent=0 // loop_footer_branch
    %9 = sbr.rel target = $region3
  $region8: #{transformer_forward.27} parent=0 // loop_exit
    _

// kernel: transformer_forward.29
$region0: #{transformer_forward.29}
  #allocation0 [shape = 'u32[]', space=smem, size = 0x4, offset = 0x4, fixed_abs, tag = 'smem constant byte address 0x4 - core index']
  #allocation1 [shape = 'u32[144,128]{1,0:T(1,128)}', space=vmem, size = 0x12000, scoped, tag = 'internal scratch']
  %s0 = inlined_call_operand.vmem [shape: f32[2,8,32], index: 0, kind: input, shape index: {}]
  %s1 = inlined_call_operand.vmem [shape: f32[2,8,64], index: 1, kind: input, shape index: {}]
  %s2 = inlined_call_operand.vmem [shape: f32[2,8,32], index: 2, kind: output, shape index: {}]
  %s3 = sld [smem:[#allocation0]]
  $region41: #{transformer_forward.29} parent=0
    _
  %s5 = ssub.s32 1, %s3
  %s6 = scalar_select 0, %s5, %s3
  loop: start=0, step=1, limit=4
  $region2: #{transformer_forward.29} parent=0 // loop_pre_header
    _
  $region3: #{transformer_forward.29} parent=0 // loop_header
    %s8 = sphi 0, %s12
    %p9 = scmp.ge.s32.totalorder %s8, 4
    %s18 = sphi 0, %s20
    %s21 = sphi 0, %s18
    %s22 = sphi 0, %s21
    %s38 = sphi 0, %s22
    %s44 = sphi 0, %s46
    %s47 = sphi 0, %s44
    %s48 = sphi 0, %s47
    %s64 = sphi 0, %s48
    %s70 = sphi 0, %s72
    %s73 = sphi 0, %s70
    %s74 = sphi 0, %s73
    %s90 = sphi 0, %s74
  $region4: #{transformer_forward.29} parent=0 // loop_header_branch
    %11 = sbr.rel (%p9) target = $region8
  $region5: #{transformer_forward.29} parent=0 // loop_body
    %s13 = ssub.s32 %s8, 1
    %s14 = ssub.s32 %s8, 2
    %s15 = sadd.s32 %s8, 1
    %s16 = ssub.s32 %s8, %s15
    %p17 = scmp.eq.s32.totalorder %s16, 0
    %s19 = sadd.s32 %s18, 1
    %s20 = scalar_select %p17, %s18, %s19
    %p23 = pneg %p17
    %p24 = scmp.eq.s32.totalorder %s8, 1
    %p25 = por %p23, %p24
    %p26 = scmp.ne.s32.totalorder %s18, %s21
    %p27 = scmp.eq.s32.totalorder %s8, 0
    %p28 = por %p26, %p27
    %p29 = scmp.ne.s32.totalorder %s18, %s21
    %p30 = scmp.eq.s32.totalorder %s13, 1
    %p31 = por %p29, %p30
    %p32 = scmp.ne.s32.totalorder %s21, %s22
    %p33 = scmp.eq.s32.totalorder %s13, 0
    %p34 = por %p32, %p33
    %p35 = scmp.ne.s32.totalorder %s21, %s22
    %p36 = scmp.eq.s32.totalorder %s14, 1
    %p37 = por %p35, %p36
    %p39 = scmp.ne.s32.totalorder %s22, %s38
    %p40 = scmp.eq.s32.totalorder %s14, 0
    %p41 = por %p39, %p40
    %s42 = ssub.s32 %s8, %s15
    %p43 = scmp.eq.s32.totalorder %s42, 0
    %s45 = sadd.s32 %s44, 1
    %s46 = scalar_select %p43, %s44, %s45
    %p49 = pneg %p43
    %p50 = scmp.eq.s32.totalorder %s8, 1
    %p51 = por %p49, %p50
    %p52 = scmp.ne.s32.totalorder %s44, %s47
    %p53 = scmp.eq.s32.totalorder %s8, 0
    %p54 = por %p52, %p53
    %p55 = scmp.ne.s32.totalorder %s44, %s47
    %p56 = scmp.eq.s32.totalorder %s13, 1
    %p57 = por %p55, %p56
    %p58 = scmp.ne.s32.totalorder %s47, %s48
    %p59 = scmp.eq.s32.totalorder %s13, 0
    %p60 = por %p58, %p59
    %p61 = scmp.ne.s32.totalorder %s47, %s48
    %p62 = scmp.eq.s32.totalorder %s14, 1
    %p63 = por %p61, %p62
    %p65 = scmp.ne.s32.totalorder %s48, %s64
    %p66 = scmp.eq.s32.totalorder %s14, 0
    %p67 = por %p65, %p66
    %s68 = ssub.s32 %s8, %s15
    %p69 = scmp.eq.s32.totalorder %s68, 0
    %s71 = sadd.s32 %s70, 1
    %s72 = scalar_select %p69, %s70, %s71
    %p75 = pneg %p69
    %p76 = scmp.eq.s32.totalorder %s8, 1
    %p77 = por %p75, %p76
    %p78 = scmp.ne.s32.totalorder %s70, %s73
    %p79 = scmp.eq.s32.totalorder %s8, 0
    %p80 = por %p78, %p79
    %p81 = scmp.ne.s32.totalorder %s70, %s73
    %p82 = scmp.eq.s32.totalorder %s13, 1
    %p83 = por %p81, %p82
    %p84 = scmp.ne.s32.totalorder %s73, %s74
    %p85 = scmp.eq.s32.totalorder %s13, 0
    %p86 = por %p84, %p85
    %p87 = scmp.ne.s32.totalorder %s73, %s74
    %p88 = scmp.eq.s32.totalorder %s14, 1
    %p89 = por %p87, %p88
    %p91 = scmp.ne.s32.totalorder %s74, %s90
    %p92 = scmp.eq.s32.totalorder %s14, 0
    %p93 = por %p91, %p92
    %p94 = scmp.le.s32.totalorder 1, %s8
    %p95 = scmp.lt.s32.totalorder %s8, 3
    %p96 = pnand %p94, %p95
    %p97 = pneg %p96
    // Predicated region
    $region9: #{transformer_forward.29} parent=5 // pred_check
      _
    $region10: #{transformer_forward.29} parent=5 // pred_check_branch
      %99 = sbr.rel (%p96) target = $region12
    $region11: #{transformer_forward.29} parent=5 // pred_region
      %s100 = ssub.s32 %s8, 1
    $region12: #{transformer_forward.29} parent=5 // pred_fallthru
      _
    %p101 = scmp.lt.s32.totalorder %s8, 2
    // Predicated region
    $region13: #{transformer_forward.29} parent=5 // pred_check
      %p102 = pneg %p101
    $region14: #{transformer_forward.29} parent=5 // pred_check_branch
      %104 = sbr.rel (%p102) target = $region16
    $region15: #{transformer_forward.29} parent=5 // pred_region
      // Predicated region
      $region17: #{transformer_forward.29} parent=15 // pred_check
        %p105 = pneg %p28
      $region18: #{transformer_forward.29} parent=15 // pred_check_branch
        %107 = sbr.rel (%p105) target = $region20
      $region19: #{transformer_forward.29} parent=15 // pred_region
        %p108 = scmp.lt.s32.totalorder %s8, 1
        %s109 = scalar_select %p108, %s8, 1
        %s110 = smul.addr %s109, 8
        %s111 = scalar_lea.vmem %s0, %s110
      $region20: #{transformer_forward.29} parent=15 // pred_fallthru
        _
      // Predicated region
      $region21: #{transformer_forward.29} parent=15 // pred_check
        %p112 = pneg %p54
      $region22: #{transformer_forward.29} parent=15 // pred_check_branch
        %114 = sbr.rel (%p112) target = $region24
      $region23: #{transformer_forward.29} parent=15 // pred_region
        %p115 = scmp.lt.s32.totalorder %s8, 1
        %s116 = scalar_select %p115, %s8, 1
        %s117 = smul.addr %s116, 8
        %s118 = scalar_lea.vmem %s1, %s117
      $region24: #{transformer_forward.29} parent=15 // pred_fallthru
        _
    $region16: #{transformer_forward.29} parent=5 // pred_fallthru
      _
    %p119 = scmp.le.s32.totalorder 1, %s8
    %p120 = scmp.lt.s32.totalorder %s8, 3
    %p121 = pnand %p119, %p120
    %p122 = pneg %p121
    // Predicated region
    $region25: #{transformer_forward.29} parent=5 // pred_check
      _
    $region26: #{transformer_forward.29} parent=5 // pred_check_branch
      %124 = sbr.rel (%p121) target = $region28
    $region27: #{transformer_forward.29} parent=5 // pred_region
      %s125 = ssub.s32 %s8, 1
      %p126 = scmp.lt.s32.totalorder %s13, 1
      %s127 = scalar_select %p126, %s13, 1
      %s128 = smul.addr %s127, 8
      %s129 = scalar_lea.vmem %s0, %s128
      %p130 = pneg %p34
      %p131 = pneg %p31
      %p132 = scmp.lt.s32.totalorder %s13, 1
      %s133 = scalar_select %p132, %s13, 1
      %s134 = smul.addr %s133, 8
      %s135 = scalar_lea.vmem %s1, %s134
      %p136 = pneg %p60
      %p137 = pneg %p57
      %p138 = pneg %p86
      %p139 = pneg %p83
      %p140 = scmp.lt.s32.totalorder %s13, 1
      %s141 = scalar_select %p140, %s13, 1
      %s142 = smul.addr %s141, 8
      %s143 = scalar_lea.vmem %s2, %s142
      %p144 = scmp.lt.s32.totalorder %s13, 1
      %s145 = scalar_select %p144, %s13, 1
      %s146 = smul.addr %s145, 8
      %s147 = scalar_lea.vmem %s0, %s146
      %p148 = scmp.lt.s32.totalorder %s13, 1
      %s149 = scalar_select %p148, %s13, 1
      %s150 = smul.addr %s149, 8
      %s151 = scalar_lea.vmem %s1, %s150
      %p152 = scmp.lt.s32.totalorder %s13, 1
      %s153 = scalar_select %p152, %s13, 1
      %s154 = smul.addr %s153, 8
      %s155 = scalar_lea.vmem %s2, %s154
      %v157 = vld [vmem:[%s147] sm:$0xff]
      %v158 = vld [vmem:[%s151] sm:$0xff]
      %v159 = vmul.f32 %v157, 0.35355338
      %v160 = vpack.c.bf16 %v159, %v159
      %v161 = vpack.c.bf16 %v158, %v158
      %vm162 = vcmask 64512
      %v164 = vsel %vm162, %v160, 0
      %v167 = vsel %vm162, %v161, 0
      %169 = vmatprep.subr.bf16.mxu0 0
      %170 = vmatpush1.bf16.xpose.msra.mxu0 0
      %171 = vmatprep.subr.bf16.mxu0 0
      %172 = vmatpush1.bf16.xpose.msra.mxu0 0
      %173 = vmatprep.subr.bf16.mxu0 0
      %174 = vmatpush1.bf16.xpose.msra.mxu0 0
      %175 = vmatprep.subr.bf16.mxu0 0
      %176 = vmatpush1.bf16.xpose.msra.mxu0 0
      %177 = vmatprep.subr.bf16.mxu0 0
      %178 = vmatpush1.bf16.xpose.msra.mxu0 0
      %179 = vmatprep.subr.bf16.mxu0 0
      %180 = vmatpush1.bf16.xpose.msra.mxu0 0
      %181 = vmatprep.subr.bf16.mxu0 0
      %182 = vmatpush1.bf16.xpose.msra.mxu0 0
      %183 = vmatprep.subr.bf16.mxu0 0
      %184 = vmatpush1.bf16.xpose.msra.mxu0 %v167
      %185 = vmatprep.subr.bf16.mxu0 0
      %186 = vmatpush2.bf16.xpose.msra.mxu0 0
      %187 = vmatprep.subr.bf16.mxu0 0
      %188 = vmatpush2.bf16.xpose.msra.mxu0 0
      %189 = vmatprep.subr.bf16.mxu0 0
      %190 = vmatpush2.bf16.xpose.msra.mxu0 0
      %191 = vmatprep.subr.bf16.mxu0 0
      %192 = vmatpush2.bf16.xpose.msra.mxu0 0
      %193 = vmatprep.subr.bf16.mxu0 0
      %194 = vmatpush2.bf16.xpose.msra.mxu0 0
      %195 = vmatprep.subr.bf16.mxu0 0
      %196 = vmatpush2.bf16.xpose.msra.mxu0 0
      %197 = vmatprep.subr.bf16.mxu0 0
      %198 = vmatpush2.bf16.xpose.msra.mxu0 0
      %199 = vmatprep.subr.bf16.mxu0 0
      %200 = vmatpush2.bf16.xpose.msra.mxu0 0
      %201 = vmatprep.mubr.bf16.mxu0 0
      %202 = vmatmul.mubr.bf16.gmra.mxu0 %v164
      %v203 = vpop.f32.mrf.mxu0
      %v204 = vadd.f32 0.0, %v203
      %v205 = vpop.f32.mrf.mxu0
      %v206 = vpop.f32.mrf.mxu0
      %v207 = vpop.f32.mrf.mxu0
      %208 = vdwg.mxu0
      %v209 = vsel %vm162, %v204, -inf
      %210 = vmax.xlane.f32.xlu0 %v209
      %v211 = vpop.xlane.xlu0 %210
      %v212 = vsub.f32 %v204, %v211
      %v213 = vmul.f32 %v212, 1.442695
      %v214 = vpow.pop %v213
      %v215 = vsel %vm162, %v214, 0.0
      %216 = vadd.xlane.f32.xlu0 %v215
      %v217 = vpop.xlane.xlu0 %216
      %v218 = vrcp.pop %v217
      %v219 = vpack.c.bf16 %v214, %v214
      %221 = vrot.lane.b32.xlu0 %v161, 96
      %v222 = vpop.permute.xlu0 %221
      %v224 = vsel %vm162, %v219, 0
      %vm226 = vcmask 1043456
      %v228 = vsel %vm226, %v222, 0
      %230 = vmatprep.subr.bf16.mxu0 0
      %231 = vmatpush1.bf16.msra.mxu0 0
      %232 = vmatprep.subr.bf16.mxu0 0
      %233 = vmatpush1.bf16.msra.mxu0 0
      %234 = vmatprep.subr.bf16.mxu0 0
      %235 = vmatpush1.bf16.msra.mxu0 0
      %236 = vmatprep.subr.bf16.mxu0 0
      %237 = vmatpush1.bf16.msra.mxu0 0
      %238 = vmatprep.subr.bf16.mxu0 0
      %239 = vmatpush1.bf16.msra.mxu0 0
      %240 = vmatprep.subr.bf16.mxu0 0
      %241 = vmatpush1.bf16.msra.mxu0 0
      %242 = vmatprep.subr.bf16.mxu0 0
      %243 = vmatpush1.bf16.msra.mxu0 0
      %244 = vmatprep.subr.bf16.mxu0 0
      %245 = vmatpush1.bf16.msra.mxu0 %v228
      %246 = vmatprep.subr.bf16.mxu0 0
      %247 = vmatpush2.bf16.msra.mxu0 0
      %248 = vmatprep.subr.bf16.mxu0 0
      %249 = vmatpush2.bf16.msra.mxu0 0
      %250 = vmatprep.subr.bf16.mxu0 0
      %251 = vmatpush2.bf16.msra.mxu0 0
      %252 = vmatprep.subr.bf16.mxu0 0
      %253 = vmatpush2.bf16.msra.mxu0 0
      %254 = vmatprep.subr.bf16.mxu0 0
      %255 = vmatpush2.bf16.msra.mxu0 0
      %256 = vmatprep.subr.bf16.mxu0 0
      %257 = vmatpush2.bf16.msra.mxu0 0
      %258 = vmatprep.subr.bf16.mxu0 0
      %259 = vmatpush2.bf16.msra.mxu0 0
      %260 = vmatprep.subr.bf16.mxu0 0
      %261 = vmatpush2.bf16.msra.mxu0 0
      %262 = vmatprep.mubr.bf16.mxu0 0
      %263 = vmatmul.mubr.bf16.gmra.mxu0 %v224
      %v264 = vpop.f32.mrf.mxu0
      %v265 = vadd.f32 0.0, %v264
      %v266 = vpop.f32.mrf.mxu0
      %v267 = vpop.f32.mrf.mxu0
      %v268 = vpop.f32.mrf.mxu0
      %269 = vdwg.mxu0
      %v270 = vmul.f32 %v265, %v218
      %272 = vrot.lane.b32.xlu0 %v160, 120
      %v273 = vpop.permute.xlu0 %272
      %274 = vrot.lane.b32.xlu0 %v161, 120
      %v275 = vpop.permute.xlu0 %274
      %v277 = vsel %vm162, %v273, 0
      %v280 = vsel %vm162, %v275, 0
      %282 = vmatprep.subr.bf16.mxu0 0
      %283 = vmatpush1.bf16.xpose.msra.mxu0 0
      %284 = vmatprep.subr.bf16.mxu0 0
      %285 = vmatpush1.bf16.xpose.msra.mxu0 0
      %286 = vmatprep.subr.bf16.mxu0 0
      %287 = vmatpush1.bf16.xpose.msra.mxu0 0
      %288 = vmatprep.subr.bf16.mxu0 0
      %289 = vmatpush1.bf16.xpose.msra.mxu0 0
      %290 = vmatprep.subr.bf16.mxu0 0
      %291 = vmatpush1.bf16.xpose.msra.mxu0 0
      %292 = vmatprep.subr.bf16.mxu0 0
      %293 = vmatpush1.bf16.xpose.msra.mxu0 0
      %294 = vmatprep.subr.bf16.mxu0 0
      %295 = vmatpush1.bf16.xpose.msra.mxu0 0
      %296 = vmatprep.subr.bf16.mxu0 0
      %297 = vmatpush1.bf16.xpose.msra.mxu0 %v280
      %298 = vmatprep.subr.bf16.mxu0 0
      %299 = vmatpush2.bf16.xpose.msra.mxu0 0
      %300 = vmatprep.subr.bf16.mxu0 0
      %301 = vmatpush2.bf16.xpose.msra.mxu0 0
      %302 = vmatprep.subr.bf16.mxu0 0
      %303 = vmatpush2.bf16.xpose.msra.mxu0 0
      %304 = vmatprep.subr.bf16.mxu0 0
      %305 = vmatpush2.bf16.xpose.msra.mxu0 0
      %306 = vmatprep.subr.bf16.mxu0 0
      %307 = vmatpush2.bf16.xpose.msra.mxu0 0
      %308 = vmatprep.subr.bf16.mxu0 0
      %309 = vmatpush2.bf16.xpose.msra.mxu0 0
      %310 = vmatprep.subr.bf16.mxu0 0
      %311 = vmatpush2.bf16.xpose.msra.mxu0 0
      %312 = vmatprep.subr.bf16.mxu0 0
      %313 = vmatpush2.bf16.xpose.msra.mxu0 0
      %314 = vmatprep.mubr.bf16.mxu0 0
      %315 = vmatmul.mubr.bf16.gmra.mxu0 %v277
      %v316 = vpop.f32.mrf.mxu0
      %v317 = vadd.f32 0.0, %v316
      %v318 = vpop.f32.mrf.mxu0
      %v319 = vpop.f32.mrf.mxu0
      %v320 = vpop.f32.mrf.mxu0
      %321 = vdwg.mxu0
      %v322 = vsel %vm162, %v317, -inf
      %323 = vmax.xlane.f32.xlu0 %v322
      %v324 = vpop.xlane.xlu0 %323
      %v325 = vsub.f32 %v317, %v324
      %v326 = vmul.f32 %v325, 1.442695
      %v327 = vpow.pop %v326
      %v328 = vsel %vm162, %v327, 0.0
      %329 = vadd.xlane.f32.xlu0 %v328
      %v330 = vpop.xlane.xlu0 %329
      %v331 = vrcp.pop %v330
      %v332 = vpack.c.bf16 %v327, %v327
      %333 = vrot.lane.b32.xlu0 %v161, 88
      %v334 = vpop.permute.xlu0 %333
      %v336 = vsel %vm162, %v332, 0
      %v339 = vsel %vm226, %v334, 0
      %341 = vmatprep.subr.bf16.mxu0 0
      %342 = vmatpush1.bf16.msra.mxu0 0
      %343 = vmatprep.subr.bf16.mxu0 0
      %344 = vmatpush1.bf16.msra.mxu0 0
      %345 = vmatprep.subr.bf16.mxu0 0
      %346 = vmatpush1.bf16.msra.mxu0 0
      %347 = vmatprep.subr.bf16.mxu0 0
      %348 = vmatpush1.bf16.msra.mxu0 0
      %349 = vmatprep.subr.bf16.mxu0 0
      %350 = vmatpush1.bf16.msra.mxu0 0
      %351 = vmatprep.subr.bf16.mxu0 0
      %352 = vmatpush1.bf16.msra.mxu0 0
      %353 = vmatprep.subr.bf16.mxu0 0
      %354 = vmatpush1.bf16.msra.mxu0 0
      %355 = vmatprep.subr.bf16.mxu0 0
      %356 = vmatpush1.bf16.msra.mxu0 %v339
      %357 = vmatprep.subr.bf16.mxu0 0
      %358 = vmatpush2.bf16.msra.mxu0 0
      %359 = vmatprep.subr.bf16.mxu0 0
      %360 = vmatpush2.bf16.msra.mxu0 0
      %361 = vmatprep.subr.bf16.mxu0 0
      %362 = vmatpush2.bf16.msra.mxu0 0
      %363 = vmatprep.subr.bf16.mxu0 0
      %364 = vmatpush2.bf16.msra.mxu0 0
      %365 = vmatprep.subr.bf16.mxu0 0
      %366 = vmatpush2.bf16.msra.mxu0 0
      %367 = vmatprep.subr.bf16.mxu0 0
      %368 = vmatpush2.bf16.msra.mxu0 0
      %369 = vmatprep.subr.bf16.mxu0 0
      %370 = vmatpush2.bf16.msra.mxu0 0
      %371 = vmatprep.subr.bf16.mxu0 0
      %372 = vmatpush2.bf16.msra.mxu0 0
      %373 = vmatprep.mubr.bf16.mxu0 0
      %374 = vmatmul.mubr.bf16.gmra.mxu0 %v336
      %v375 = vpop.f32.mrf.mxu0
      %v376 = vadd.f32 0.0, %v375
      %v377 = vpop.f32.mrf.mxu0
      %v378 = vpop.f32.mrf.mxu0
      %v379 = vpop.f32.mrf.mxu0
      %380 = vdwg.mxu0
      %v381 = vmul.f32 %v376, %v331
      %382 = vrot.lane.b32.xlu0 %v160, 112
      %v383 = vpop.permute.xlu0 %382
      %384 = vrot.lane.b32.xlu0 %v161, 112
      %v385 = vpop.permute.xlu0 %384
      %v387 = vsel %vm162, %v383, 0
      %v390 = vsel %vm162, %v385, 0
      %392 = vmatprep.subr.bf16.mxu0 0
      %393 = vmatpush1.bf16.xpose.msra.mxu0 0
      %394 = vmatprep.subr.bf16.mxu0 0
      %395 = vmatpush1.bf16.xpose.msra.mxu0 0
      %396 = vmatprep.subr.bf16.mxu0 0
      %397 = vmatpush1.bf16.xpose.msra.mxu0 0
      %398 = vmatprep.subr.bf16.mxu0 0
      %399 = vmatpush1.bf16.xpose.msra.mxu0 0
      %400 = vmatprep.subr.bf16.mxu0 0
      %401 = vmatpush1.bf16.xpose.msra.mxu0 0
      %402 = vmatprep.subr.bf16.mxu0 0
      %403 = vmatpush1.bf16.xpose.msra.mxu0 0
      %404 = vmatprep.subr.bf16.mxu0 0
      %405 = vmatpush1.bf16.xpose.msra.mxu0 0
      %406 = vmatprep.subr.bf16.mxu0 0
      %407 = vmatpush1.bf16.xpose.msra.mxu0 %v390
      %408 = vmatprep.subr.bf16.mxu0 0
      %409 = vmatpush2.bf16.xpose.msra.mxu0 0
      %410 = vmatprep.subr.bf16.mxu0 0
      %411 = vmatpush2.bf16.xpose.msra.mxu0 0
      %412 = vmatprep.subr.bf16.mxu0 0
      %413 = vmatpush2.bf16.xpose.msra.mxu0 0
      %414 = vmatprep.subr.bf16.mxu0 0
      %415 = vmatpush2.bf16.xpose.msra.mxu0 0
      %416 = vmatprep.subr.bf16.mxu0 0
      %417 = vmatpush2.bf16.xpose.msra.mxu0 0
      %418 = vmatprep.subr.bf16.mxu0 0
      %419 = vmatpush2.bf16.xpose.msra.mxu0 0
      %420 = vmatprep.subr.bf16.mxu0 0
      %421 = vmatpush2.bf16.xpose.msra.mxu0 0
      %422 = vmatprep.subr.bf16.mxu0 0
      %423 = vmatpush2.bf16.xpose.msra.mxu0 0
      %424 = vmatprep.mubr.bf16.mxu0 0
      %425 = vmatmul.mubr.bf16.gmra.mxu0 %v387
      %v426 = vpop.f32.mrf.mxu0
      %v427 = vadd.f32 0.0, %v426
      %v428 = vpop.f32.mrf.mxu0
      %v429 = vpop.f32.mrf.mxu0
      %v430 = vpop.f32.mrf.mxu0
      %431 = vdwg.mxu0
      %v432 = vsel %vm162, %v427, -inf
      %433 = vmax.xlane.f32.xlu0 %v432
      %v434 = vpop.xlane.xlu0 %433
      %v435 = vsub.f32 %v427, %v434
      %v436 = vmul.f32 %v435, 1.442695
      %v437 = vpow.pop %v436
      %v438 = vsel %vm162, %v437, 0.0
      %439 = vadd.xlane.f32.xlu0 %v438
      %v440 = vpop.xlane.xlu0 %439
      %v441 = vrcp.pop %v440
      %v442 = vpack.c.bf16 %v437, %v437
      %443 = vrot.lane.b32.xlu0 %v161, 80
      %v444 = vpop.permute.xlu0 %443
      %v446 = vsel %vm162, %v442, 0
      %v449 = vsel %vm226, %v444, 0
      %451 = vmatprep.subr.bf16.mxu0 0
      %452 = vmatpush1.bf16.msra.mxu0 0
      %453 = vmatprep.subr.bf16.mxu0 0
      %454 = vmatpush1.bf16.msra.mxu0 0
      %455 = vmatprep.subr.bf16.mxu0 0
      %456 = vmatpush1.bf16.msra.mxu0 0
      %457 = vmatprep.subr.bf16.mxu0 0
      %458 = vmatpush1.bf16.msra.mxu0 0
      %459 = vmatprep.subr.bf16.mxu0 0
      %460 = vmatpush1.bf16.msra.mxu0 0
      %461 = vmatprep.subr.bf16.mxu0 0
      %462 = vmatpush1.bf16.msra.mxu0 0
      %463 = vmatprep.subr.bf16.mxu0 0
      %464 = vmatpush1.bf16.msra.mxu0 0
      %465 = vmatprep.subr.bf16.mxu0 0
      %466 = vmatpush1.bf16.msra.mxu0 %v449
      %467 = vmatprep.subr.bf16.mxu0 0
      %468 = vmatpush2.bf16.msra.mxu0 0
      %469 = vmatprep.subr.bf16.mxu0 0
      %470 = vmatpush2.bf16.msra.mxu0 0
      %471 = vmatprep.subr.bf16.mxu0 0
      %472 = vmatpush2.bf16.msra.mxu0 0
      %473 = vmatprep.subr.bf16.mxu0 0
      %474 = vmatpush2.bf16.msra.mxu0 0
      %475 = vmatprep.subr.bf16.mxu0 0
      %476 = vmatpush2.bf16.msra.mxu0 0
      %477 = vmatprep.subr.bf16.mxu0 0
      %478 = vmatpush2.bf16.msra.mxu0 0
      %479 = vmatprep.subr.bf16.mxu0 0
      %480 = vmatpush2.bf16.msra.mxu0 0
      %481 = vmatprep.subr.bf16.mxu0 0
      %482 = vmatpush2.bf16.msra.mxu0 0
      %483 = vmatprep.mubr.bf16.mxu0 0
      %484 = vmatmul.mubr.bf16.gmra.mxu0 %v446
      %v485 = vpop.f32.mrf.mxu0
      %v486 = vadd.f32 0.0, %v485
      %v487 = vpop.f32.mrf.mxu0
      %v488 = vpop.f32.mrf.mxu0
      %v489 = vpop.f32.mrf.mxu0
      %490 = vdwg.mxu0
      %v491 = vmul.f32 %v486, %v441
      %492 = vrot.lane.b32.xlu0 %v160, 104
      %v493 = vpop.permute.xlu0 %492
      %494 = vrot.lane.b32.xlu0 %v161, 104
      %v495 = vpop.permute.xlu0 %494
      %v497 = vsel %vm162, %v493, 0
      %v500 = vsel %vm162, %v495, 0
      %502 = vmatprep.subr.bf16.mxu0 0
      %503 = vmatpush1.bf16.xpose.msra.mxu0 0
      %504 = vmatprep.subr.bf16.mxu0 0
      %505 = vmatpush1.bf16.xpose.msra.mxu0 0
      %506 = vmatprep.subr.bf16.mxu0 0
      %507 = vmatpush1.bf16.xpose.msra.mxu0 0
      %508 = vmatprep.subr.bf16.mxu0 0
      %509 = vmatpush1.bf16.xpose.msra.mxu0 0
      %510 = vmatprep.subr.bf16.mxu0 0
      %511 = vmatpush1.bf16.xpose.msra.mxu0 0
      %512 = vmatprep.subr.bf16.mxu0 0
      %513 = vmatpush1.bf16.xpose.msra.mxu0 0
      %514 = vmatprep.subr.bf16.mxu0 0
      %515 = vmatpush1.bf16.xpose.msra.mxu0 0
      %516 = vmatprep.subr.bf16.mxu0 0
      %517 = vmatpush1.bf16.xpose.msra.mxu0 %v500
      %518 = vmatprep.subr.bf16.mxu0 0
      %519 = vmatpush2.bf16.xpose.msra.mxu0 0
      %520 = vmatprep.subr.bf16.mxu0 0
      %521 = vmatpush2.bf16.xpose.msra.mxu0 0
      %522 = vmatprep.subr.bf16.mxu0 0
      %523 = vmatpush2.bf16.xpose.msra.mxu0 0
      %524 = vmatprep.subr.bf16.mxu0 0
      %525 = vmatpush2.bf16.xpose.msra.mxu0 0
      %526 = vmatprep.subr.bf16.mxu0 0
      %527 = vmatpush2.bf16.xpose.msra.mxu0 0
      %528 = vmatprep.subr.bf16.mxu0 0
      %529 = vmatpush2.bf16.xpose.msra.mxu0 0
      %530 = vmatprep.subr.bf16.mxu0 0
      %531 = vmatpush2.bf16.xpose.msra.mxu0 0
      %532 = vmatprep.subr.bf16.mxu0 0
      %533 = vmatpush2.bf16.xpose.msra.mxu0 0
      %534 = vmatprep.mubr.bf16.mxu0 0
      %535 = vmatmul.mubr.bf16.gmra.mxu0 %v497
      %v536 = vpop.f32.mrf.mxu0
      %v537 = vadd.f32 0.0, %v536
      %v538 = vpop.f32.mrf.mxu0
      %v539 = vpop.f32.mrf.mxu0
      %v540 = vpop.f32.mrf.mxu0
      %541 = vdwg.mxu0
      %v542 = vsel %vm162, %v537, -inf
      %543 = vmax.xlane.f32.xlu0 %v542
      %v544 = vpop.xlane.xlu0 %543
      %v545 = vsub.f32 %v537, %v544
      %v546 = vmul.f32 %v545, 1.442695
      %v547 = vpow.pop %v546
      %v548 = vsel %vm162, %v547, 0.0
      %549 = vadd.xlane.f32.xlu0 %v548
      %v550 = vpop.xlane.xlu0 %549
      %v551 = vrcp.pop %v550
      %v552 = vpack.c.bf16 %v547, %v547
      %553 = vrot.lane.b32.xlu0 %v161, 72
      %v554 = vpop.permute.xlu0 %553
      %v556 = vsel %vm162, %v552, 0
      %v559 = vsel %vm226, %v554, 0
      %561 = vmatprep.subr.bf16.mxu0 0
      %562 = vmatpush1.bf16.msra.mxu0 0
      %563 = vmatprep.subr.bf16.mxu0 0
      %564 = vmatpush1.bf16.msra.mxu0 0
      %565 = vmatprep.subr.bf16.mxu0 0
      %566 = vmatpush1.bf16.msra.mxu0 0
      %567 = vmatprep.subr.bf16.mxu0 0
      %568 = vmatpush1.bf16.msra.mxu0 0
      %569 = vmatprep.subr.bf16.mxu0 0
      %570 = vmatpush1.bf16.msra.mxu0 0
      %571 = vmatprep.subr.bf16.mxu0 0
      %572 = vmatpush1.bf16.msra.mxu0 0
      %573 = vmatprep.subr.bf16.mxu0 0
      %574 = vmatpush1.bf16.msra.mxu0 0
      %575 = vmatprep.subr.bf16.mxu0 0
      %576 = vmatpush1.bf16.msra.mxu0 %v559
      %577 = vmatprep.subr.bf16.mxu0 0
      %578 = vmatpush2.bf16.msra.mxu0 0
      %579 = vmatprep.subr.bf16.mxu0 0
      %580 = vmatpush2.bf16.msra.mxu0 0
      %581 = vmatprep.subr.bf16.mxu0 0
      %582 = vmatpush2.bf16.msra.mxu0 0
      %583 = vmatprep.subr.bf16.mxu0 0
      %584 = vmatpush2.bf16.msra.mxu0 0
      %585 = vmatprep.subr.bf16.mxu0 0
      %586 = vmatpush2.bf16.msra.mxu0 0
      %587 = vmatprep.subr.bf16.mxu0 0
      %588 = vmatpush2.bf16.msra.mxu0 0
      %589 = vmatprep.subr.bf16.mxu0 0
      %590 = vmatpush2.bf16.msra.mxu0 0
      %591 = vmatprep.subr.bf16.mxu0 0
      %592 = vmatpush2.bf16.msra.mxu0 0
      %593 = vmatprep.mubr.bf16.mxu0 0
      %594 = vmatmul.mubr.bf16.gmra.mxu0 %v556
      %v595 = vpop.f32.mrf.mxu0
      %v596 = vadd.f32 0.0, %v595
      %v597 = vpop.f32.mrf.mxu0
      %v598 = vpop.f32.mrf.mxu0
      %v599 = vpop.f32.mrf.mxu0
      %600 = vdwg.mxu0
      %v601 = vmul.f32 %v596, %v551
      %603 = vrot.lane.b32.xlu0 %v381, 8
      %v604 = vpop.permute.xlu0 %603
      %607 = vrot.lane.b32.xlu0 %v491, 16
      %v608 = vpop.permute.xlu0 %607
      %611 = vrot.lane.b32.xlu0 %v601, 24
      %v612 = vpop.permute.xlu0 %611
      %v614 = vsel %vm162, %v270, %v604
      %vm615 = vcmask 130048
      %v616 = vsel %vm615, %v614, %v608
      %vm617 = vcmask 195584
      %v618 = vsel %vm617, %v616, %v612
      %vm619 = vcmask 261120
      %620 = vst.msk [vmem:[%s155] sm:$0xff] %vm619, %v618
      %p621 = scmp.lt.s32.totalorder %s13, 1
      %s622 = scalar_select %p621, %s13, 1
      %s623 = smul.addr %s622, 8
      %s624 = scalar_lea.vmem %s2, %s623
      // Predicated region
      $region29: #{transformer_forward.29} parent=27 // pred_check
        %p625 = pneg %p83
      $region30: #{transformer_forward.29} parent=27 // pred_check_branch
        %627 = sbr.rel (%p625) target = $region32
      $region31: #{transformer_forward.29} parent=27 // pred_region
        _
      $region32: #{transformer_forward.29} parent=27 // pred_fallthru
        _
    $region28: #{transformer_forward.29} parent=5 // pred_fallthru
      _
    %p628 = scmp.le.s32.totalorder 2, %s8
    // Predicated region
    $region33: #{transformer_forward.29} parent=5 // pred_check
      %p629 = pneg %p628
    $region34: #{transformer_forward.29} parent=5 // pred_check_branch
      %631 = sbr.rel (%p629) target = $region36
    $region35: #{transformer_forward.29} parent=5 // pred_region
      %s632 = ssub.s32 %s8, 2
      // Predicated region
      $region37: #{transformer_forward.29} parent=35 // pred_check
        %p633 = pneg %p89
      $region38: #{transformer_forward.29} parent=35 // pred_check_branch
        %635 = sbr.rel (%p633) target = $region40
      $region39: #{transformer_forward.29} parent=35 // pred_region
        %p636 = scmp.lt.s32.totalorder %s14, 1
        %s637 = scalar_select %p636, %s14, 1
        %s638 = smul.addr %s637, 8
        %s639 = scalar_lea.vmem %s2, %s638
      $region40: #{transformer_forward.29} parent=35 // pred_fallthru
        _
    $region36: #{transformer_forward.29} parent=5 // pred_fallthru
      _
  $region6: #{transformer_forward.29} parent=0 // loop_footer
    %s12 = sadd.s32 1, %s8
  $region7: #{transformer_forward.29} parent=0 // loop_footer_branch
    %7 = sbr.rel target = $region3
  $region8: #{transformer_forward.29} parent=0 // loop_exit
    _

// kernel: transformer_forward.36
$region0: #{transformer_forward.36}
  #allocation0 [shape = 'u32[]', space=smem, size = 0x4, offset = 0x4, fixed_abs, tag = 'smem constant byte address 0x4 - core index']
  #allocation1 [shape = 'u32[144,128]{1,0:T(1,128)}', space=vmem, size = 0x12000, scoped, tag = 'internal scratch']
  %s0 = inlined_call_operand.vmem [shape: f32[16,32], index: 0, kind: input, shape index: {}]
  %s1 = inlined_call_operand.vmem [shape: f32[1,32], index: 1, kind: input, shape index: {}]
  %s2 = inlined_call_operand.vmem [shape: f32[1,32], index: 2, kind: input, shape index: {}]
  %s3 = inlined_call_operand.vmem [shape: f32[16,32], index: 3, kind: output, shape index: {}]
  %s4 = sld [smem:[#allocation0]]
  $region22: #{transformer_forward.36} parent=0
    _
  %s6 = ssub.s32 1, %s4
  %s7 = scalar_select 0, %s6, %s4
  // Predicated region
  $region2: #{transformer_forward.36} parent=0 // pred_check
    _
  $region3: #{transformer_forward.36} parent=0 // pred_check_branch
    %9 = sbr.rel (0) target = $region5
  $region4: #{transformer_forward.36} parent=0 // pred_region
    _
  $region5: #{transformer_forward.36} parent=0 // pred_fallthru
    _
  // Predicated region
  $region6: #{transformer_forward.36} parent=0 // pred_check
    _
  $region7: #{transformer_forward.36} parent=0 // pred_check_branch
    %11 = sbr.rel (0) target = $region9
  $region8: #{transformer_forward.36} parent=0 // pred_region
    _
  $region9: #{transformer_forward.36} parent=0 // pred_fallthru
    _
  // Predicated region
  $region10: #{transformer_forward.36} parent=0 // pred_check
    _
  $region11: #{transformer_forward.36} parent=0 // pred_check_branch
    %13 = sbr.rel (0) target = $region13
  $region12: #{transformer_forward.36} parent=0 // pred_region
    _
  $region13: #{transformer_forward.36} parent=0 // pred_fallthru
    _
  %v14 = vld [vmem:[%s0] sm:$0xff]
  %v15 = vld [vmem:[%s0 + $0x8] sm:$0xff]
  %v16 = vld [vmem:[%s1] sm:$0x1]
  %v17 = vld [vmem:[%s2] sm:$0x1]
  %vm18 = vcmask 261120
  %v19 = vsel %vm18, %v14, 0.0
  %20 = vadd.xlane.f32.xlu0 %v19
  %v21 = vpop.xlane.xlu0 %20
  %v22 = vsel %vm18, %v15, 0.0
  %23 = vadd.xlane.f32.xlu0 %v22
  %v24 = vpop.xlane.xlu0 %23
  %v25 = vrcp.pop 32.0
  %v26 = vmul.f32 %v21, %v25
  %v27 = vmul.f32 %v24, %v25
  %v28 = vsub.f32 %v14, %v26
  %v29 = vsub.f32 %v15, %v27
  %v30 = vmul.f32 %v28, %v28
  %v31 = vmul.f32 %v29, %v29
  %v32 = vsel %vm18, %v30, 0.0
  %33 = vadd.xlane.f32.xlu0 %v32
  %v34 = vpop.xlane.xlu0 %33
  %v35 = vsel %vm18, %v31, 0.0
  %36 = vadd.xlane.f32.xlu0 %v35
  %v37 = vpop.xlane.xlu0 %36
  %v38 = vmul.f32 %v34, %v25
  %v39 = vmul.f32 %v37, %v25
  %v40 = vadd.f32 %v38, 1e-05
  %v41 = vadd.f32 %v39, 1e-05
  %v42 = vrsqrt.pop %v40
  %v43 = vrsqrt.pop %v41
  %v44 = vmul.f32 %v28, %v42
  %v45 = vmul.f32 %v29, %v43
  %v47 = vlaneseq
  %v48 = vshrl.u32 %v47, 7
  %v49 = vsub.s32 0, %v48
  %v50 = vrot.slane %v16, %v49
  %v52 = vmul.f32 %v44, %v50
  %v53 = vmul.f32 %v45, %v50
  %v55 = vlaneseq
  %v56 = vshrl.u32 %v55, 7
  %v57 = vsub.s32 0, %v56
  %v58 = vrot.slane %v17, %v57
  %v60 = vadd.f32 %v52, %v58
  %v61 = vadd.f32 %v53, %v58
  %62 = vst.msk [vmem:[%s3] sm:$0xff] %vm18, %v60
  %63 = vst.msk [vmem:[%s3 + $0x8] sm:$0xff] %vm18, %v61
  // Predicated region
  $region14: #{transformer_forward.36} parent=0 // pred_check
    _
  $region15: #{transformer_forward.36} parent=0 // pred_check_branch
    %65 = sbr.rel (0) target = $region17
  $region16: #{transformer_forward.36} parent=0 // pred_region
    _
  $region17: #{transformer_forward.36} parent=0 // pred_fallthru
    _
  // Predicated region
  $region18: #{transformer_forward.36} parent=0 // pred_check
    _
  $region19: #{transformer_forward.36} parent=0 // pred_check_branch
    %67 = sbr.rel (0) target = $region21
  $region20: #{transformer_forward.36} parent=0 // pred_region
    _
  $region21: #{transformer_forward.36} parent=0 // pred_fallthru
    _

// kernel: transformer_forward.41
$region0: #{transformer_forward.41}
  #allocation0 [shape = 'u32[]', space=smem, size = 0x4, offset = 0x4, fixed_abs, tag = 'smem constant byte address 0x4 - core index']
  #allocation1 [shape = 'u32[144,128]{1,0:T(1,128)}', space=vmem, size = 0x12000, scoped, tag = 'internal scratch']
  %s0 = inlined_call_operand.vmem [shape: f32[16,32], index: 0, kind: input, shape index: {}]
  %s1 = inlined_call_operand.vmem [shape: bf16[32,64], index: 1, kind: input, shape index: {}]
  %s2 = inlined_call_operand.vmem [shape: f32[1,64], index: 2, kind: input, shape index: {}]
  %s3 = inlined_call_operand.vmem [shape: f32[16,64], index: 3, kind: output, shape index: {}]
  %s4 = sld [smem:[#allocation0]]
  $region22: #{transformer_forward.41} parent=0
    _
  %s6 = ssub.s32 1, %s4
  %s7 = scalar_select 0, %s6, %s4
  // Predicated region
  $region2: #{transformer_forward.41} parent=0 // pred_check
    _
  $region3: #{transformer_forward.41} parent=0 // pred_check_branch
    %9 = sbr.rel (0) target = $region5
  $region4: #{transformer_forward.41} parent=0 // pred_region
    _
  $region5: #{transformer_forward.41} parent=0 // pred_fallthru
    _
  // Predicated region
  $region6: #{transformer_forward.41} parent=0 // pred_check
    _
  $region7: #{transformer_forward.41} parent=0 // pred_check_branch
    %11 = sbr.rel (0) target = $region9
  $region8: #{transformer_forward.41} parent=0 // pred_region
    _
  $region9: #{transformer_forward.41} parent=0 // pred_fallthru
    _
  // Predicated region
  $region10: #{transformer_forward.41} parent=0 // pred_check
    _
  $region11: #{transformer_forward.41} parent=0 // pred_check_branch
    %13 = sbr.rel (0) target = $region13
  $region12: #{transformer_forward.41} parent=0 // pred_region
    _
  $region13: #{transformer_forward.41} parent=0 // pred_fallthru
    _
  %v15 = vld [vmem:[%s0] sm:$0xff]
  %v16 = vld [vmem:[%s0 + $0x8] sm:$0xff]
  %v17 = vpack.c.bf16 %v16, %v15
  %v18 = vld [vmem:[%s1] sm:$0xf]
  %v19 = vld [vmem:[%s1 + $0x4] sm:$0xf]
  %v20 = vld [vmem:[%s1 + $0x8] sm:$0xf]
  %v21 = vld [vmem:[%s1 + $0xc] sm:$0xf]
  %v22 = vld [vmem:[%s2] sm:$0x1]
  %v24 = vlaneseq
  %v25 = vshrl.u32 %v24, 7
  %v26 = vsub.s32 0, %v25
  %v27 = vrot.slane %v22, %v26
  %v33 = vunpack.c.l.b16 %v18
  %v34 = vunpack.c.l.b16 %v19
  %v35 = vunpack.c.l.b16 %v20
  %v36 = vunpack.c.l.b16 %v21
  %v37 = vpack.c.b16 %v34, %v33
  %v38 = vpack.c.b16 %v36, %v35
  %vm41 = vcmask 261120
  %v43 = vsel %vm41, %v17, 0
  %45 = vmatprep.subr.bf16.mxu0 0
  %46 = vmatpush1.bf16.msra.mxu0 0
  %47 = vmatprep.subr.bf16.mxu0 0
  %48 = vmatpush1.bf16.msra.mxu0 0
  %49 = vmatprep.subr.bf16.mxu0 0
  %50 = vmatpush1.bf16.msra.mxu0 0
  %51 = vmatprep.subr.bf16.mxu0 0
  %52 = vmatpush1.bf16.msra.mxu0 0
  %53 = vmatprep.subr.bf16.mxu0 0
  %54 = vmatpush1.bf16.msra.mxu0 0
  %55 = vmatprep.subr.bf16.mxu0 0
  %56 = vmatpush1.bf16.msra.mxu0 0
  %57 = vmatprep.subr.bf16.mxu0 0
  %58 = vmatpush1.bf16.msra.mxu0 %v38
  %59 = vmatprep.subr.bf16.mxu0 0
  %60 = vmatpush1.bf16.msra.mxu0 %v37
  %61 = vmatprep.subr.bf16.mxu0 0
  %62 = vmatpush2.bf16.msra.mxu0 0
  %63 = vmatprep.subr.bf16.mxu0 0
  %64 = vmatpush2.bf16.msra.mxu0 0
  %65 = vmatprep.subr.bf16.mxu0 0
  %66 = vmatpush2.bf16.msra.mxu0 0
  %67 = vmatprep.subr.bf16.mxu0 0
  %68 = vmatpush2.bf16.msra.mxu0 0
  %69 = vmatprep.subr.bf16.mxu0 0
  %70 = vmatpush2.bf16.msra.mxu0 0
  %71 = vmatprep.subr.bf16.mxu0 0
  %72 = vmatpush2.bf16.msra.mxu0 0
  %73 = vmatprep.subr.bf16.mxu0 0
  %74 = vmatpush2.bf16.msra.mxu0 0
  %75 = vmatprep.subr.bf16.mxu0 0
  %76 = vmatpush2.bf16.msra.mxu0 0
  %77 = vmatprep.mubr.bf16.mxu0 0
  %78 = vmatmul.mubr.bf16.gmra.mxu0 %v43
  %v79 = vpop.f32.mrf.mxu0
  %v80 = vadd.f32 %v27, %v79
  %v81 = vpop.f32.mrf.mxu0
  %v82 = vpop.f32.mrf.mxu0
  %v83 = vadd.f32 %v27, %v82
  %v84 = vpop.f32.mrf.mxu0
  %85 = vdwg.mxu0
  %vm86 = vcmask 523264
  %87 = vst.msk [vmem:[%s3] sm:$0xff] %vm86, %v80
  %88 = vst.msk [vmem:[%s3 + $0x8] sm:$0xff] %vm86, %v83
  // Predicated region
  $region14: #{transformer_forward.41} parent=0 // pred_check
    _
  $region15: #{transformer_forward.41} parent=0 // pred_check_branch
    %90 = sbr.rel (0) target = $region17
  $region16: #{transformer_forward.41} parent=0 // pred_region
    _
  $region17: #{transformer_forward.41} parent=0 // pred_fallthru
    _
  // Predicated region
  $region18: #{transformer_forward.41} parent=0 // pred_check
    _
  $region19: #{transformer_forward.41} parent=0 // pred_check_branch
    %92 = sbr.rel (0) target = $region21
  $region20: #{transformer_forward.41} parent=0 // pred_region
    _
  $region21: #{transformer_forward.41} parent=0 // pred_fallthru
    _

// kernel: transformer_forward.31
$region0: #{transformer_forward.31}
  #allocation0 [shape = 'u32[]', space=smem, size = 0x4, offset = 0x4, fixed_abs, tag = 'smem constant byte address 0x4 - core index']
  #allocation1 [shape = 'u32[144,128]{1,0:T(1,128)}', space=vmem, size = 0x12000, scoped, tag = 'internal scratch']
  %s0 = inlined_call_operand.vmem [shape: f32[16,32], index: 0, kind: input, shape index: {}]
  %s1 = inlined_call_operand.vmem [shape: f32[1,32], index: 1, kind: input, shape index: {}]
  %s2 = inlined_call_operand.vmem [shape: f32[1,32], index: 2, kind: input, shape index: {}]
  %s3 = inlined_call_operand.vmem [shape: bf16[32,64], index: 3, kind: input, shape index: {}]
  %s4 = inlined_call_operand.vmem [shape: f32[1,64], index: 4, kind: input, shape index: {}]
  %s5 = inlined_call_operand.vmem [shape: bf16[64,32], index: 5, kind: input, shape index: {}]
  %s6 = inlined_call_operand.vmem [shape: f32[1,32], index: 6, kind: input, shape index: {}]
  %s7 = inlined_call_operand.vmem [shape: f32[16,32], index: 7, kind: output, shape index: {}]
  %s8 = sld [smem:[#allocation0]]
  $region38: #{transformer_forward.31} parent=0
    _
  %s10 = ssub.s32 1, %s8
  %s11 = scalar_select 0, %s10, %s8
  // Predicated region
  $region2: #{transformer_forward.31} parent=0 // pred_check
    _
  $region3: #{transformer_forward.31} parent=0 // pred_check_branch
    %13 = sbr.rel (0) target = $region5
  $region4: #{transformer_forward.31} parent=0 // pred_region
    _
  $region5: #{transformer_forward.31} parent=0 // pred_fallthru
    _
  // Predicated region
  $region6: #{transformer_forward.31} parent=0 // pred_check
    _
  $region7: #{transformer_forward.31} parent=0 // pred_check_branch
    %15 = sbr.rel (0) target = $region9
  $region8: #{transformer_forward.31} parent=0 // pred_region
    _
  $region9: #{transformer_forward.31} parent=0 // pred_fallthru
    _
  // Predicated region
  $region10: #{transformer_forward.31} parent=0 // pred_check
    _
  $region11: #{transformer_forward.31} parent=0 // pred_check_branch
    %17 = sbr.rel (0) target = $region13
  $region12: #{transformer_forward.31} parent=0 // pred_region
    _
  $region13: #{transformer_forward.31} parent=0 // pred_fallthru
    _
  // Predicated region
  $region14: #{transformer_forward.31} parent=0 // pred_check
    _
  $region15: #{transformer_forward.31} parent=0 // pred_check_branch
    %19 = sbr.rel (0) target = $region17
  $region16: #{transformer_forward.31} parent=0 // pred_region
    _
  $region17: #{transformer_forward.31} parent=0 // pred_fallthru
    _
  // Predicated region
  $region18: #{transformer_forward.31} parent=0 // pred_check
    _
  $region19: #{transformer_forward.31} parent=0 // pred_check_branch
    %21 = sbr.rel (0) target = $region21
  $region20: #{transformer_forward.31} parent=0 // pred_region
    _
  $region21: #{transformer_forward.31} parent=0 // pred_fallthru
    _
  // Predicated region
  $region22: #{transformer_forward.31} parent=0 // pred_check
    _
  $region23: #{transformer_forward.31} parent=0 // pred_check_branch
    %23 = sbr.rel (0) target = $region25
  $region24: #{transformer_forward.31} parent=0 // pred_region
    _
  $region25: #{transformer_forward.31} parent=0 // pred_fallthru
    _
  // Predicated region
  $region26: #{transformer_forward.31} parent=0 // pred_check
    _
  $region27: #{transformer_forward.31} parent=0 // pred_check_branch
    %25 = sbr.rel (0) target = $region29
  $region28: #{transformer_forward.31} parent=0 // pred_region
    _
  $region29: #{transformer_forward.31} parent=0 // pred_fallthru
    _
  %v27 = vld [vmem:[%s0] sm:$0xff]
  %v28 = vld [vmem:[%s0 + $0x8] sm:$0xff]
  %v29 = vld [vmem:[%s1] sm:$0x1]
  %v30 = vld [vmem:[%s2] sm:$0x1]
  %vm31 = vcmask 261120
  %v32 = vsel %vm31, %v27, 0.0
  %33 = vadd.xlane.f32.xlu0 %v32
  %v34 = vpop.xlane.xlu0 %33
  %v35 = vsel %vm31, %v28, 0.0
  %36 = vadd.xlane.f32.xlu0 %v35
  %v37 = vpop.xlane.xlu0 %36
  %v38 = vrcp.pop 32.0
  %v39 = vmul.f32 %v34, %v38
  %v40 = vmul.f32 %v37, %v38
  %v41 = vsub.f32 %v27, %v39
  %v42 = vsub.f32 %v28, %v40
  %v43 = vmul.f32 %v41, %v41
  %v44 = vmul.f32 %v42, %v42
  %v45 = vsel %vm31, %v43, 0.0
  %46 = vadd.xlane.f32.xlu0 %v45
  %v47 = vpop.xlane.xlu0 %46
  %v48 = vsel %vm31, %v44, 0.0
  %49 = vadd.xlane.f32.xlu0 %v48
  %v50 = vpop.xlane.xlu0 %49
  %v51 = vmul.f32 %v47, %v38
  %v52 = vmul.f32 %v50, %v38
  %v53 = vadd.f32 %v51, 1e-05
  %v54 = vadd.f32 %v52, 1e-05
  %v55 = vrsqrt.pop %v53
  %v56 = vrsqrt.pop %v54
  %v57 = vmul.f32 %v41, %v55
  %v58 = vmul.f32 %v42, %v56
  %v60 = vlaneseq
  %v61 = vshrl.u32 %v60, 7
  %v62 = vsub.s32 0, %v61
  %v63 = vrot.slane %v29, %v62
  %v65 = vmul.f32 %v57, %v63
  %v66 = vmul.f32 %v58, %v63
  %v68 = vlaneseq
  %v69 = vshrl.u32 %v68, 7
  %v70 = vsub.s32 0, %v69
  %v71 = vrot.slane %v30, %v70
  %v73 = vadd.f32 %v65, %v71
  %v74 = vadd.f32 %v66, %v71
  %v75 = vpack.c.bf16 %v74, %v73
  %v76 = vld [vmem:[%s3] sm:$0xf]
  %v77 = vld [vmem:[%s3 + $0x4] sm:$0xf]
  %v78 = vld [vmem:[%s3 + $0x8] sm:$0xf]
  %v79 = vld [vmem:[%s3 + $0xc] sm:$0xf]
  %v80 = vld [vmem:[%s4] sm:$0x1]
  %v82 = vlaneseq
  %v83 = vshrl.u32 %v82, 7
  %v84 = vsub.s32 0, %v83
  %v85 = vrot.slane %v80, %v84
  %v91 = vunpack.c.l.b16 %v76
  %v92 = vunpack.c.l.b16 %v77
  %v93 = vunpack.c.l.b16 %v78
  %v94 = vunpack.c.l.b16 %v79
  %v95 = vpack.c.b16 %v92, %v91
  %v96 = vpack.c.b16 %v94, %v93
  %v100 = vsel %vm31, %v75, 0
  %102 = vmatprep.subr.bf16.mxu0 0
  %103 = vmatpush1.bf16.msra.mxu0 0
  %104 = vmatprep.subr.bf16.mxu0 0
  %105 = vmatpush1.bf16.msra.mxu0 0
  %106 = vmatprep.subr.bf16.mxu0 0
  %107 = vmatpush1.bf16.msra.mxu0 0
  %108 = vmatprep.subr.bf16.mxu0 0
  %109 = vmatpush1.bf16.msra.mxu0 0
  %110 = vmatprep.subr.bf16.mxu0 0
  %111 = vmatpush1.bf16.msra.mxu0 0
  %112 = vmatprep.subr.bf16.mxu0 0
  %113 = vmatpush1.bf16.msra.mxu0 0
  %114 = vmatprep.subr.bf16.mxu0 0
  %115 = vmatpush1.bf16.msra.mxu0 %v96
  %116 = vmatprep.subr.bf16.mxu0 0
  %117 = vmatpush1.bf16.msra.mxu0 %v95
  %118 = vmatprep.subr.bf16.mxu0 0
  %119 = vmatpush2.bf16.msra.mxu0 0
  %120 = vmatprep.subr.bf16.mxu0 0
  %121 = vmatpush2.bf16.msra.mxu0 0
  %122 = vmatprep.subr.bf16.mxu0 0
  %123 = vmatpush2.bf16.msra.mxu0 0
  %124 = vmatprep.subr.bf16.mxu0 0
  %125 = vmatpush2.bf16.msra.mxu0 0
  %126 = vmatprep.subr.bf16.mxu0 0
  %127 = vmatpush2.bf16.msra.mxu0 0
  %128 = vmatprep.subr.bf16.mxu0 0
  %129 = vmatpush2.bf16.msra.mxu0 0
  %130 = vmatprep.subr.bf16.mxu0 0
  %131 = vmatpush2.bf16.msra.mxu0 0
  %132 = vmatprep.subr.bf16.mxu0 0
  %133 = vmatpush2.bf16.msra.mxu0 0
  %134 = vmatprep.mubr.bf16.mxu0 0
  %135 = vmatmul.mubr.bf16.gmra.mxu0 %v100
  %v136 = vpop.f32.mrf.mxu0
  %v137 = vadd.f32 %v85, %v136
  %v138 = vpop.f32.mrf.mxu0
  %v139 = vpop.f32.mrf.mxu0
  %v140 = vadd.f32 %v85, %v139
  %v141 = vpop.f32.mrf.mxu0
  %142 = vdwg.mxu0
  %v143 = vmax.f32 %v137, 0.0
  %v144 = vmax.f32 %v140, 0.0
  %v145 = vpack.c.bf16 %v144, %v143
  %v146 = vld [vmem:[%s5] sm:$0xf]
  %v147 = vld [vmem:[%s5 + $0x4] sm:$0xf]
  %v148 = vld [vmem:[%s5 + $0x8] sm:$0xf]
  %v149 = vld [vmem:[%s5 + $0xc] sm:$0xf]
  %v150 = vld [vmem:[%s5 + $0x10] sm:$0xf]
  %v151 = vld [vmem:[%s5 + $0x14] sm:$0xf]
  %v152 = vld [vmem:[%s5 + $0x18] sm:$0xf]
  %v153 = vld [vmem:[%s5 + $0x1c] sm:$0xf]
  %v154 = vld [vmem:[%s6] sm:$0x1]
  %v156 = vlaneseq
  %v157 = vshrl.u32 %v156, 7
  %v158 = vsub.s32 0, %v157
  %v159 = vrot.slane %v154, %v158
  %v169 = vunpack.c.l.b16 %v146
  %v170 = vunpack.c.l.b16 %v147
  %v171 = vunpack.c.l.b16 %v148
  %v172 = vunpack.c.l.b16 %v149
  %v173 = vunpack.c.l.b16 %v150
  %v174 = vunpack.c.l.b16 %v151
  %v175 = vunpack.c.l.b16 %v152
  %v176 = vunpack.c.l.b16 %v153
  %v177 = vpack.c.b16 %v170, %v169
  %v178 = vpack.c.b16 %v172, %v171
  %v179 = vpack.c.b16 %v174, %v173
  %v180 = vpack.c.b16 %v176, %v175
  %vm185 = vcmask 523264
  %v187 = vsel %vm185, %v145, 0
  %189 = vmatprep.subr.bf16.mxu0 0
  %190 = vmatpush1.bf16.msra.mxu0 0
  %191 = vmatprep.subr.bf16.mxu0 0
  %192 = vmatpush1.bf16.msra.mxu0 0
  %193 = vmatprep.subr.bf16.mxu0 0
  %194 = vmatpush1.bf16.msra.mxu0 0
  %195 = vmatprep.subr.bf16.mxu0 0
  %196 = vmatpush1.bf16.msra.mxu0 0
  %197 = vmatprep.subr.bf16.mxu0 0
  %198 = vmatpush1.bf16.msra.mxu0 %v180
  %199 = vmatprep.subr.bf16.mxu0 0
  %200 = vmatpush1.bf16.msra.mxu0 %v179
  %201 = vmatprep.subr.bf16.mxu0 0
  %202 = vmatpush1.bf16.msra.mxu0 %v178
  %203 = vmatprep.subr.bf16.mxu0 0
  %204 = vmatpush1.bf16.msra.mxu0 %v177
  %205 = vmatprep.subr.bf16.mxu0 0
  %206 = vmatpush2.bf16.msra.mxu0 0
  %207 = vmatprep.subr.bf16.mxu0 0
  %208 = vmatpush2.bf16.msra.mxu0 0
  %209 = vmatprep.subr.bf16.mxu0 0
  %210 = vmatpush2.bf16.msra.mxu0 0
  %211 = vmatprep.subr.bf16.mxu0 0
  %212 = vmatpush2.bf16.msra.mxu0 0
  %213 = vmatprep.subr.bf16.mxu0 0
  %214 = vmatpush2.bf16.msra.mxu0 0
  %215 = vmatprep.subr.bf16.mxu0 0
  %216 = vmatpush2.bf16.msra.mxu0 0
  %217 = vmatprep.subr.bf16.mxu0 0
  %218 = vmatpush2.bf16.msra.mxu0 0
  %219 = vmatprep.subr.bf16.mxu0 0
  %220 = vmatpush2.bf16.msra.mxu0 0
  %221 = vmatprep.mubr.bf16.mxu0 0
  %222 = vmatmul.mubr.bf16.gmra.mxu0 %v187
  %v223 = vpop.f32.mrf.mxu0
  %v224 = vadd.f32 %v159, %v223
  %v225 = vpop.f32.mrf.mxu0
  %v226 = vpop.f32.mrf.mxu0
  %v227 = vadd.f32 %v159, %v226
  %v228 = vpop.f32.mrf.mxu0
  %229 = vdwg.mxu0
  %v230 = vadd.f32 %v27, %v224
  %v231 = vadd.f32 %v28, %v227
  %232 = vst.msk [vmem:[%s7] sm:$0xff] %vm31, %v230
  %233 = vst.msk [vmem:[%s7 + $0x8] sm:$0xff] %vm31, %v231
  // Predicated region
  $region30: #{transformer_forward.31} parent=0 // pred_check
    _
  $region31: #{transformer_forward.31} parent=0 // pred_check_branch
    %235 = sbr.rel (0) target = $region33
  $region32: #{transformer_forward.31} parent=0 // pred_region
    _
  $region33: #{transformer_forward.31} parent=0 // pred_fallthru
    _
  // Predicated region
  $region34: #{transformer_forward.31} parent=0 // pred_check
    _
  $region35: #{transformer_forward.31} parent=0 // pred_check_branch
    %237 = sbr.rel (0) target = $region37
  $region36: #{transformer_forward.31} parent=0 // pred_region
    _
  $region37: #{transformer_forward.31} parent=0 // pred_fallthru
    _

// kernel: transformer_forward.39
$region0: #{transformer_forward.39}
  #allocation0 [shape = 'u32[]', space=smem, size = 0x4, offset = 0x4, fixed_abs, tag = 'smem constant byte address 0x4 - core index']
  #allocation1 [shape = 'u32[144,128]{1,0:T(1,128)}', space=vmem, size = 0x12000, scoped, tag = 'internal scratch']
  %s0 = inlined_call_operand.vmem [shape: f32[14,32], index: 0, kind: input, shape index: {}]
  %s1 = inlined_call_operand.vmem [shape: bf16[32,32], index: 1, kind: input, shape index: {}]
  %s2 = inlined_call_operand.vmem [shape: f32[1,32], index: 2, kind: input, shape index: {}]
  %s3 = inlined_call_operand.vmem [shape: f32[14,32], index: 3, kind: input, shape index: {}]
  %s4 = inlined_call_operand.vmem [shape: f32[14,32], index: 4, kind: output, shape index: {}]
  %s5 = sld [smem:[#allocation0]]
  $region26: #{transformer_forward.39} parent=0
    _
  %s7 = ssub.s32 1, %s5
  %s8 = scalar_select 0, %s7, %s5
  // Predicated region
  $region2: #{transformer_forward.39} parent=0 // pred_check
    _
  $region3: #{transformer_forward.39} parent=0 // pred_check_branch
    %10 = sbr.rel (0) target = $region5
  $region4: #{transformer_forward.39} parent=0 // pred_region
    _
  $region5: #{transformer_forward.39} parent=0 // pred_fallthru
    _
  // Predicated region
  $region6: #{transformer_forward.39} parent=0 // pred_check
    _
  $region7: #{transformer_forward.39} parent=0 // pred_check_branch
    %12 = sbr.rel (0) target = $region9
  $region8: #{transformer_forward.39} parent=0 // pred_region
    _
  $region9: #{transformer_forward.39} parent=0 // pred_fallthru
    _
  // Predicated region
  $region10: #{transformer_forward.39} parent=0 // pred_check
    _
  $region11: #{transformer_forward.39} parent=0 // pred_check_branch
    %14 = sbr.rel (0) target = $region13
  $region12: #{transformer_forward.39} parent=0 // pred_region
    _
  $region13: #{transformer_forward.39} parent=0 // pred_fallthru
    _
  // Predicated region
  $region14: #{transformer_forward.39} parent=0 // pred_check
    _
  $region15: #{transformer_forward.39} parent=0 // pred_check_branch
    %16 = sbr.rel (0) target = $region17
  $region16: #{transformer_forward.39} parent=0 // pred_region
    _
  $region17: #{transformer_forward.39} parent=0 // pred_fallthru
    _
  %v18 = vld [vmem:[%s0] sm:$0xff]
  %v19 = vld [vmem:[%s0 + $0x8] sm:$0x3f]
  %v20 = vpack.c.bf16 %v19, %v18
  %v21 = vld [vmem:[%s1] sm:$0xf]
  %v22 = vld [vmem:[%s1 + $0x4] sm:$0xf]
  %v23 = vld [vmem:[%s1 + $0x8] sm:$0xf]
  %v24 = vld [vmem:[%s1 + $0xc] sm:$0xf]
  %v25 = vld [vmem:[%s2] sm:$0x1]
  %v27 = vlaneseq
  %v28 = vshrl.u32 %v27, 7
  %v29 = vsub.s32 0, %v28
  %v30 = vrot.slane %v25, %v29
  %v36 = vunpack.c.l.b16 %v21
  %v37 = vunpack.c.l.b16 %v22
  %v38 = vunpack.c.l.b16 %v23
  %v39 = vunpack.c.l.b16 %v24
  %v40 = vpack.c.b16 %v37, %v36
  %v41 = vpack.c.b16 %v39, %v38
  %vm44 = vcmask 261120
  %v46 = vsel %vm44, %v20, 0
  %48 = vmatprep.subr.bf16.mxu0 0
  %49 = vmatpush1.bf16.msra.mxu0 0
  %50 = vmatprep.subr.bf16.mxu0 0
  %51 = vmatpush1.bf16.msra.mxu0 0
  %52 = vmatprep.subr.bf16.mxu0 0
  %53 = vmatpush1.bf16.msra.mxu0 0
  %54 = vmatprep.subr.bf16.mxu0 0
  %55 = vmatpush1.bf16.msra.mxu0 0
  %56 = vmatprep.subr.bf16.mxu0 0
  %57 = vmatpush1.bf16.msra.mxu0 0
  %58 = vmatprep.subr.bf16.mxu0 0
  %59 = vmatpush1.bf16.msra.mxu0 0
  %60 = vmatprep.subr.bf16.mxu0 0
  %61 = vmatpush1.bf16.msra.mxu0 %v41
  %62 = vmatprep.subr.bf16.mxu0 0
  %63 = vmatpush1.bf16.msra.mxu0 %v40
  %64 = vmatprep.subr.bf16.mxu0 0
  %65 = vmatpush2.bf16.msra.mxu0 0
  %66 = vmatprep.subr.bf16.mxu0 0
  %67 = vmatpush2.bf16.msra.mxu0 0
  %68 = vmatprep.subr.bf16.mxu0 0
  %69 = vmatpush2.bf16.msra.mxu0 0
  %70 = vmatprep.subr.bf16.mxu0 0
  %71 = vmatpush2.bf16.msra.mxu0 0
  %72 = vmatprep.subr.bf16.mxu0 0
  %73 = vmatpush2.bf16.msra.mxu0 0
  %74 = vmatprep.subr.bf16.mxu0 0
  %75 = vmatpush2.bf16.msra.mxu0 0
  %76 = vmatprep.subr.bf16.mxu0 0
  %77 = vmatpush2.bf16.msra.mxu0 0
  %78 = vmatprep.subr.bf16.mxu0 0
  %79 = vmatpush2.bf16.msra.mxu0 0
  %80 = vmatprep.mubr.bf16.mxu0 0
  %81 = vmatmul.mubr.bf16.gmra.mxu0 %v46
  %v82 = vpop.f32.mrf.mxu0
  %v83 = vadd.f32 %v30, %v82
  %v84 = vpop.f32.mrf.mxu0
  %v85 = vpop.f32.mrf.mxu0
  %v86 = vadd.f32 %v30, %v85
  %v87 = vpop.f32.mrf.mxu0
  %88 = vdwg.mxu0
  %v89 = vld [vmem:[%s3] sm:$0xff]
  %v90 = vld [vmem:[%s3 + $0x8] sm:$0x3f]
  %v91 = vadd.f32 %v83, %v89
  %v92 = vadd.f32 %v86, %v90
  %93 = vst.msk [vmem:[%s4] sm:$0xff] %vm44, %v91
  %vm94 = vcmask 259072
  %95 = vst.msk [vmem:[%s4 + $0x8] sm:$0x3f] %vm94, %v92
  // Predicated region
  $region18: #{transformer_forward.39} parent=0 // pred_check
    _
  $region19: #{transformer_forward.39} parent=0 // pred_check_branch
    %97 = sbr.rel (0) target = $region21
  $region20: #{transformer_forward.39} parent=0 // pred_region
    _
  $region21: #{transformer_forward.39} parent=0 // pred_fallthru
    _
  // Predicated region
  $region22: #{transformer_forward.39} parent=0 // pred_check
    _
  $region23: #{transformer_forward.39} parent=0 // pred_check_branch
    %99 = sbr.rel (0) target = $region25
  $region24: #{transformer_forward.39} parent=0 // pred_region
    _
  $region25: #{transformer_forward.39} parent=0 // pred_fallthru
    _

// kernel: transformer_forward.40
$region0: #{transformer_forward.40}
  #allocation0 [shape = 'u32[]', space=smem, size = 0x4, offset = 0x4, fixed_abs, tag = 'smem constant byte address 0x4 - core index']
  #allocation1 [shape = 'u32[144,128]{1,0:T(1,128)}', space=vmem, size = 0x12000, scoped, tag = 'internal scratch']
  %s0 = inlined_call_operand.vmem [shape: f32[14,32], index: 0, kind: input, shape index: {}]
  %s1 = inlined_call_operand.vmem [shape: f32[1,32], index: 1, kind: input, shape index: {}]
  %s2 = inlined_call_operand.vmem [shape: f32[1,32], index: 2, kind: input, shape index: {}]
  %s3 = inlined_call_operand.vmem [shape: bf16[32,32], index: 3, kind: input, shape index: {}]
  %s4 = inlined_call_operand.vmem [shape: f32[1,32], index: 4, kind: input, shape index: {}]
  %s5 = inlined_call_operand.vmem [shape: f32[14,32], index: 5, kind: output, shape index: {}]
  %s6 = sld [smem:[#allocation0]]
  $region30: #{transformer_forward.40} parent=0
    _
  %s8 = ssub.s32 1, %s6
  %s9 = scalar_select 0, %s8, %s6
  // Predicated region
  $region2: #{transformer_forward.40} parent=0 // pred_check
    _
  $region3: #{transformer_forward.40} parent=0 // pred_check_branch
    %11 = sbr.rel (0) target = $region5
  $region4: #{transformer_forward.40} parent=0 // pred_region
    _
  $region5: #{transformer_forward.40} parent=0 // pred_fallthru
    _
  // Predicated region
  $region6: #{transformer_forward.40} parent=0 // pred_check
    _
  $region7: #{transformer_forward.40} parent=0 // pred_check_branch
    %13 = sbr.rel (0) target = $region9
  $region8: #{transformer_forward.40} parent=0 // pred_region
    _
  $region9: #{transformer_forward.40} parent=0 // pred_fallthru
    _
  // Predicated region
  $region10: #{transformer_forward.40} parent=0 // pred_check
    _
  $region11: #{transformer_forward.40} parent=0 // pred_check_branch
    %15 = sbr.rel (0) target = $region13
  $region12: #{transformer_forward.40} parent=0 // pred_region
    _
  $region13: #{transformer_forward.40} parent=0 // pred_fallthru
    _
  // Predicated region
  $region14: #{transformer_forward.40} parent=0 // pred_check
    _
  $region15: #{transformer_forward.40} parent=0 // pred_check_branch
    %17 = sbr.rel (0) target = $region17
  $region16: #{transformer_forward.40} parent=0 // pred_region
    _
  $region17: #{transformer_forward.40} parent=0 // pred_fallthru
    _
  // Predicated region
  $region18: #{transformer_forward.40} parent=0 // pred_check
    _
  $region19: #{transformer_forward.40} parent=0 // pred_check_branch
    %19 = sbr.rel (0) target = $region21
  $region20: #{transformer_forward.40} parent=0 // pred_region
    _
  $region21: #{transformer_forward.40} parent=0 // pred_fallthru
    _
  %v21 = vld [vmem:[%s0] sm:$0xff]
  %v22 = vld [vmem:[%s0 + $0x8] sm:$0x3f]
  %v23 = vld [vmem:[%s1] sm:$0x1]
  %v24 = vld [vmem:[%s2] sm:$0x1]
  %vm25 = vcmask 261120
  %v26 = vsel %vm25, %v21, 0.0
  %27 = vadd.xlane.f32.xlu0 %v26
  %v28 = vpop.xlane.xlu0 %27
  %vm29 = vcmask 259072
  %v30 = vsel %vm29, %v22, 0.0
  %31 = vadd.xlane.f32.xlu0 %v30
  %v32 = vpop.xlane.xlu0 %31
  %v33 = vrcp.pop 32.0
  %v34 = vmul.f32 %v28, %v33
  %v35 = vmul.f32 %v32, %v33
  %v36 = vsub.f32 %v21, %v34
  %v37 = vsub.f32 %v22, %v35
  %v38 = vmul.f32 %v36, %v36
  %v39 = vmul.f32 %v37, %v37
  %v40 = vsel %vm25, %v38, 0.0
  %41 = vadd.xlane.f32.xlu0 %v40
  %v42 = vpop.xlane.xlu0 %41
  %v43 = vsel %vm29, %v39, 0.0
  %44 = vadd.xlane.f32.xlu0 %v43
  %v45 = vpop.xlane.xlu0 %44
  %v46 = vmul.f32 %v42, %v33
  %v47 = vmul.f32 %v45, %v33
  %v48 = vadd.f32 %v46, 1e-05
  %v49 = vadd.f32 %v47, 1e-05
  %v50 = vrsqrt.pop %v48
  %v51 = vrsqrt.pop %v49
  %v52 = vmul.f32 %v36, %v50
  %v53 = vmul.f32 %v37, %v51
  %v55 = vlaneseq
  %v56 = vshrl.u32 %v55, 7
  %v57 = vsub.s32 0, %v56
  %v58 = vrot.slane %v23, %v57
  %v60 = vmul.f32 %v52, %v58
  %v61 = vmul.f32 %v53, %v58
  %v63 = vlaneseq
  %v64 = vshrl.u32 %v63, 7
  %v65 = vsub.s32 0, %v64
  %v66 = vrot.slane %v24, %v65
  %v68 = vadd.f32 %v60, %v66
  %v69 = vadd.f32 %v61, %v66
  %v70 = vpack.c.bf16 %v69, %v68
  %v71 = vld [vmem:[%s3] sm:$0xf]
  %v72 = vld [vmem:[%s3 + $0x4] sm:$0xf]
  %v73 = vld [vmem:[%s3 + $0x8] sm:$0xf]
  %v74 = vld [vmem:[%s3 + $0xc] sm:$0xf]
  %v75 = vld [vmem:[%s4] sm:$0x1]
  %v77 = vlaneseq
  %v78 = vshrl.u32 %v77, 7
  %v79 = vsub.s32 0, %v78
  %v80 = vrot.slane %v75, %v79
  %v86 = vunpack.c.l.b16 %v71
  %v87 = vunpack.c.l.b16 %v72
  %v88 = vunpack.c.l.b16 %v73
  %v89 = vunpack.c.l.b16 %v74
  %v90 = vpack.c.b16 %v87, %v86
  %v91 = vpack.c.b16 %v89, %v88
  %v95 = vsel %vm25, %v70, 0
  %97 = vmatprep.subr.bf16.mxu0 0
  %98 = vmatpush1.bf16.msra.mxu0 0
  %99 = vmatprep.subr.bf16.mxu0 0
  %100 = vmatpush1.bf16.msra.mxu0 0
  %101 = vmatprep.subr.bf16.mxu0 0
  %102 = vmatpush1.bf16.msra.mxu0 0
  %103 = vmatprep.subr.bf16.mxu0 0
  %104 = vmatpush1.bf16.msra.mxu0 0
  %105 = vmatprep.subr.bf16.mxu0 0
  %106 = vmatpush1.bf16.msra.mxu0 0
  %107 = vmatprep.subr.bf16.mxu0 0
  %108 = vmatpush1.bf16.msra.mxu0 0
  %109 = vmatprep.subr.bf16.mxu0 0
  %110 = vmatpush1.bf16.msra.mxu0 %v91
  %111 = vmatprep.subr.bf16.mxu0 0
  %112 = vmatpush1.bf16.msra.mxu0 %v90
  %113 = vmatprep.subr.bf16.mxu0 0
  %114 = vmatpush2.bf16.msra.mxu0 0
  %115 = vmatprep.subr.bf16.mxu0 0
  %116 = vmatpush2.bf16.msra.mxu0 0
  %117 = vmatprep.subr.bf16.mxu0 0
  %118 = vmatpush2.bf16.msra.mxu0 0
  %119 = vmatprep.subr.bf16.mxu0 0
  %120 = vmatpush2.bf16.msra.mxu0 0
  %121 = vmatprep.subr.bf16.mxu0 0
  %122 = vmatpush2.bf16.msra.mxu0 0
  %123 = vmatprep.subr.bf16.mxu0 0
  %124 = vmatpush2.bf16.msra.mxu0 0
  %125 = vmatprep.subr.bf16.mxu0 0
  %126 = vmatpush2.bf16.msra.mxu0 0
  %127 = vmatprep.subr.bf16.mxu0 0
  %128 = vmatpush2.bf16.msra.mxu0 0
  %129 = vmatprep.mubr.bf16.mxu0 0
  %130 = vmatmul.mubr.bf16.gmra.mxu0 %v95
  %v131 = vpop.f32.mrf.mxu0
  %v132 = vadd.f32 %v80, %v131
  %v133 = vpop.f32.mrf.mxu0
  %v134 = vpop.f32.mrf.mxu0
  %v135 = vadd.f32 %v80, %v134
  %v136 = vpop.f32.mrf.mxu0
  %137 = vdwg.mxu0
  %138 = vst.msk [vmem:[%s5] sm:$0xff] %vm25, %v132
  %139 = vst.msk [vmem:[%s5 + $0x8] sm:$0x3f] %vm29, %v135
  // Predicated region
  $region22: #{transformer_forward.40} parent=0 // pred_check
    _
  $region23: #{transformer_forward.40} parent=0 // pred_check_branch
    %141 = sbr.rel (0) target = $region25
  $region24: #{transformer_forward.40} parent=0 // pred_region
    _
  $region25: #{transformer_forward.40} parent=0 // pred_fallthru
    _
  // Predicated region
  $region26: #{transformer_forward.40} parent=0 // pred_check
    _
  $region27: #{transformer_forward.40} parent=0 // pred_check_branch
    %143 = sbr.rel (0) target = $region29
  $region28: #{transformer_forward.40} parent=0 // pred_region
    _
  $region29: #{transformer_forward.40} parent=0 // pred_fallthru
    _

// kernel: transformer_forward.37
$region0: #{transformer_forward.37}
  #allocation0 [shape = 'u32[]', space=smem, size = 0x4, offset = 0x4, fixed_abs, tag = 'smem constant byte address 0x4 - core index']
  #allocation1 [shape = 'u32[144,128]{1,0:T(1,128)}', space=vmem, size = 0x12000, scoped, tag = 'internal scratch']
  %s0 = inlined_call_operand.vmem [shape: f32[14,32], index: 0, kind: input, shape index: {}]
  %s1 = inlined_call_operand.vmem [shape: f32[1,32], index: 1, kind: input, shape index: {}]
  %s2 = inlined_call_operand.vmem [shape: f32[1,32], index: 2, kind: input, shape index: {}]
  %s3 = inlined_call_operand.vmem [shape: bf16[32,96], index: 3, kind: input, shape index: {}]
  %s4 = inlined_call_operand.vmem [shape: f32[1,96], index: 4, kind: input, shape index: {}]
  %s5 = inlined_call_operand.vmem [shape: f32[14,32], index: 5, kind: output, shape index: {0}]
  %s6 = inlined_call_operand.vmem [shape: f32[14,64], index: 6, kind: output, shape index: {1}]
  %7 = xla_tuple %s5, %s6
  %s8 = sld [smem:[#allocation0]]
  $region38: #{transformer_forward.37} parent=0
    _
  %s10 = ssub.s32 1, %s8
  %s11 = scalar_select 0, %s10, %s8
  // Predicated region
  $region2: #{transformer_forward.37} parent=0 // pred_check
    _
  $region3: #{transformer_forward.37} parent=0 // pred_check_branch
    %13 = sbr.rel (0) target = $region5
  $region4: #{transformer_forward.37} parent=0 // pred_region
    _
  $region5: #{transformer_forward.37} parent=0 // pred_fallthru
    _
  // Predicated region
  $region6: #{transformer_forward.37} parent=0 // pred_check
    _
  $region7: #{transformer_forward.37} parent=0 // pred_check_branch
    %15 = sbr.rel (0) target = $region9
  $region8: #{transformer_forward.37} parent=0 // pred_region
    _
  $region9: #{transformer_forward.37} parent=0 // pred_fallthru
    _
  // Predicated region
  $region10: #{transformer_forward.37} parent=0 // pred_check
    _
  $region11: #{transformer_forward.37} parent=0 // pred_check_branch
    %17 = sbr.rel (0) target = $region13
  $region12: #{transformer_forward.37} parent=0 // pred_region
    _
  $region13: #{transformer_forward.37} parent=0 // pred_fallthru
    _
  // Predicated region
  $region14: #{transformer_forward.37} parent=0 // pred_check
    _
  $region15: #{transformer_forward.37} parent=0 // pred_check_branch
    %19 = sbr.rel (0) target = $region17
  $region16: #{transformer_forward.37} parent=0 // pred_region
    _
  $region17: #{transformer_forward.37} parent=0 // pred_fallthru
    _
  // Predicated region
  $region18: #{transformer_forward.37} parent=0 // pred_check
    _
  $region19: #{transformer_forward.37} parent=0 // pred_check_branch
    %21 = sbr.rel (0) target = $region21
  $region20: #{transformer_forward.37} parent=0 // pred_region
    _
  $region21: #{transformer_forward.37} parent=0 // pred_fallthru
    _
  %v23 = vld [vmem:[%s0] sm:$0xff]
  %v24 = vld [vmem:[%s0 + $0x8] sm:$0x3f]
  %v25 = vld [vmem:[%s1] sm:$0x1]
  %v26 = vld [vmem:[%s2] sm:$0x1]
  %vm27 = vcmask 261120
  %v28 = vsel %vm27, %v23, 0.0
  %29 = vadd.xlane.f32.xlu0 %v28
  %v30 = vpop.xlane.xlu0 %29
  %vm31 = vcmask 259072
  %v32 = vsel %vm31, %v24, 0.0
  %33 = vadd.xlane.f32.xlu0 %v32
  %v34 = vpop.xlane.xlu0 %33
  %v35 = vrcp.pop 32.0
  %v36 = vmul.f32 %v30, %v35
  %v37 = vmul.f32 %v34, %v35
  %v38 = vsub.f32 %v23, %v36
  %v39 = vsub.f32 %v24, %v37
  %v40 = vmul.f32 %v38, %v38
  %v41 = vmul.f32 %v39, %v39
  %v42 = vsel %vm27, %v40, 0.0
  %43 = vadd.xlane.f32.xlu0 %v42
  %v44 = vpop.xlane.xlu0 %43
  %v45 = vsel %vm31, %v41, 0.0
  %46 = vadd.xlane.f32.xlu0 %v45
  %v47 = vpop.xlane.xlu0 %46
  %v48 = vmul.f32 %v44, %v35
  %v49 = vmul.f32 %v47, %v35
  %v50 = vadd.f32 %v48, 1e-05
  %v51 = vadd.f32 %v49, 1e-05
  %v52 = vrsqrt.pop %v50
  %v53 = vrsqrt.pop %v51
  %v54 = vmul.f32 %v38, %v52
  %v55 = vmul.f32 %v39, %v53
  %v57 = vlaneseq
  %v58 = vshrl.u32 %v57, 7
  %v59 = vsub.s32 0, %v58
  %v60 = vrot.slane %v25, %v59
  %v62 = vmul.f32 %v54, %v60
  %v63 = vmul.f32 %v55, %v60
  %v65 = vlaneseq
  %v66 = vshrl.u32 %v65, 7
  %v67 = vsub.s32 0, %v66
  %v68 = vrot.slane %v26, %v67
  %v70 = vadd.f32 %v62, %v68
  %v71 = vadd.f32 %v63, %v68
  %v72 = vpack.c.bf16 %v71, %v70
  %v73 = vld [vmem:[%s3] sm:$0xf]
  %v74 = vld [vmem:[%s3 + $0x4] sm:$0xf]
  %v75 = vld [vmem:[%s3 + $0x8] sm:$0xf]
  %v76 = vld [vmem:[%s3 + $0xc] sm:$0xf]
  %v77 = vld [vmem:[%s4] sm:$0x1]
  %v79 = vlaneseq
  %v80 = vshrl.u32 %v79, 7
  %v81 = vsub.s32 0, %v80
  %v82 = vrot.slane %v77, %v81
  %v88 = vunpack.c.l.b16 %v73
  %v89 = vunpack.c.l.b16 %v74
  %v90 = vunpack.c.l.b16 %v75
  %v91 = vunpack.c.l.b16 %v76
  %v92 = vpack.c.b16 %v89, %v88
  %v93 = vpack.c.b16 %v91, %v90
  %v97 = vsel %vm27, %v72, 0
  %99 = vmatprep.subr.bf16.mxu0 0
  %100 = vmatpush1.bf16.msra.mxu0 0
  %101 = vmatprep.subr.bf16.mxu0 0
  %102 = vmatpush1.bf16.msra.mxu0 0
  %103 = vmatprep.subr.bf16.mxu0 0
  %104 = vmatpush1.bf16.msra.mxu0 0
  %105 = vmatprep.subr.bf16.mxu0 0
  %106 = vmatpush1.bf16.msra.mxu0 0
  %107 = vmatprep.subr.bf16.mxu0 0
  %108 = vmatpush1.bf16.msra.mxu0 0
  %109 = vmatprep.subr.bf16.mxu0 0
  %110 = vmatpush1.bf16.msra.mxu0 0
  %111 = vmatprep.subr.bf16.mxu0 0
  %112 = vmatpush1.bf16.msra.mxu0 %v93
  %113 = vmatprep.subr.bf16.mxu0 0
  %114 = vmatpush1.bf16.msra.mxu0 %v92
  %115 = vmatprep.subr.bf16.mxu0 0
  %116 = vmatpush2.bf16.msra.mxu0 0
  %117 = vmatprep.subr.bf16.mxu0 0
  %118 = vmatpush2.bf16.msra.mxu0 0
  %119 = vmatprep.subr.bf16.mxu0 0
  %120 = vmatpush2.bf16.msra.mxu0 0
  %121 = vmatprep.subr.bf16.mxu0 0
  %122 = vmatpush2.bf16.msra.mxu0 0
  %123 = vmatprep.subr.bf16.mxu0 0
  %124 = vmatpush2.bf16.msra.mxu0 0
  %125 = vmatprep.subr.bf16.mxu0 0
  %126 = vmatpush2.bf16.msra.mxu0 0
  %127 = vmatprep.subr.bf16.mxu0 0
  %128 = vmatpush2.bf16.msra.mxu0 0
  %129 = vmatprep.subr.bf16.mxu0 0
  %130 = vmatpush2.bf16.msra.mxu0 0
  %131 = vmatprep.mubr.bf16.mxu0 0
  %132 = vmatmul.mubr.bf16.gmra.mxu0 %v97
  %v133 = vpop.f32.mrf.mxu0
  %v134 = vadd.f32 %v82, %v133
  %v135 = vpop.f32.mrf.mxu0
  %v136 = vpop.f32.mrf.mxu0
  %v137 = vadd.f32 %v82, %v136
  %v138 = vpop.f32.mrf.mxu0
  %139 = vdwg.mxu0
  %140 = vst.msk [vmem:[%s5] sm:$0xff] %vm27, %v134
  %141 = vst.msk [vmem:[%s5 + $0x8] sm:$0x3f] %vm31, %v137
  %144 = vrot.lane.b32.xlu0 %v134, 96
  %v145 = vpop.permute.xlu0 %144
  %146 = vrot.lane.b32.xlu0 %v137, 96
  %v147 = vpop.permute.xlu0 %146
  %vm150 = vcmask 523264
  %151 = vst.msk [vmem:[%s6] sm:$0xff] %vm150, %v145
  %vm152 = vcmask 521216
  %153 = vst.msk [vmem:[%s6 + $0x8] sm:$0x3f] %vm152, %v147
  // Predicated region
  $region22: #{transformer_forward.37} parent=0 // pred_check
    _
  $region23: #{transformer_forward.37} parent=0 // pred_check_branch
    %155 = sbr.rel (0) target = $region25
  $region24: #{transformer_forward.37} parent=0 // pred_region
    _
  $region25: #{transformer_forward.37} parent=0 // pred_fallthru
    _
  // Predicated region
  $region26: #{transformer_forward.37} parent=0 // pred_check
    _
  $region27: #{transformer_forward.37} parent=0 // pred_check_branch
    %157 = sbr.rel (0) target = $region29
  $region28: #{transformer_forward.37} parent=0 // pred_region
    _
  $region29: #{transformer_forward.37} parent=0 // pred_fallthru
    _
  // Predicated region
  $region30: #{transformer_forward.37} parent=0 // pred_check
    _
  $region31: #{transformer_forward.37} parent=0 // pred_check_branch
    %159 = sbr.rel (0) target = $region33
  $region32: #{transformer_forward.37} parent=0 // pred_region
    _
  $region33: #{transformer_forward.37} parent=0 // pred_fallthru
    _
  // Predicated region
  $region34: #{transformer_forward.37} parent=0 // pred_check
    _
  $region35: #{transformer_forward.37} parent=0 // pred_check_branch
    %161 = sbr.rel (0) target = $region37
  $region36: #{transformer_forward.37} parent=0 // pred_region
    _
  $region37: #{transformer_forward.37} parent=0 // pred_fallthru
    _

// kernel: transformer_forward.38
$region0: #{transformer_forward.38}
  #allocation0 [shape = 'u32[]', space=smem, size = 0x4, offset = 0x4, fixed_abs, tag = 'smem constant byte address 0x4 - core index']
  #allocation1 [shape = 'u32[144,128]{1,0:T(1,128)}', space=vmem, size = 0x12000, scoped, tag = 'internal scratch']
  %s0 = inlined_call_operand.vmem [shape: f32[2,7,32], index: 0, kind: input, shape index: {}]
  %s1 = inlined_call_operand.vmem [shape: f32[2,7,64], index: 1, kind: input, shape index: {}]
  %s2 = inlined_call_operand.vmem [shape: f32[2,7,32], index: 2, kind: output, shape index: {}]
  %s3 = sld [smem:[#allocation0]]
  $region41: #{transformer_forward.38} parent=0
    _
  %s5 = ssub.s32 1, %s3
  %s6 = scalar_select 0, %s5, %s3
  loop: start=0, step=1, limit=4
  $region2: #{transformer_forward.38} parent=0 // loop_pre_header
    _
  $region3: #{transformer_forward.38} parent=0 // loop_header
    %s8 = sphi 0, %s12
    %p9 = scmp.ge.s32.totalorder %s8, 4
    %s18 = sphi 0, %s20
    %s21 = sphi 0, %s18
    %s22 = sphi 0, %s21
    %s38 = sphi 0, %s22
    %s44 = sphi 0, %s46
    %s47 = sphi 0, %s44
    %s48 = sphi 0, %s47
    %s64 = sphi 0, %s48
    %s70 = sphi 0, %s72
    %s73 = sphi 0, %s70
    %s74 = sphi 0, %s73
    %s90 = sphi 0, %s74
  $region4: #{transformer_forward.38} parent=0 // loop_header_branch
    %11 = sbr.rel (%p9) target = $region8
  $region5: #{transformer_forward.38} parent=0 // loop_body
    %s13 = ssub.s32 %s8, 1
    %s14 = ssub.s32 %s8, 2
    %s15 = sadd.s32 %s8, 1
    %s16 = ssub.s32 %s8, %s15
    %p17 = scmp.eq.s32.totalorder %s16, 0
    %s19 = sadd.s32 %s18, 1
    %s20 = scalar_select %p17, %s18, %s19
    %p23 = pneg %p17
    %p24 = scmp.eq.s32.totalorder %s8, 1
    %p25 = por %p23, %p24
    %p26 = scmp.ne.s32.totalorder %s18, %s21
    %p27 = scmp.eq.s32.totalorder %s8, 0
    %p28 = por %p26, %p27
    %p29 = scmp.ne.s32.totalorder %s18, %s21
    %p30 = scmp.eq.s32.totalorder %s13, 1
    %p31 = por %p29, %p30
    %p32 = scmp.ne.s32.totalorder %s21, %s22
    %p33 = scmp.eq.s32.totalorder %s13, 0
    %p34 = por %p32, %p33
    %p35 = scmp.ne.s32.totalorder %s21, %s22
    %p36 = scmp.eq.s32.totalorder %s14, 1
    %p37 = por %p35, %p36
    %p39 = scmp.ne.s32.totalorder %s22, %s38
    %p40 = scmp.eq.s32.totalorder %s14, 0
    %p41 = por %p39, %p40
    %s42 = ssub.s32 %s8, %s15
    %p43 = scmp.eq.s32.totalorder %s42, 0
    %s45 = sadd.s32 %s44, 1
    %s46 = scalar_select %p43, %s44, %s45
    %p49 = pneg %p43
    %p50 = scmp.eq.s32.totalorder %s8, 1
    %p51 = por %p49, %p50
    %p52 = scmp.ne.s32.totalorder %s44, %s47
    %p53 = scmp.eq.s32.totalorder %s8, 0
    %p54 = por %p52, %p53
    %p55 = scmp.ne.s32.totalorder %s44, %s47
    %p56 = scmp.eq.s32.totalorder %s13, 1
    %p57 = por %p55, %p56
    %p58 = scmp.ne.s32.totalorder %s47, %s48
    %p59 = scmp.eq.s32.totalorder %s13, 0
    %p60 = por %p58, %p59
    %p61 = scmp.ne.s32.totalorder %s47, %s48
    %p62 = scmp.eq.s32.totalorder %s14, 1
    %p63 = por %p61, %p62
    %p65 = scmp.ne.s32.totalorder %s48, %s64
    %p66 = scmp.eq.s32.totalorder %s14, 0
    %p67 = por %p65, %p66
    %s68 = ssub.s32 %s8, %s15
    %p69 = scmp.eq.s32.totalorder %s68, 0
    %s71 = sadd.s32 %s70, 1
    %s72 = scalar_select %p69, %s70, %s71
    %p75 = pneg %p69
    %p76 = scmp.eq.s32.totalorder %s8, 1
    %p77 = por %p75, %p76
    %p78 = scmp.ne.s32.totalorder %s70, %s73
    %p79 = scmp.eq.s32.totalorder %s8, 0
    %p80 = por %p78, %p79
    %p81 = scmp.ne.s32.totalorder %s70, %s73
    %p82 = scmp.eq.s32.totalorder %s13, 1
    %p83 = por %p81, %p82
    %p84 = scmp.ne.s32.totalorder %s73, %s74
    %p85 = scmp.eq.s32.totalorder %s13, 0
    %p86 = por %p84, %p85
    %p87 = scmp.ne.s32.totalorder %s73, %s74
    %p88 = scmp.eq.s32.totalorder %s14, 1
    %p89 = por %p87, %p88
    %p91 = scmp.ne.s32.totalorder %s74, %s90
    %p92 = scmp.eq.s32.totalorder %s14, 0
    %p93 = por %p91, %p92
    %p94 = scmp.le.s32.totalorder 1, %s8
    %p95 = scmp.lt.s32.totalorder %s8, 3
    %p96 = pnand %p94, %p95
    %p97 = pneg %p96
    // Predicated region
    $region9: #{transformer_forward.38} parent=5 // pred_check
      _
    $region10: #{transformer_forward.38} parent=5 // pred_check_branch
      %99 = sbr.rel (%p96) target = $region12
    $region11: #{transformer_forward.38} parent=5 // pred_region
      %s100 = ssub.s32 %s8, 1
    $region12: #{transformer_forward.38} parent=5 // pred_fallthru
      _
    %p101 = scmp.lt.s32.totalorder %s8, 2
    // Predicated region
    $region13: #{transformer_forward.38} parent=5 // pred_check
      %p102 = pneg %p101
    $region14: #{transformer_forward.38} parent=5 // pred_check_branch
      %104 = sbr.rel (%p102) target = $region16
    $region15: #{transformer_forward.38} parent=5 // pred_region
      // Predicated region
      $region17: #{transformer_forward.38} parent=15 // pred_check
        %p105 = pneg %p28
      $region18: #{transformer_forward.38} parent=15 // pred_check_branch
        %107 = sbr.rel (%p105) target = $region20
      $region19: #{transformer_forward.38} parent=15 // pred_region
        %p108 = scmp.lt.s32.totalorder %s8, 1
        %s109 = scalar_select %p108, %s8, 1
        %s110 = smul.addr %s109, 8
        %s111 = scalar_lea.vmem %s0, %s110
      $region20: #{transformer_forward.38} parent=15 // pred_fallthru
        _
      // Predicated region
      $region21: #{transformer_forward.38} parent=15 // pred_check
        %p112 = pneg %p54
      $region22: #{transformer_forward.38} parent=15 // pred_check_branch
        %114 = sbr.rel (%p112) target = $region24
      $region23: #{transformer_forward.38} parent=15 // pred_region
        %p115 = scmp.lt.s32.totalorder %s8, 1
        %s116 = scalar_select %p115, %s8, 1
        %s117 = smul.addr %s116, 8
        %s118 = scalar_lea.vmem %s1, %s117
      $region24: #{transformer_forward.38} parent=15 // pred_fallthru
        _
    $region16: #{transformer_forward.38} parent=5 // pred_fallthru
      _
    %p119 = scmp.le.s32.totalorder 1, %s8
    %p120 = scmp.lt.s32.totalorder %s8, 3
    %p121 = pnand %p119, %p120
    %p122 = pneg %p121
    // Predicated region
    $region25: #{transformer_forward.38} parent=5 // pred_check
      _
    $region26: #{transformer_forward.38} parent=5 // pred_check_branch
      %124 = sbr.rel (%p121) target = $region28
    $region27: #{transformer_forward.38} parent=5 // pred_region
      %s125 = ssub.s32 %s8, 1
      %p126 = scmp.lt.s32.totalorder %s13, 1
      %s127 = scalar_select %p126, %s13, 1
      %s128 = smul.addr %s127, 8
      %s129 = scalar_lea.vmem %s0, %s128
      %p130 = pneg %p34
      %p131 = pneg %p31
      %p132 = scmp.lt.s32.totalorder %s13, 1
      %s133 = scalar_select %p132, %s13, 1
      %s134 = smul.addr %s133, 8
      %s135 = scalar_lea.vmem %s1, %s134
      %p136 = pneg %p60
      %p137 = pneg %p57
      %p138 = pneg %p86
      %p139 = pneg %p83
      %p140 = scmp.lt.s32.totalorder %s13, 1
      %s141 = scalar_select %p140, %s13, 1
      %s142 = smul.addr %s141, 8
      %s143 = scalar_lea.vmem %s2, %s142
      %p144 = scmp.lt.s32.totalorder %s13, 1
      %s145 = scalar_select %p144, %s13, 1
      %s146 = smul.addr %s145, 8
      %s147 = scalar_lea.vmem %s0, %s146
      %p148 = scmp.lt.s32.totalorder %s13, 1
      %s149 = scalar_select %p148, %s13, 1
      %s150 = smul.addr %s149, 8
      %s151 = scalar_lea.vmem %s1, %s150
      %p152 = scmp.lt.s32.totalorder %s13, 1
      %s153 = scalar_select %p152, %s13, 1
      %s154 = smul.addr %s153, 8
      %s155 = scalar_lea.vmem %s2, %s154
      %v157 = vld [vmem:[%s147] sm:$0x7f]
      %v158 = vld [vmem:[%s151] sm:$0x7f]
      %v159 = vmul.f32 %v157, 0.35355338
      %v160 = vpack.c.bf16 %v159, %v159
      %v161 = vpack.c.bf16 %v158, %v158
      %v162 = vlaneseq
      %v163 = vshrl.u32 %v162, 7
      %v164 = vlaneseq
      %v165 = vand.u32 %v164, 127
      %vm166 = vcmp.le.s32.totalorder %v165, %v163
      %vm167 = vcmask 64512
      %v169 = vsel %vm167, %v160, 0
      %v172 = vsel %vm167, %v161, 0
      %174 = vmatprep.subr.bf16.mxu0 0
      %175 = vmatpush1.bf16.xpose.msra.mxu0 0
      %176 = vmatprep.subr.bf16.mxu0 0
      %177 = vmatpush1.bf16.xpose.msra.mxu0 0
      %178 = vmatprep.subr.bf16.mxu0 0
      %179 = vmatpush1.bf16.xpose.msra.mxu0 0
      %180 = vmatprep.subr.bf16.mxu0 0
      %181 = vmatpush1.bf16.xpose.msra.mxu0 0
      %182 = vmatprep.subr.bf16.mxu0 0
      %183 = vmatpush1.bf16.xpose.msra.mxu0 0
      %184 = vmatprep.subr.bf16.mxu0 0
      %185 = vmatpush1.bf16.xpose.msra.mxu0 0
      %186 = vmatprep.subr.bf16.mxu0 0
      %187 = vmatpush1.bf16.xpose.msra.mxu0 0
      %188 = vmatprep.subr.bf16.mxu0 0
      %189 = vmatpush1.bf16.xpose.msra.mxu0 %v172
      %190 = vmatprep.subr.bf16.mxu0 0
      %191 = vmatpush2.bf16.xpose.msra.mxu0 0
      %192 = vmatprep.subr.bf16.mxu0 0
      %193 = vmatpush2.bf16.xpose.msra.mxu0 0
      %194 = vmatprep.subr.bf16.mxu0 0
      %195 = vmatpush2.bf16.xpose.msra.mxu0 0
      %196 = vmatprep.subr.bf16.mxu0 0
      %197 = vmatpush2.bf16.xpose.msra.mxu0 0
      %198 = vmatprep.subr.bf16.mxu0 0
      %199 = vmatpush2.bf16.xpose.msra.mxu0 0
      %200 = vmatprep.subr.bf16.mxu0 0
      %201 = vmatpush2.bf16.xpose.msra.mxu0 0
      %202 = vmatprep.subr.bf16.mxu0 0
      %203 = vmatpush2.bf16.xpose.msra.mxu0 0
      %204 = vmatprep.subr.bf16.mxu0 0
      %205 = vmatpush2.bf16.xpose.msra.mxu0 0
      %206 = vmatprep.mubr.bf16.mxu0 0
      %207 = vmatmul.mubr.bf16.gmra.mxu0 %v169
      %v208 = vpop.f32.mrf.mxu0
      %v209 = vadd.f32 0.0, %v208
      %v210 = vpop.f32.mrf.mxu0
      %v211 = vpop.f32.mrf.mxu0
      %v212 = vpop.f32.mrf.mxu0
      %213 = vdwg.mxu0
      %v214 = vsel %vm166, %v209, -1e+09
      %vm215 = vcmask 55296
      %v216 = vsel %vm215, %v214, -inf
      %217 = vmax.xlane.f32.xlu0 %v216
      %v218 = vpop.xlane.xlu0 %217
      %v219 = vsub.f32 %v214, %v218
      %v220 = vmul.f32 %v219, 1.442695
      %v221 = vpow.pop %v220
      %v222 = vsel %vm215, %v221, 0.0
      %223 = vadd.xlane.f32.xlu0 %v222
      %v224 = vpop.xlane.xlu0 %223
      %v225 = vrcp.pop %v224
      %v226 = vpack.c.bf16 %v221, %v221
      %228 = vrot.lane.b32.xlu0 %v161, 96
      %v229 = vpop.permute.xlu0 %228
      %vm230 = vcmask 56320
      %v232 = vsel %vm230, %v226, 0
      %vm234 = vcmask 1042432
      %vm235 = vcmask 1043456
      %v236 = vsel %vm234, 4294967295, 65535
      %v237 = vsel %vm235, %v236, 0
      %v239 = vand.u32 %v229, %v237
      %241 = vmatprep.subr.bf16.mxu0 0
      %242 = vmatpush1.bf16.msra.mxu0 0
      %243 = vmatprep.subr.bf16.mxu0 0
      %244 = vmatpush1.bf16.msra.mxu0 0
      %245 = vmatprep.subr.bf16.mxu0 0
      %246 = vmatpush1.bf16.msra.mxu0 0
      %247 = vmatprep.subr.bf16.mxu0 0
      %248 = vmatpush1.bf16.msra.mxu0 0
      %249 = vmatprep.subr.bf16.mxu0 0
      %250 = vmatpush1.bf16.msra.mxu0 0
      %251 = vmatprep.subr.bf16.mxu0 0
      %252 = vmatpush1.bf16.msra.mxu0 0
      %253 = vmatprep.subr.bf16.mxu0 0
      %254 = vmatpush1.bf16.msra.mxu0 0
      %255 = vmatprep.subr.bf16.mxu0 0
      %256 = vmatpush1.bf16.msra.mxu0 %v239
      %257 = vmatprep.subr.bf16.mxu0 0
      %258 = vmatpush2.bf16.msra.mxu0 0
      %259 = vmatprep.subr.bf16.mxu0 0
      %260 = vmatpush2.bf16.msra.mxu0 0
      %261 = vmatprep.subr.bf16.mxu0 0
      %262 = vmatpush2.bf16.msra.mxu0 0
      %263 = vmatprep.subr.bf16.mxu0 0
      %264 = vmatpush2.bf16.msra.mxu0 0
      %265 = vmatprep.subr.bf16.mxu0 0
      %266 = vmatpush2.bf16.msra.mxu0 0
      %267 = vmatprep.subr.bf16.mxu0 0
      %268 = vmatpush2.bf16.msra.mxu0 0
      %269 = vmatprep.subr.bf16.mxu0 0
      %270 = vmatpush2.bf16.msra.mxu0 0
      %271 = vmatprep.subr.bf16.mxu0 0
      %272 = vmatpush2.bf16.msra.mxu0 0
      %273 = vmatprep.mubr.bf16.mxu0 0
      %274 = vmatmul.mubr.bf16.gmra.mxu0 %v232
      %v275 = vpop.f32.mrf.mxu0
      %v276 = vadd.f32 0.0, %v275
      %v277 = vpop.f32.mrf.mxu0
      %v278 = vpop.f32.mrf.mxu0
      %v279 = vpop.f32.mrf.mxu0
      %280 = vdwg.mxu0
      %v281 = vmul.f32 %v276, %v225
      %283 = vrot.lane.b32.xlu0 %v160, 120
      %v284 = vpop.permute.xlu0 %283
      %285 = vrot.lane.b32.xlu0 %v161, 120
      %v286 = vpop.permute.xlu0 %285
      %v288 = vsel %vm167, %v284, 0
      %v291 = vsel %vm167, %v286, 0
      %293 = vmatprep.subr.bf16.mxu0 0
      %294 = vmatpush1.bf16.xpose.msra.mxu0 0
      %295 = vmatprep.subr.bf16.mxu0 0
      %296 = vmatpush1.bf16.xpose.msra.mxu0 0
      %297 = vmatprep.subr.bf16.mxu0 0
      %298 = vmatpush1.bf16.xpose.msra.mxu0 0
      %299 = vmatprep.subr.bf16.mxu0 0
      %300 = vmatpush1.bf16.xpose.msra.mxu0 0
      %301 = vmatprep.subr.bf16.mxu0 0
      %302 = vmatpush1.bf16.xpose.msra.mxu0 0
      %303 = vmatprep.subr.bf16.mxu0 0
      %304 = vmatpush1.bf16.xpose.msra.mxu0 0
      %305 = vmatprep.subr.bf16.mxu0 0
      %306 = vmatpush1.bf16.xpose.msra.mxu0 0
      %307 = vmatprep.subr.bf16.mxu0 0
      %308 = vmatpush1.bf16.xpose.msra.mxu0 %v291
      %309 = vmatprep.subr.bf16.mxu0 0
      %310 = vmatpush2.bf16.xpose.msra.mxu0 0
      %311 = vmatprep.subr.bf16.mxu0 0
      %312 = vmatpush2.bf16.xpose.msra.mxu0 0
      %313 = vmatprep.subr.bf16.mxu0 0
      %314 = vmatpush2.bf16.xpose.msra.mxu0 0
      %315 = vmatprep.subr.bf16.mxu0 0
      %316 = vmatpush2.bf16.xpose.msra.mxu0 0
      %317 = vmatprep.subr.bf16.mxu0 0
      %318 = vmatpush2.bf16.xpose.msra.mxu0 0
      %319 = vmatprep.subr.bf16.mxu0 0
      %320 = vmatpush2.bf16.xpose.msra.mxu0 0
      %321 = vmatprep.subr.bf16.mxu0 0
      %322 = vmatpush2.bf16.xpose.msra.mxu0 0
      %323 = vmatprep.subr.bf16.mxu0 0
      %324 = vmatpush2.bf16.xpose.msra.mxu0 0
      %325 = vmatprep.mubr.bf16.mxu0 0
      %326 = vmatmul.mubr.bf16.gmra.mxu0 %v288
      %v327 = vpop.f32.mrf.mxu0
      %v328 = vadd.f32 0.0, %v327
      %v329 = vpop.f32.mrf.mxu0
      %v330 = vpop.f32.mrf.mxu0
      %v331 = vpop.f32.mrf.mxu0
      %332 = vdwg.mxu0
      %v333 = vsel %vm166, %v328, -1e+09
      %v334 = vsel %vm215, %v333, -inf
      %335 = vmax.xlane.f32.xlu0 %v334
      %v336 = vpop.xlane.xlu0 %335
      %v337 = vsub.f32 %v333, %v336
      %v338 = vmul.f32 %v337, 1.442695
      %v339 = vpow.pop %v338
      %v340 = vsel %vm215, %v339, 0.0
      %341 = vadd.xlane.f32.xlu0 %v340
      %v342 = vpop.xlane.xlu0 %341
      %v343 = vrcp.pop %v342
      %v344 = vpack.c.bf16 %v339, %v339
      %345 = vrot.lane.b32.xlu0 %v161, 88
      %v346 = vpop.permute.xlu0 %345
      %v348 = vsel %vm230, %v344, 0
      %v351 = vand.u32 %v346, %v237
      %353 = vmatprep.subr.bf16.mxu0 0
      %354 = vmatpush1.bf16.msra.mxu0 0
      %355 = vmatprep.subr.bf16.mxu0 0
      %356 = vmatpush1.bf16.msra.mxu0 0
      %357 = vmatprep.subr.bf16.mxu0 0
      %358 = vmatpush1.bf16.msra.mxu0 0
      %359 = vmatprep.subr.bf16.mxu0 0
      %360 = vmatpush1.bf16.msra.mxu0 0
      %361 = vmatprep.subr.bf16.mxu0 0
      %362 = vmatpush1.bf16.msra.mxu0 0
      %363 = vmatprep.subr.bf16.mxu0 0
      %364 = vmatpush1.bf16.msra.mxu0 0
      %365 = vmatprep.subr.bf16.mxu0 0
      %366 = vmatpush1.bf16.msra.mxu0 0
      %367 = vmatprep.subr.bf16.mxu0 0
      %368 = vmatpush1.bf16.msra.mxu0 %v351
      %369 = vmatprep.subr.bf16.mxu0 0
      %370 = vmatpush2.bf16.msra.mxu0 0
      %371 = vmatprep.subr.bf16.mxu0 0
      %372 = vmatpush2.bf16.msra.mxu0 0
      %373 = vmatprep.subr.bf16.mxu0 0
      %374 = vmatpush2.bf16.msra.mxu0 0
      %375 = vmatprep.subr.bf16.mxu0 0
      %376 = vmatpush2.bf16.msra.mxu0 0
      %377 = vmatprep.subr.bf16.mxu0 0
      %378 = vmatpush2.bf16.msra.mxu0 0
      %379 = vmatprep.subr.bf16.mxu0 0
      %380 = vmatpush2.bf16.msra.mxu0 0
      %381 = vmatprep.subr.bf16.mxu0 0
      %382 = vmatpush2.bf16.msra.mxu0 0
      %383 = vmatprep.subr.bf16.mxu0 0
      %384 = vmatpush2.bf16.msra.mxu0 0
      %385 = vmatprep.mubr.bf16.mxu0 0
      %386 = vmatmul.mubr.bf16.gmra.mxu0 %v348
      %v387 = vpop.f32.mrf.mxu0
      %v388 = vadd.f32 0.0, %v387
      %v389 = vpop.f32.mrf.mxu0
      %v390 = vpop.f32.mrf.mxu0
      %v391 = vpop.f32.mrf.mxu0
      %392 = vdwg.mxu0
      %v393 = vmul.f32 %v388, %v343
      %394 = vrot.lane.b32.xlu0 %v160, 112
      %v395 = vpop.permute.xlu0 %394
      %396 = vrot.lane.b32.xlu0 %v161, 112
      %v397 = vpop.permute.xlu0 %396
      %v399 = vsel %vm167, %v395, 0
      %v402 = vsel %vm167, %v397, 0
      %404 = vmatprep.subr.bf16.mxu0 0
      %405 = vmatpush1.bf16.xpose.msra.mxu0 0
      %406 = vmatprep.subr.bf16.mxu0 0
      %407 = vmatpush1.bf16.xpose.msra.mxu0 0
      %408 = vmatprep.subr.bf16.mxu0 0
      %409 = vmatpush1.bf16.xpose.msra.mxu0 0
      %410 = vmatprep.subr.bf16.mxu0 0
      %411 = vmatpush1.bf16.xpose.msra.mxu0 0
      %412 = vmatprep.subr.bf16.mxu0 0
      %413 = vmatpush1.bf16.xpose.msra.mxu0 0
      %414 = vmatprep.subr.bf16.mxu0 0
      %415 = vmatpush1.bf16.xpose.msra.mxu0 0
      %416 = vmatprep.subr.bf16.mxu0 0
      %417 = vmatpush1.bf16.xpose.msra.mxu0 0
      %418 = vmatprep.subr.bf16.mxu0 0
      %419 = vmatpush1.bf16.xpose.msra.mxu0 %v402
      %420 = vmatprep.subr.bf16.mxu0 0
      %421 = vmatpush2.bf16.xpose.msra.mxu0 0
      %422 = vmatprep.subr.bf16.mxu0 0
      %423 = vmatpush2.bf16.xpose.msra.mxu0 0
      %424 = vmatprep.subr.bf16.mxu0 0
      %425 = vmatpush2.bf16.xpose.msra.mxu0 0
      %426 = vmatprep.subr.bf16.mxu0 0
      %427 = vmatpush2.bf16.xpose.msra.mxu0 0
      %428 = vmatprep.subr.bf16.mxu0 0
      %429 = vmatpush2.bf16.xpose.msra.mxu0 0
      %430 = vmatprep.subr.bf16.mxu0 0
      %431 = vmatpush2.bf16.xpose.msra.mxu0 0
      %432 = vmatprep.subr.bf16.mxu0 0
      %433 = vmatpush2.bf16.xpose.msra.mxu0 0
      %434 = vmatprep.subr.bf16.mxu0 0
      %435 = vmatpush2.bf16.xpose.msra.mxu0 0
      %436 = vmatprep.mubr.bf16.mxu0 0
      %437 = vmatmul.mubr.bf16.gmra.mxu0 %v399
      %v438 = vpop.f32.mrf.mxu0
      %v439 = vadd.f32 0.0, %v438
      %v440 = vpop.f32.mrf.mxu0
      %v441 = vpop.f32.mrf.mxu0
      %v442 = vpop.f32.mrf.mxu0
      %443 = vdwg.mxu0
      %v444 = vsel %vm166, %v439, -1e+09
      %v445 = vsel %vm215, %v444, -inf
      %446 = vmax.xlane.f32.xlu0 %v445
      %v447 = vpop.xlane.xlu0 %446
      %v448 = vsub.f32 %v444, %v447
      %v449 = vmul.f32 %v448, 1.442695
      %v450 = vpow.pop %v449
      %v451 = vsel %vm215, %v450, 0.0
      %452 = vadd.xlane.f32.xlu0 %v451
      %v453 = vpop.xlane.xlu0 %452
      %v454 = vrcp.pop %v453
      %v455 = vpack.c.bf16 %v450, %v450
      %456 = vrot.lane.b32.xlu0 %v161, 80
      %v457 = vpop.permute.xlu0 %456
      %v459 = vsel %vm230, %v455, 0
      %v462 = vand.u32 %v457, %v237
      %464 = vmatprep.subr.bf16.mxu0 0
      %465 = vmatpush1.bf16.msra.mxu0 0
      %466 = vmatprep.subr.bf16.mxu0 0
      %467 = vmatpush1.bf16.msra.mxu0 0
      %468 = vmatprep.subr.bf16.mxu0 0
      %469 = vmatpush1.bf16.msra.mxu0 0
      %470 = vmatprep.subr.bf16.mxu0 0
      %471 = vmatpush1.bf16.msra.mxu0 0
      %472 = vmatprep.subr.bf16.mxu0 0
      %473 = vmatpush1.bf16.msra.mxu0 0
      %474 = vmatprep.subr.bf16.mxu0 0
      %475 = vmatpush1.bf16.msra.mxu0 0
      %476 = vmatprep.subr.bf16.mxu0 0
      %477 = vmatpush1.bf16.msra.mxu0 0
      %478 = vmatprep.subr.bf16.mxu0 0
      %479 = vmatpush1.bf16.msra.mxu0 %v462
      %480 = vmatprep.subr.bf16.mxu0 0
      %481 = vmatpush2.bf16.msra.mxu0 0
      %482 = vmatprep.subr.bf16.mxu0 0
      %483 = vmatpush2.bf16.msra.mxu0 0
      %484 = vmatprep.subr.bf16.mxu0 0
      %485 = vmatpush2.bf16.msra.mxu0 0
      %486 = vmatprep.subr.bf16.mxu0 0
      %487 = vmatpush2.bf16.msra.mxu0 0
      %488 = vmatprep.subr.bf16.mxu0 0
      %489 = vmatpush2.bf16.msra.mxu0 0
      %490 = vmatprep.subr.bf16.mxu0 0
      %491 = vmatpush2.bf16.msra.mxu0 0
      %492 = vmatprep.subr.bf16.mxu0 0
      %493 = vmatpush2.bf16.msra.mxu0 0
      %494 = vmatprep.subr.bf16.mxu0 0
      %495 = vmatpush2.bf16.msra.mxu0 0
      %496 = vmatprep.mubr.bf16.mxu0 0
      %497 = vmatmul.mubr.bf16.gmra.mxu0 %v459
      %v498 = vpop.f32.mrf.mxu0
      %v499 = vadd.f32 0.0, %v498
      %v500 = vpop.f32.mrf.mxu0
      %v501 = vpop.f32.mrf.mxu0
      %v502 = vpop.f32.mrf.mxu0
      %503 = vdwg.mxu0
      %v504 = vmul.f32 %v499, %v454
      %505 = vrot.lane.b32.xlu0 %v160, 104
      %v506 = vpop.permute.xlu0 %505
      %507 = vrot.lane.b32.xlu0 %v161, 104
      %v508 = vpop.permute.xlu0 %507
      %v510 = vsel %vm167, %v506, 0
      %v513 = vsel %vm167, %v508, 0
      %515 = vmatprep.subr.bf16.mxu0 0
      %516 = vmatpush1.bf16.xpose.msra.mxu0 0
      %517 = vmatprep.subr.bf16.mxu0 0
      %518 = vmatpush1.bf16.xpose.msra.mxu0 0
      %519 = vmatprep.subr.bf16.mxu0 0
      %520 = vmatpush1.bf16.xpose.msra.mxu0 0
      %521 = vmatprep.subr.bf16.mxu0 0
      %522 = vmatpush1.bf16.xpose.msra.mxu0 0
      %523 = vmatprep.subr.bf16.mxu0 0
      %524 = vmatpush1.bf16.xpose.msra.mxu0 0
      %525 = vmatprep.subr.bf16.mxu0 0
      %526 = vmatpush1.bf16.xpose.msra.mxu0 0
      %527 = vmatprep.subr.bf16.mxu0 0
      %528 = vmatpush1.bf16.xpose.msra.mxu0 0
      %529 = vmatprep.subr.bf16.mxu0 0
      %530 = vmatpush1.bf16.xpose.msra.mxu0 %v513
      %531 = vmatprep.subr.bf16.mxu0 0
      %532 = vmatpush2.bf16.xpose.msra.mxu0 0
      %533 = vmatprep.subr.bf16.mxu0 0
      %534 = vmatpush2.bf16.xpose.msra.mxu0 0
      %535 = vmatprep.subr.bf16.mxu0 0
      %536 = vmatpush2.bf16.xpose.msra.mxu0 0
      %537 = vmatprep.subr.bf16.mxu0 0
      %538 = vmatpush2.bf16.xpose.msra.mxu0 0
      %539 = vmatprep.subr.bf16.mxu0 0
      %540 = vmatpush2.bf16.xpose.msra.mxu0 0
      %541 = vmatprep.subr.bf16.mxu0 0
      %542 = vmatpush2.bf16.xpose.msra.mxu0 0
      %543 = vmatprep.subr.bf16.mxu0 0
      %544 = vmatpush2.bf16.xpose.msra.mxu0 0
      %545 = vmatprep.subr.bf16.mxu0 0
      %546 = vmatpush2.bf16.xpose.msra.mxu0 0
      %547 = vmatprep.mubr.bf16.mxu0 0
      %548 = vmatmul.mubr.bf16.gmra.mxu0 %v510
      %v549 = vpop.f32.mrf.mxu0
      %v550 = vadd.f32 0.0, %v549
      %v551 = vpop.f32.mrf.mxu0
      %v552 = vpop.f32.mrf.mxu0
      %v553 = vpop.f32.mrf.mxu0
      %554 = vdwg.mxu0
      %v555 = vsel %vm166, %v550, -1e+09
      %v556 = vsel %vm215, %v555, -inf
      %557 = vmax.xlane.f32.xlu0 %v556
      %v558 = vpop.xlane.xlu0 %557
      %v559 = vsub.f32 %v555, %v558
      %v560 = vmul.f32 %v559, 1.442695
      %v561 = vpow.pop %v560
      %v562 = vsel %vm215, %v561, 0.0
      %563 = vadd.xlane.f32.xlu0 %v562
      %v564 = vpop.xlane.xlu0 %563
      %v565 = vrcp.pop %v564
      %v566 = vpack.c.bf16 %v561, %v561
      %567 = vrot.lane.b32.xlu0 %v161, 72
      %v568 = vpop.permute.xlu0 %567
      %v570 = vsel %vm230, %v566, 0
      %v573 = vand.u32 %v568, %v237
      %575 = vmatprep.subr.bf16.mxu0 0
      %576 = vmatpush1.bf16.msra.mxu0 0
      %577 = vmatprep.subr.bf16.mxu0 0
      %578 = vmatpush1.bf16.msra.mxu0 0
      %579 = vmatprep.subr.bf16.mxu0 0
      %580 = vmatpush1.bf16.msra.mxu0 0
      %581 = vmatprep.subr.bf16.mxu0 0
      %582 = vmatpush1.bf16.msra.mxu0 0
      %583 = vmatprep.subr.bf16.mxu0 0
      %584 = vmatpush1.bf16.msra.mxu0 0
      %585 = vmatprep.subr.bf16.mxu0 0
      %586 = vmatpush1.bf16.msra.mxu0 0
      %587 = vmatprep.subr.bf16.mxu0 0
      %588 = vmatpush1.bf16.msra.mxu0 0
      %589 = vmatprep.subr.bf16.mxu0 0
      %590 = vmatpush1.bf16.msra.mxu0 %v573
      %591 = vmatprep.subr.bf16.mxu0 0
      %592 = vmatpush2.bf16.msra.mxu0 0
      %593 = vmatprep.subr.bf16.mxu0 0
      %594 = vmatpush2.bf16.msra.mxu0 0
      %595 = vmatprep.subr.bf16.mxu0 0
      %596 = vmatpush2.bf16.msra.mxu0 0
      %597 = vmatprep.subr.bf16.mxu0 0
      %598 = vmatpush2.bf16.msra.mxu0 0
      %599 = vmatprep.subr.bf16.mxu0 0
      %600 = vmatpush2.bf16.msra.mxu0 0
      %601 = vmatprep.subr.bf16.mxu0 0
      %602 = vmatpush2.bf16.msra.mxu0 0
      %603 = vmatprep.subr.bf16.mxu0 0
      %604 = vmatpush2.bf16.msra.mxu0 0
      %605 = vmatprep.subr.bf16.mxu0 0
      %606 = vmatpush2.bf16.msra.mxu0 0
      %607 = vmatprep.mubr.bf16.mxu0 0
      %608 = vmatmul.mubr.bf16.gmra.mxu0 %v570
      %v609 = vpop.f32.mrf.mxu0
      %v610 = vadd.f32 0.0, %v609
      %v611 = vpop.f32.mrf.mxu0
      %v612 = vpop.f32.mrf.mxu0
      %v613 = vpop.f32.mrf.mxu0
      %614 = vdwg.mxu0
      %v615 = vmul.f32 %v610, %v565
      %617 = vrot.lane.b32.xlu0 %v393, 8
      %v618 = vpop.permute.xlu0 %617
      %621 = vrot.lane.b32.xlu0 %v504, 16
      %v622 = vpop.permute.xlu0 %621
      %625 = vrot.lane.b32.xlu0 %v615, 24
      %v626 = vpop.permute.xlu0 %625
      %v628 = vsel %vm167, %v281, %v618
      %vm629 = vcmask 130048
      %v630 = vsel %vm629, %v628, %v622
      %vm631 = vcmask 195584
      %v632 = vsel %vm631, %v630, %v626
      %vm633 = vcmask 260096
      %634 = vst.msk [vmem:[%s155] sm:$0x7f] %vm633, %v632
      %p635 = scmp.lt.s32.totalorder %s13, 1
      %s636 = scalar_select %p635, %s13, 1
      %s637 = smul.addr %s636, 8
      %s638 = scalar_lea.vmem %s2, %s637
      // Predicated region
      $region29: #{transformer_forward.38} parent=27 // pred_check
        %p639 = pneg %p83
      $region30: #{transformer_forward.38} parent=27 // pred_check_branch
        %641 = sbr.rel (%p639) target = $region32
      $region31: #{transformer_forward.38} parent=27 // pred_region
        _
      $region32: #{transformer_forward.38} parent=27 // pred_fallthru
        _
    $region28: #{transformer_forward.38} parent=5 // pred_fallthru
      _
    %p642 = scmp.le.s32.totalorder 2, %s8
    // Predicated region
    $region33: #{transformer_forward.38} parent=5 // pred_check
      %p643 = pneg %p642
    $region34: #{transformer_forward.38} parent=5 // pred_check_branch
      %645 = sbr.rel (%p643) target = $region36
    $region35: #{transformer_forward.38} parent=5 // pred_region
      %s646 = ssub.s32 %s8, 2
      // Predicated region
      $region37: #{transformer_forward.38} parent=35 // pred_check
        %p647 = pneg %p89
      $region38: #{transformer_forward.38} parent=35 // pred_check_branch
        %649 = sbr.rel (%p647) target = $region40
      $region39: #{transformer_forward.38} parent=35 // pred_region
        %p650 = scmp.lt.s32.totalorder %s14, 1
        %s651 = scalar_select %p650, %s14, 1
        %s652 = smul.addr %s651, 8
        %s653 = scalar_lea.vmem %s2, %s652
      $region40: #{transformer_forward.38} parent=35 // pred_fallthru
        _
    $region36: #{transformer_forward.38} parent=5 // pred_fallthru
      _
  $region6: #{transformer_forward.38} parent=0 // loop_footer
    %s12 = sadd.s32 1, %s8
  $region7: #{transformer_forward.38} parent=0 // loop_footer_branch
    %7 = sbr.rel target = $region3
  $region8: #{transformer_forward.38} parent=0 // loop_exit
    _

// kernel: transformer_forward.53
$region0: #{transformer_forward.53}
  #allocation0 [shape = 'u32[]', space=smem, size = 0x4, offset = 0x4, fixed_abs, tag = 'smem constant byte address 0x4 - core index']
  #allocation1 [shape = 'u32[144,128]{1,0:T(1,128)}', space=vmem, size = 0x12000, scoped, tag = 'internal scratch']
  %s0 = inlined_call_operand.vmem [shape: f32[14,32], index: 0, kind: input, shape index: {}]
  %s1 = inlined_call_operand.vmem [shape: f32[1,32], index: 1, kind: input, shape index: {}]
  %s2 = inlined_call_operand.vmem [shape: f32[1,32], index: 2, kind: input, shape index: {}]
  %s3 = inlined_call_operand.vmem [shape: bf16[32,40], index: 3, kind: input, shape index: {}]
  %s4 = inlined_call_operand.vmem [shape: f32[1,40], index: 4, kind: input, shape index: {}]
  %s5 = inlined_call_operand.vmem [shape: f32[14,40], index: 5, kind: output, shape index: {}]
  %s6 = sld [smem:[#allocation0]]
  $region30: #{transformer_forward.53} parent=0
    _
  %s8 = ssub.s32 1, %s6
  %s9 = scalar_select 0, %s8, %s6
  // Predicated region
  $region2: #{transformer_forward.53} parent=0 // pred_check
    _
  $region3: #{transformer_forward.53} parent=0 // pred_check_branch
    %11 = sbr.rel (0) target = $region5
  $region4: #{transformer_forward.53} parent=0 // pred_region
    _
  $region5: #{transformer_forward.53} parent=0 // pred_fallthru
    _
  // Predicated region
  $region6: #{transformer_forward.53} parent=0 // pred_check
    _
  $region7: #{transformer_forward.53} parent=0 // pred_check_branch
    %13 = sbr.rel (0) target = $region9
  $region8: #{transformer_forward.53} parent=0 // pred_region
    _
  $region9: #{transformer_forward.53} parent=0 // pred_fallthru
    _
  // Predicated region
  $region10: #{transformer_forward.53} parent=0 // pred_check
    _
  $region11: #{transformer_forward.53} parent=0 // pred_check_branch
    %15 = sbr.rel (0) target = $region13
  $region12: #{transformer_forward.53} parent=0 // pred_region
    _
  $region13: #{transformer_forward.53} parent=0 // pred_fallthru
    _
  // Predicated region
  $region14: #{transformer_forward.53} parent=0 // pred_check
    _
  $region15: #{transformer_forward.53} parent=0 // pred_check_branch
    %17 = sbr.rel (0) target = $region17
  $region16: #{transformer_forward.53} parent=0 // pred_region
    _
  $region17: #{transformer_forward.53} parent=0 // pred_fallthru
    _
  // Predicated region
  $region18: #{transformer_forward.53} parent=0 // pred_check
    _
  $region19: #{transformer_forward.53} parent=0 // pred_check_branch
    %19 = sbr.rel (0) target = $region21
  $region20: #{transformer_forward.53} parent=0 // pred_region
    _
  $region21: #{transformer_forward.53} parent=0 // pred_fallthru
    _
  %v21 = vld [vmem:[%s0] sm:$0xff]
  %v22 = vld [vmem:[%s0 + $0x8] sm:$0x3f]
  %v23 = vld [vmem:[%s1] sm:$0x1]
  %v24 = vld [vmem:[%s2] sm:$0x1]
  %vm25 = vcmask 261120
  %v26 = vsel %vm25, %v21, 0.0
  %27 = vadd.xlane.f32.xlu0 %v26
  %v28 = vpop.xlane.xlu0 %27
  %vm29 = vcmask 259072
  %v30 = vsel %vm29, %v22, 0.0
  %31 = vadd.xlane.f32.xlu0 %v30
  %v32 = vpop.xlane.xlu0 %31
  %v33 = vrcp.pop 32.0
  %v34 = vmul.f32 %v28, %v33
  %v35 = vmul.f32 %v32, %v33
  %v36 = vsub.f32 %v21, %v34
  %v37 = vsub.f32 %v22, %v35
  %v38 = vmul.f32 %v36, %v36
  %v39 = vmul.f32 %v37, %v37
  %v40 = vsel %vm25, %v38, 0.0
  %41 = vadd.xlane.f32.xlu0 %v40
  %v42 = vpop.xlane.xlu0 %41
  %v43 = vsel %vm29, %v39, 0.0
  %44 = vadd.xlane.f32.xlu0 %v43
  %v45 = vpop.xlane.xlu0 %44
  %v46 = vmul.f32 %v42, %v33
  %v47 = vmul.f32 %v45, %v33
  %v48 = vadd.f32 %v46, 1e-05
  %v49 = vadd.f32 %v47, 1e-05
  %v50 = vrsqrt.pop %v48
  %v51 = vrsqrt.pop %v49
  %v52 = vmul.f32 %v36, %v50
  %v53 = vmul.f32 %v37, %v51
  %v55 = vlaneseq
  %v56 = vshrl.u32 %v55, 7
  %v57 = vsub.s32 0, %v56
  %v58 = vrot.slane %v23, %v57
  %v60 = vmul.f32 %v52, %v58
  %v61 = vmul.f32 %v53, %v58
  %v63 = vlaneseq
  %v64 = vshrl.u32 %v63, 7
  %v65 = vsub.s32 0, %v64
  %v66 = vrot.slane %v24, %v65
  %v68 = vadd.f32 %v60, %v66
  %v69 = vadd.f32 %v61, %v66
  %v70 = vpack.c.bf16 %v69, %v68
  %v71 = vld [vmem:[%s3] sm:$0xf]
  %v72 = vld [vmem:[%s3 + $0x4] sm:$0xf]
  %v73 = vld [vmem:[%s3 + $0x8] sm:$0xf]
  %v74 = vld [vmem:[%s3 + $0xc] sm:$0xf]
  %v75 = vld [vmem:[%s4] sm:$0x1]
  %v77 = vlaneseq
  %v78 = vshrl.u32 %v77, 7
  %v79 = vsub.s32 0, %v78
  %v80 = vrot.slane %v75, %v79
  %v86 = vunpack.c.l.b16 %v71
  %v87 = vunpack.c.l.b16 %v72
  %v88 = vunpack.c.l.b16 %v73
  %v89 = vunpack.c.l.b16 %v74
  %v90 = vpack.c.b16 %v87, %v86
  %v91 = vpack.c.b16 %v89, %v88
  %v95 = vsel %vm25, %v70, 0
  %97 = vmatprep.subr.bf16.mxu0 0
  %98 = vmatpush1.bf16.msra.mxu0 0
  %99 = vmatprep.subr.bf16.mxu0 0
  %100 = vmatpush1.bf16.msra.mxu0 0
  %101 = vmatprep.subr.bf16.mxu0 0
  %102 = vmatpush1.bf16.msra.mxu0 0
  %103 = vmatprep.subr.bf16.mxu0 0
  %104 = vmatpush1.bf16.msra.mxu0 0
  %105 = vmatprep.subr.bf16.mxu0 0
  %106 = vmatpush1.bf16.msra.mxu0 0
  %107 = vmatprep.subr.bf16.mxu0 0
  %108 = vmatpush1.bf16.msra.mxu0 0
  %109 = vmatprep.subr.bf16.mxu0 0
  %110 = vmatpush1.bf16.msra.mxu0 %v91
  %111 = vmatprep.subr.bf16.mxu0 0
  %112 = vmatpush1.bf16.msra.mxu0 %v90
  %113 = vmatprep.subr.bf16.mxu0 0
  %114 = vmatpush2.bf16.msra.mxu0 0
  %115 = vmatprep.subr.bf16.mxu0 0
  %116 = vmatpush2.bf16.msra.mxu0 0
  %117 = vmatprep.subr.bf16.mxu0 0
  %118 = vmatpush2.bf16.msra.mxu0 0
  %119 = vmatprep.subr.bf16.mxu0 0
  %120 = vmatpush2.bf16.msra.mxu0 0
  %121 = vmatprep.subr.bf16.mxu0 0
  %122 = vmatpush2.bf16.msra.mxu0 0
  %123 = vmatprep.subr.bf16.mxu0 0
  %124 = vmatpush2.bf16.msra.mxu0 0
  %125 = vmatprep.subr.bf16.mxu0 0
  %126 = vmatpush2.bf16.msra.mxu0 0
  %127 = vmatprep.subr.bf16.mxu0 0
  %128 = vmatpush2.bf16.msra.mxu0 0
  %129 = vmatprep.mubr.bf16.mxu0 0
  %130 = vmatmul.mubr.bf16.gmra.mxu0 %v95
  %v131 = vpop.f32.mrf.mxu0
  %v132 = vadd.f32 %v80, %v131
  %v133 = vpop.f32.mrf.mxu0
  %v134 = vpop.f32.mrf.mxu0
  %v135 = vadd.f32 %v80, %v134
  %v136 = vpop.f32.mrf.mxu0
  %137 = vdwg.mxu0
  %vm138 = vcmask 326656
  %139 = vst.msk [vmem:[%s5] sm:$0xff] %vm138, %v132
  %vm140 = vcmask 324608
  %141 = vst.msk [vmem:[%s5 + $0x8] sm:$0x3f] %vm140, %v135
  // Predicated region
  $region22: #{transformer_forward.53} parent=0 // pred_check
    _
  $region23: #{transformer_forward.53} parent=0 // pred_check_branch
    %143 = sbr.rel (0) target = $region25
  $region24: #{transformer_forward.53} parent=0 // pred_region
    _
  $region25: #{transformer_forward.53} parent=0 // pred_fallthru
    _
  // Predicated region
  $region26: #{transformer_forward.53} parent=0 // pred_check
    _
  $region27: #{transformer_forward.53} parent=0 // pred_check_branch
    %145 = sbr.rel (0) target = $region29
  $region28: #{transformer_forward.53} parent=0 // pred_region
    _
  $region29: #{transformer_forward.53} parent=0 // pred_fallthru
    _

// kernel: transformer_forward.44
$region0: #{transformer_forward.44}
  #allocation0 [shape = 'u32[]', space=smem, size = 0x4, offset = 0x4, fixed_abs, tag = 'smem constant byte address 0x4 - core index']
  #allocation1 [shape = 'u32[144,128]{1,0:T(1,128)}', space=vmem, size = 0x12000, scoped, tag = 'internal scratch']
  %s0 = inlined_call_operand.vmem [shape: f32[14,32], index: 0, kind: input, shape index: {}]
  %s1 = inlined_call_operand.vmem [shape: f32[1,32], index: 1, kind: input, shape index: {}]
  %s2 = inlined_call_operand.vmem [shape: f32[1,32], index: 2, kind: input, shape index: {}]
  %s3 = inlined_call_operand.vmem [shape: bf16[32,64], index: 3, kind: input, shape index: {}]
  %s4 = inlined_call_operand.vmem [shape: f32[1,64], index: 4, kind: input, shape index: {}]
  %s5 = inlined_call_operand.vmem [shape: bf16[64,32], index: 5, kind: input, shape index: {}]
  %s6 = inlined_call_operand.vmem [shape: f32[1,32], index: 6, kind: input, shape index: {}]
  %s7 = inlined_call_operand.vmem [shape: f32[14,32], index: 7, kind: output, shape index: {}]
  %s8 = sld [smem:[#allocation0]]
  $region38: #{transformer_forward.44} parent=0
    _
  %s10 = ssub.s32 1, %s8
  %s11 = scalar_select 0, %s10, %s8
  // Predicated region
  $region2: #{transformer_forward.44} parent=0 // pred_check
    _
  $region3: #{transformer_forward.44} parent=0 // pred_check_branch
    %13 = sbr.rel (0) target = $region5
  $region4: #{transformer_forward.44} parent=0 // pred_region
    _
  $region5: #{transformer_forward.44} parent=0 // pred_fallthru
    _
  // Predicated region
  $region6: #{transformer_forward.44} parent=0 // pred_check
    _
  $region7: #{transformer_forward.44} parent=0 // pred_check_branch
    %15 = sbr.rel (0) target = $region9
  $region8: #{transformer_forward.44} parent=0 // pred_region
    _
  $region9: #{transformer_forward.44} parent=0 // pred_fallthru
    _
  // Predicated region
  $region10: #{transformer_forward.44} parent=0 // pred_check
    _
  $region11: #{transformer_forward.44} parent=0 // pred_check_branch
    %17 = sbr.rel (0) target = $region13
  $region12: #{transformer_forward.44} parent=0 // pred_region
    _
  $region13: #{transformer_forward.44} parent=0 // pred_fallthru
    _
  // Predicated region
  $region14: #{transformer_forward.44} parent=0 // pred_check
    _
  $region15: #{transformer_forward.44} parent=0 // pred_check_branch
    %19 = sbr.rel (0) target = $region17
  $region16: #{transformer_forward.44} parent=0 // pred_region
    _
  $region17: #{transformer_forward.44} parent=0 // pred_fallthru
    _
  // Predicated region
  $region18: #{transformer_forward.44} parent=0 // pred_check
    _
  $region19: #{transformer_forward.44} parent=0 // pred_check_branch
    %21 = sbr.rel (0) target = $region21
  $region20: #{transformer_forward.44} parent=0 // pred_region
    _
  $region21: #{transformer_forward.44} parent=0 // pred_fallthru
    _
  // Predicated region
  $region22: #{transformer_forward.44} parent=0 // pred_check
    _
  $region23: #{transformer_forward.44} parent=0 // pred_check_branch
    %23 = sbr.rel (0) target = $region25
  $region24: #{transformer_forward.44} parent=0 // pred_region
    _
  $region25: #{transformer_forward.44} parent=0 // pred_fallthru
    _
  // Predicated region
  $region26: #{transformer_forward.44} parent=0 // pred_check
    _
  $region27: #{transformer_forward.44} parent=0 // pred_check_branch
    %25 = sbr.rel (0) target = $region29
  $region28: #{transformer_forward.44} parent=0 // pred_region
    _
  $region29: #{transformer_forward.44} parent=0 // pred_fallthru
    _
  %v27 = vld [vmem:[%s0] sm:$0xff]
  %v28 = vld [vmem:[%s0 + $0x8] sm:$0x3f]
  %v29 = vld [vmem:[%s1] sm:$0x1]
  %v30 = vld [vmem:[%s2] sm:$0x1]
  %vm31 = vcmask 261120
  %v32 = vsel %vm31, %v27, 0.0
  %33 = vadd.xlane.f32.xlu0 %v32
  %v34 = vpop.xlane.xlu0 %33
  %vm35 = vcmask 259072
  %v36 = vsel %vm35, %v28, 0.0
  %37 = vadd.xlane.f32.xlu0 %v36
  %v38 = vpop.xlane.xlu0 %37
  %v39 = vrcp.pop 32.0
  %v40 = vmul.f32 %v34, %v39
  %v41 = vmul.f32 %v38, %v39
  %v42 = vsub.f32 %v27, %v40
  %v43 = vsub.f32 %v28, %v41
  %v44 = vmul.f32 %v42, %v42
  %v45 = vmul.f32 %v43, %v43
  %v46 = vsel %vm31, %v44, 0.0
  %47 = vadd.xlane.f32.xlu0 %v46
  %v48 = vpop.xlane.xlu0 %47
  %v49 = vsel %vm35, %v45, 0.0
  %50 = vadd.xlane.f32.xlu0 %v49
  %v51 = vpop.xlane.xlu0 %50
  %v52 = vmul.f32 %v48, %v39
  %v53 = vmul.f32 %v51, %v39
  %v54 = vadd.f32 %v52, 1e-05
  %v55 = vadd.f32 %v53, 1e-05
  %v56 = vrsqrt.pop %v54
  %v57 = vrsqrt.pop %v55
  %v58 = vmul.f32 %v42, %v56
  %v59 = vmul.f32 %v43, %v57
  %v61 = vlaneseq
  %v62 = vshrl.u32 %v61, 7
  %v63 = vsub.s32 0, %v62
  %v64 = vrot.slane %v29, %v63
  %v66 = vmul.f32 %v58, %v64
  %v67 = vmul.f32 %v59, %v64
  %v69 = vlaneseq
  %v70 = vshrl.u32 %v69, 7
  %v71 = vsub.s32 0, %v70
  %v72 = vrot.slane %v30, %v71
  %v74 = vadd.f32 %v66, %v72
  %v75 = vadd.f32 %v67, %v72
  %v76 = vpack.c.bf16 %v75, %v74
  %v77 = vld [vmem:[%s3] sm:$0xf]
  %v78 = vld [vmem:[%s3 + $0x4] sm:$0xf]
  %v79 = vld [vmem:[%s3 + $0x8] sm:$0xf]
  %v80 = vld [vmem:[%s3 + $0xc] sm:$0xf]
  %v81 = vld [vmem:[%s4] sm:$0x1]
  %v83 = vlaneseq
  %v84 = vshrl.u32 %v83, 7
  %v85 = vsub.s32 0, %v84
  %v86 = vrot.slane %v81, %v85
  %v92 = vunpack.c.l.b16 %v77
  %v93 = vunpack.c.l.b16 %v78
  %v94 = vunpack.c.l.b16 %v79
  %v95 = vunpack.c.l.b16 %v80
  %v96 = vpack.c.b16 %v93, %v92
  %v97 = vpack.c.b16 %v95, %v94
  %v101 = vsel %vm31, %v76, 0
  %103 = vmatprep.subr.bf16.mxu0 0
  %104 = vmatpush1.bf16.msra.mxu0 0
  %105 = vmatprep.subr.bf16.mxu0 0
  %106 = vmatpush1.bf16.msra.mxu0 0
  %107 = vmatprep.subr.bf16.mxu0 0
  %108 = vmatpush1.bf16.msra.mxu0 0
  %109 = vmatprep.subr.bf16.mxu0 0
  %110 = vmatpush1.bf16.msra.mxu0 0
  %111 = vmatprep.subr.bf16.mxu0 0
  %112 = vmatpush1.bf16.msra.mxu0 0
  %113 = vmatprep.subr.bf16.mxu0 0
  %114 = vmatpush1.bf16.msra.mxu0 0
  %115 = vmatprep.subr.bf16.mxu0 0
  %116 = vmatpush1.bf16.msra.mxu0 %v97
  %117 = vmatprep.subr.bf16.mxu0 0
  %118 = vmatpush1.bf16.msra.mxu0 %v96
  %119 = vmatprep.subr.bf16.mxu0 0
  %120 = vmatpush2.bf16.msra.mxu0 0
  %121 = vmatprep.subr.bf16.mxu0 0
  %122 = vmatpush2.bf16.msra.mxu0 0
  %123 = vmatprep.subr.bf16.mxu0 0
  %124 = vmatpush2.bf16.msra.mxu0 0
  %125 = vmatprep.subr.bf16.mxu0 0
  %126 = vmatpush2.bf16.msra.mxu0 0
  %127 = vmatprep.subr.bf16.mxu0 0
  %128 = vmatpush2.bf16.msra.mxu0 0
  %129 = vmatprep.subr.bf16.mxu0 0
  %130 = vmatpush2.bf16.msra.mxu0 0
  %131 = vmatprep.subr.bf16.mxu0 0
  %132 = vmatpush2.bf16.msra.mxu0 0
  %133 = vmatprep.subr.bf16.mxu0 0
  %134 = vmatpush2.bf16.msra.mxu0 0
  %135 = vmatprep.mubr.bf16.mxu0 0
  %136 = vmatmul.mubr.bf16.gmra.mxu0 %v101
  %v137 = vpop.f32.mrf.mxu0
  %v138 = vadd.f32 %v86, %v137
  %v139 = vpop.f32.mrf.mxu0
  %v140 = vpop.f32.mrf.mxu0
  %v141 = vadd.f32 %v86, %v140
  %v142 = vpop.f32.mrf.mxu0
  %143 = vdwg.mxu0
  %v144 = vmax.f32 %v138, 0.0
  %v145 = vmax.f32 %v141, 0.0
  %v146 = vpack.c.bf16 %v145, %v144
  %v147 = vld [vmem:[%s5] sm:$0xf]
  %v148 = vld [vmem:[%s5 + $0x4] sm:$0xf]
  %v149 = vld [vmem:[%s5 + $0x8] sm:$0xf]
  %v150 = vld [vmem:[%s5 + $0xc] sm:$0xf]
  %v151 = vld [vmem:[%s5 + $0x10] sm:$0xf]
  %v152 = vld [vmem:[%s5 + $0x14] sm:$0xf]
  %v153 = vld [vmem:[%s5 + $0x18] sm:$0xf]
  %v154 = vld [vmem:[%s5 + $0x1c] sm:$0xf]
  %v155 = vld [vmem:[%s6] sm:$0x1]
  %v157 = vlaneseq
  %v158 = vshrl.u32 %v157, 7
  %v159 = vsub.s32 0, %v158
  %v160 = vrot.slane %v155, %v159
  %v170 = vunpack.c.l.b16 %v147
  %v171 = vunpack.c.l.b16 %v148
  %v172 = vunpack.c.l.b16 %v149
  %v173 = vunpack.c.l.b16 %v150
  %v174 = vunpack.c.l.b16 %v151
  %v175 = vunpack.c.l.b16 %v152
  %v176 = vunpack.c.l.b16 %v153
  %v177 = vunpack.c.l.b16 %v154
  %v178 = vpack.c.b16 %v171, %v170
  %v179 = vpack.c.b16 %v173, %v172
  %v180 = vpack.c.b16 %v175, %v174
  %v181 = vpack.c.b16 %v177, %v176
  %vm186 = vcmask 523264
  %v188 = vsel %vm186, %v146, 0
  %190 = vmatprep.subr.bf16.mxu0 0
  %191 = vmatpush1.bf16.msra.mxu0 0
  %192 = vmatprep.subr.bf16.mxu0 0
  %193 = vmatpush1.bf16.msra.mxu0 0
  %194 = vmatprep.subr.bf16.mxu0 0
  %195 = vmatpush1.bf16.msra.mxu0 0
  %196 = vmatprep.subr.bf16.mxu0 0
  %197 = vmatpush1.bf16.msra.mxu0 0
  %198 = vmatprep.subr.bf16.mxu0 0
  %199 = vmatpush1.bf16.msra.mxu0 %v181
  %200 = vmatprep.subr.bf16.mxu0 0
  %201 = vmatpush1.bf16.msra.mxu0 %v180
  %202 = vmatprep.subr.bf16.mxu0 0
  %203 = vmatpush1.bf16.msra.mxu0 %v179
  %204 = vmatprep.subr.bf16.mxu0 0
  %205 = vmatpush1.bf16.msra.mxu0 %v178
  %206 = vmatprep.subr.bf16.mxu0 0
  %207 = vmatpush2.bf16.msra.mxu0 0
  %208 = vmatprep.subr.bf16.mxu0 0
  %209 = vmatpush2.bf16.msra.mxu0 0
  %210 = vmatprep.subr.bf16.mxu0 0
  %211 = vmatpush2.bf16.msra.mxu0 0
  %212 = vmatprep.subr.bf16.mxu0 0
  %213 = vmatpush2.bf16.msra.mxu0 0
  %214 = vmatprep.subr.bf16.mxu0 0
  %215 = vmatpush2.bf16.msra.mxu0 0
  %216 = vmatprep.subr.bf16.mxu0 0
  %217 = vmatpush2.bf16.msra.mxu0 0
  %218 = vmatprep.subr.bf16.mxu0 0
  %219 = vmatpush2.bf16.msra.mxu0 0
  %220 = vmatprep.subr.bf16.mxu0 0
  %221 = vmatpush2.bf16.msra.mxu0 0
  %222 = vmatprep.mubr.bf16.mxu0 0
  %223 = vmatmul.mubr.bf16.gmra.mxu0 %v188
  %v224 = vpop.f32.mrf.mxu0
  %v225 = vadd.f32 %v160, %v224
  %v226 = vpop.f32.mrf.mxu0
  %v227 = vpop.f32.mrf.mxu0
  %v228 = vadd.f32 %v160, %v227
  %v229 = vpop.f32.mrf.mxu0
  %230 = vdwg.mxu0
  %v231 = vadd.f32 %v27, %v225
  %v232 = vadd.f32 %v28, %v228
  %233 = vst.msk [vmem:[%s7] sm:$0xff] %vm31, %v231
  %234 = vst.msk [vmem:[%s7 + $0x8] sm:$0x3f] %vm35, %v232
  // Predicated region
  $region30: #{transformer_forward.44} parent=0 // pred_check
    _
  $region31: #{transformer_forward.44} parent=0 // pred_check_branch
    %236 = sbr.rel (0) target = $region33
  $region32: #{transformer_forward.44} parent=0 // pred_region
    _
  $region33: #{transformer_forward.44} parent=0 // pred_fallthru
    _
  // Predicated region
  $region34: #{transformer_forward.44} parent=0 // pred_check
    _
  $region35: #{transformer_forward.44} parent=0 // pred_check_branch
    %238 = sbr.rel (0) target = $region37
  $region36: #{transformer_forward.44} parent=0 // pred_region
    _
  $region37: #{transformer_forward.44} parent=0 // pred_fallthru
    _

// kernel: transformer_forward.42
$region0: #{transformer_forward.42}
  #allocation0 [shape = 'u32[]', space=smem, size = 0x4, offset = 0x4, fixed_abs, tag = 'smem constant byte address 0x4 - core index']
  #allocation1 [shape = 'u32[144,128]{1,0:T(1,128)}', space=vmem, size = 0x12000, scoped, tag = 'internal scratch']
  %s0 = inlined_call_operand.vmem [shape: f32[2,7,32], index: 0, kind: input, shape index: {}]
  %s1 = inlined_call_operand.vmem [shape: f32[2,8,64], index: 1, kind: input, shape index: {}]
  %s2 = inlined_call_operand.vmem [shape: f32[2,7,32], index: 2, kind: output, shape index: {}]
  %s3 = sld [smem:[#allocation0]]
  $region41: #{transformer_forward.42} parent=0
    _
  %s5 = ssub.s32 1, %s3
  %s6 = scalar_select 0, %s5, %s3
  loop: start=0, step=1, limit=4
  $region2: #{transformer_forward.42} parent=0 // loop_pre_header
    _
  $region3: #{transformer_forward.42} parent=0 // loop_header
    %s8 = sphi 0, %s12
    %p9 = scmp.ge.s32.totalorder %s8, 4
    %s18 = sphi 0, %s20
    %s21 = sphi 0, %s18
    %s22 = sphi 0, %s21
    %s38 = sphi 0, %s22
    %s44 = sphi 0, %s46
    %s47 = sphi 0, %s44
    %s48 = sphi 0, %s47
    %s64 = sphi 0, %s48
    %s70 = sphi 0, %s72
    %s73 = sphi 0, %s70
    %s74 = sphi 0, %s73
    %s90 = sphi 0, %s74
  $region4: #{transformer_forward.42} parent=0 // loop_header_branch
    %11 = sbr.rel (%p9) target = $region8
  $region5: #{transformer_forward.42} parent=0 // loop_body
    %s13 = ssub.s32 %s8, 1
    %s14 = ssub.s32 %s8, 2
    %s15 = sadd.s32 %s8, 1
    %s16 = ssub.s32 %s8, %s15
    %p17 = scmp.eq.s32.totalorder %s16, 0
    %s19 = sadd.s32 %s18, 1
    %s20 = scalar_select %p17, %s18, %s19
    %p23 = pneg %p17
    %p24 = scmp.eq.s32.totalorder %s8, 1
    %p25 = por %p23, %p24
    %p26 = scmp.ne.s32.totalorder %s18, %s21
    %p27 = scmp.eq.s32.totalorder %s8, 0
    %p28 = por %p26, %p27
    %p29 = scmp.ne.s32.totalorder %s18, %s21
    %p30 = scmp.eq.s32.totalorder %s13, 1
    %p31 = por %p29, %p30
    %p32 = scmp.ne.s32.totalorder %s21, %s22
    %p33 = scmp.eq.s32.totalorder %s13, 0
    %p34 = por %p32, %p33
    %p35 = scmp.ne.s32.totalorder %s21, %s22
    %p36 = scmp.eq.s32.totalorder %s14, 1
    %p37 = por %p35, %p36
    %p39 = scmp.ne.s32.totalorder %s22, %s38
    %p40 = scmp.eq.s32.totalorder %s14, 0
    %p41 = por %p39, %p40
    %s42 = ssub.s32 %s8, %s15
    %p43 = scmp.eq.s32.totalorder %s42, 0
    %s45 = sadd.s32 %s44, 1
    %s46 = scalar_select %p43, %s44, %s45
    %p49 = pneg %p43
    %p50 = scmp.eq.s32.totalorder %s8, 1
    %p51 = por %p49, %p50
    %p52 = scmp.ne.s32.totalorder %s44, %s47
    %p53 = scmp.eq.s32.totalorder %s8, 0
    %p54 = por %p52, %p53
    %p55 = scmp.ne.s32.totalorder %s44, %s47
    %p56 = scmp.eq.s32.totalorder %s13, 1
    %p57 = por %p55, %p56
    %p58 = scmp.ne.s32.totalorder %s47, %s48
    %p59 = scmp.eq.s32.totalorder %s13, 0
    %p60 = por %p58, %p59
    %p61 = scmp.ne.s32.totalorder %s47, %s48
    %p62 = scmp.eq.s32.totalorder %s14, 1
    %p63 = por %p61, %p62
    %p65 = scmp.ne.s32.totalorder %s48, %s64
    %p66 = scmp.eq.s32.totalorder %s14, 0
    %p67 = por %p65, %p66
    %s68 = ssub.s32 %s8, %s15
    %p69 = scmp.eq.s32.totalorder %s68, 0
    %s71 = sadd.s32 %s70, 1
    %s72 = scalar_select %p69, %s70, %s71
    %p75 = pneg %p69
    %p76 = scmp.eq.s32.totalorder %s8, 1
    %p77 = por %p75, %p76
    %p78 = scmp.ne.s32.totalorder %s70, %s73
    %p79 = scmp.eq.s32.totalorder %s8, 0
    %p80 = por %p78, %p79
    %p81 = scmp.ne.s32.totalorder %s70, %s73
    %p82 = scmp.eq.s32.totalorder %s13, 1
    %p83 = por %p81, %p82
    %p84 = scmp.ne.s32.totalorder %s73, %s74
    %p85 = scmp.eq.s32.totalorder %s13, 0
    %p86 = por %p84, %p85
    %p87 = scmp.ne.s32.totalorder %s73, %s74
    %p88 = scmp.eq.s32.totalorder %s14, 1
    %p89 = por %p87, %p88
    %p91 = scmp.ne.s32.totalorder %s74, %s90
    %p92 = scmp.eq.s32.totalorder %s14, 0
    %p93 = por %p91, %p92
    %p94 = scmp.le.s32.totalorder 1, %s8
    %p95 = scmp.lt.s32.totalorder %s8, 3
    %p96 = pnand %p94, %p95
    %p97 = pneg %p96
    // Predicated region
    $region9: #{transformer_forward.42} parent=5 // pred_check
      _
    $region10: #{transformer_forward.42} parent=5 // pred_check_branch
      %99 = sbr.rel (%p96) target = $region12
    $region11: #{transformer_forward.42} parent=5 // pred_region
      %s100 = ssub.s32 %s8, 1
    $region12: #{transformer_forward.42} parent=5 // pred_fallthru
      _
    %p101 = scmp.lt.s32.totalorder %s8, 2
    // Predicated region
    $region13: #{transformer_forward.42} parent=5 // pred_check
      %p102 = pneg %p101
    $region14: #{transformer_forward.42} parent=5 // pred_check_branch
      %104 = sbr.rel (%p102) target = $region16
    $region15: #{transformer_forward.42} parent=5 // pred_region
      // Predicated region
      $region17: #{transformer_forward.42} parent=15 // pred_check
        %p105 = pneg %p28
      $region18: #{transformer_forward.42} parent=15 // pred_check_branch
        %107 = sbr.rel (%p105) target = $region20
      $region19: #{transformer_forward.42} parent=15 // pred_region
        %p108 = scmp.lt.s32.totalorder %s8, 1
        %s109 = scalar_select %p108, %s8, 1
        %s110 = smul.addr %s109, 8
        %s111 = scalar_lea.vmem %s0, %s110
      $region20: #{transformer_forward.42} parent=15 // pred_fallthru
        _
      // Predicated region
      $region21: #{transformer_forward.42} parent=15 // pred_check
        %p112 = pneg %p54
      $region22: #{transformer_forward.42} parent=15 // pred_check_branch
        %114 = sbr.rel (%p112) target = $region24
      $region23: #{transformer_forward.42} parent=15 // pred_region
        %p115 = scmp.lt.s32.totalorder %s8, 1
        %s116 = scalar_select %p115, %s8, 1
        %s117 = smul.addr %s116, 8
        %s118 = scalar_lea.vmem %s1, %s117
      $region24: #{transformer_forward.42} parent=15 // pred_fallthru
        _
    $region16: #{transformer_forward.42} parent=5 // pred_fallthru
      _
    %p119 = scmp.le.s32.totalorder 1, %s8
    %p120 = scmp.lt.s32.totalorder %s8, 3
    %p121 = pnand %p119, %p120
    %p122 = pneg %p121
    // Predicated region
    $region25: #{transformer_forward.42} parent=5 // pred_check
      _
    $region26: #{transformer_forward.42} parent=5 // pred_check_branch
      %124 = sbr.rel (%p121) target = $region28
    $region27: #{transformer_forward.42} parent=5 // pred_region
      %s125 = ssub.s32 %s8, 1
      %p126 = scmp.lt.s32.totalorder %s13, 1
      %s127 = scalar_select %p126, %s13, 1
      %s128 = smul.addr %s127, 8
      %s129 = scalar_lea.vmem %s0, %s128
      %p130 = pneg %p34
      %p131 = pneg %p31
      %p132 = scmp.lt.s32.totalorder %s13, 1
      %s133 = scalar_select %p132, %s13, 1
      %s134 = smul.addr %s133, 8
      %s135 = scalar_lea.vmem %s1, %s134
      %p136 = pneg %p60
      %p137 = pneg %p57
      %p138 = pneg %p86
      %p139 = pneg %p83
      %p140 = scmp.lt.s32.totalorder %s13, 1
      %s141 = scalar_select %p140, %s13, 1
      %s142 = smul.addr %s141, 8
      %s143 = scalar_lea.vmem %s2, %s142
      %p144 = scmp.lt.s32.totalorder %s13, 1
      %s145 = scalar_select %p144, %s13, 1
      %s146 = smul.addr %s145, 8
      %s147 = scalar_lea.vmem %s0, %s146
      %p148 = scmp.lt.s32.totalorder %s13, 1
      %s149 = scalar_select %p148, %s13, 1
      %s150 = smul.addr %s149, 8
      %s151 = scalar_lea.vmem %s1, %s150
      %p152 = scmp.lt.s32.totalorder %s13, 1
      %s153 = scalar_select %p152, %s13, 1
      %s154 = smul.addr %s153, 8
      %s155 = scalar_lea.vmem %s2, %s154
      %v157 = vld [vmem:[%s147] sm:$0x7f]
      %v158 = vld [vmem:[%s151] sm:$0xff]
      %v159 = vmul.f32 %v157, 0.35355338
      %v160 = vpack.c.bf16 %v159, %v159
      %v161 = vpack.c.bf16 %v158, %v158
      %vm162 = vcmask 64512
      %v164 = vsel %vm162, %v160, 0
      %v167 = vsel %vm162, %v161, 0
      %169 = vmatprep.subr.bf16.mxu0 0
      %170 = vmatpush1.bf16.xpose.msra.mxu0 0
      %171 = vmatprep.subr.bf16.mxu0 0
      %172 = vmatpush1.bf16.xpose.msra.mxu0 0
      %173 = vmatprep.subr.bf16.mxu0 0
      %174 = vmatpush1.bf16.xpose.msra.mxu0 0
      %175 = vmatprep.subr.bf16.mxu0 0
      %176 = vmatpush1.bf16.xpose.msra.mxu0 0
      %177 = vmatprep.subr.bf16.mxu0 0
      %178 = vmatpush1.bf16.xpose.msra.mxu0 0
      %179 = vmatprep.subr.bf16.mxu0 0
      %180 = vmatpush1.bf16.xpose.msra.mxu0 0
      %181 = vmatprep.subr.bf16.mxu0 0
      %182 = vmatpush1.bf16.xpose.msra.mxu0 0
      %183 = vmatprep.subr.bf16.mxu0 0
      %184 = vmatpush1.bf16.xpose.msra.mxu0 %v167
      %185 = vmatprep.subr.bf16.mxu0 0
      %186 = vmatpush2.bf16.xpose.msra.mxu0 0
      %187 = vmatprep.subr.bf16.mxu0 0
      %188 = vmatpush2.bf16.xpose.msra.mxu0 0
      %189 = vmatprep.subr.bf16.mxu0 0
      %190 = vmatpush2.bf16.xpose.msra.mxu0 0
      %191 = vmatprep.subr.bf16.mxu0 0
      %192 = vmatpush2.bf16.xpose.msra.mxu0 0
      %193 = vmatprep.subr.bf16.mxu0 0
      %194 = vmatpush2.bf16.xpose.msra.mxu0 0
      %195 = vmatprep.subr.bf16.mxu0 0
      %196 = vmatpush2.bf16.xpose.msra.mxu0 0
      %197 = vmatprep.subr.bf16.mxu0 0
      %198 = vmatpush2.bf16.xpose.msra.mxu0 0
      %199 = vmatprep.subr.bf16.mxu0 0
      %200 = vmatpush2.bf16.xpose.msra.mxu0 0
      %201 = vmatprep.mubr.bf16.mxu0 0
      %202 = vmatmul.mubr.bf16.gmra.mxu0 %v164
      %v203 = vpop.f32.mrf.mxu0
      %v204 = vadd.f32 0.0, %v203
      %v205 = vpop.f32.mrf.mxu0
      %v206 = vpop.f32.mrf.mxu0
      %v207 = vpop.f32.mrf.mxu0
      %208 = vdwg.mxu0
      %vm209 = vcmask 63488
      %v210 = vsel %vm209, %v204, -inf
      %211 = vmax.xlane.f32.xlu0 %v210
      %v212 = vpop.xlane.xlu0 %211
      %v213 = vsub.f32 %v204, %v212
      %v214 = vmul.f32 %v213, 1.442695
      %v215 = vpow.pop %v214
      %v216 = vsel %vm209, %v215, 0.0
      %217 = vadd.xlane.f32.xlu0 %v216
      %v218 = vpop.xlane.xlu0 %217
      %v219 = vrcp.pop %v218
      %v220 = vpack.c.bf16 %v215, %v215
      %222 = vrot.lane.b32.xlu0 %v161, 96
      %v223 = vpop.permute.xlu0 %222
      %v225 = vsel %vm162, %v220, 0
      %vm227 = vcmask 1043456
      %v229 = vsel %vm227, %v223, 0
      %231 = vmatprep.subr.bf16.mxu0 0
      %232 = vmatpush1.bf16.msra.mxu0 0
      %233 = vmatprep.subr.bf16.mxu0 0
      %234 = vmatpush1.bf16.msra.mxu0 0
      %235 = vmatprep.subr.bf16.mxu0 0
      %236 = vmatpush1.bf16.msra.mxu0 0
      %237 = vmatprep.subr.bf16.mxu0 0
      %238 = vmatpush1.bf16.msra.mxu0 0
      %239 = vmatprep.subr.bf16.mxu0 0
      %240 = vmatpush1.bf16.msra.mxu0 0
      %241 = vmatprep.subr.bf16.mxu0 0
      %242 = vmatpush1.bf16.msra.mxu0 0
      %243 = vmatprep.subr.bf16.mxu0 0
      %244 = vmatpush1.bf16.msra.mxu0 0
      %245 = vmatprep.subr.bf16.mxu0 0
      %246 = vmatpush1.bf16.msra.mxu0 %v229
      %247 = vmatprep.subr.bf16.mxu0 0
      %248 = vmatpush2.bf16.msra.mxu0 0
      %249 = vmatprep.subr.bf16.mxu0 0
      %250 = vmatpush2.bf16.msra.mxu0 0
      %251 = vmatprep.subr.bf16.mxu0 0
      %252 = vmatpush2.bf16.msra.mxu0 0
      %253 = vmatprep.subr.bf16.mxu0 0
      %254 = vmatpush2.bf16.msra.mxu0 0
      %255 = vmatprep.subr.bf16.mxu0 0
      %256 = vmatpush2.bf16.msra.mxu0 0
      %257 = vmatprep.subr.bf16.mxu0 0
      %258 = vmatpush2.bf16.msra.mxu0 0
      %259 = vmatprep.subr.bf16.mxu0 0
      %260 = vmatpush2.bf16.msra.mxu0 0
      %261 = vmatprep.subr.bf16.mxu0 0
      %262 = vmatpush2.bf16.msra.mxu0 0
      %263 = vmatprep.mubr.bf16.mxu0 0
      %264 = vmatmul.mubr.bf16.gmra.mxu0 %v225
      %v265 = vpop.f32.mrf.mxu0
      %v266 = vadd.f32 0.0, %v265
      %v267 = vpop.f32.mrf.mxu0
      %v268 = vpop.f32.mrf.mxu0
      %v269 = vpop.f32.mrf.mxu0
      %270 = vdwg.mxu0
      %v271 = vmul.f32 %v266, %v219
      %273 = vrot.lane.b32.xlu0 %v160, 120
      %v274 = vpop.permute.xlu0 %273
      %275 = vrot.lane.b32.xlu0 %v161, 120
      %v276 = vpop.permute.xlu0 %275
      %v278 = vsel %vm162, %v274, 0
      %v281 = vsel %vm162, %v276, 0
      %283 = vmatprep.subr.bf16.mxu0 0
      %284 = vmatpush1.bf16.xpose.msra.mxu0 0
      %285 = vmatprep.subr.bf16.mxu0 0
      %286 = vmatpush1.bf16.xpose.msra.mxu0 0
      %287 = vmatprep.subr.bf16.mxu0 0
      %288 = vmatpush1.bf16.xpose.msra.mxu0 0
      %289 = vmatprep.subr.bf16.mxu0 0
      %290 = vmatpush1.bf16.xpose.msra.mxu0 0
      %291 = vmatprep.subr.bf16.mxu0 0
      %292 = vmatpush1.bf16.xpose.msra.mxu0 0
      %293 = vmatprep.subr.bf16.mxu0 0
      %294 = vmatpush1.bf16.xpose.msra.mxu0 0
      %295 = vmatprep.subr.bf16.mxu0 0
      %296 = vmatpush1.bf16.xpose.msra.mxu0 0
      %297 = vmatprep.subr.bf16.mxu0 0
      %298 = vmatpush1.bf16.xpose.msra.mxu0 %v281
      %299 = vmatprep.subr.bf16.mxu0 0
      %300 = vmatpush2.bf16.xpose.msra.mxu0 0
      %301 = vmatprep.subr.bf16.mxu0 0
      %302 = vmatpush2.bf16.xpose.msra.mxu0 0
      %303 = vmatprep.subr.bf16.mxu0 0
      %304 = vmatpush2.bf16.xpose.msra.mxu0 0
      %305 = vmatprep.subr.bf16.mxu0 0
      %306 = vmatpush2.bf16.xpose.msra.mxu0 0
      %307 = vmatprep.subr.bf16.mxu0 0
      %308 = vmatpush2.bf16.xpose.msra.mxu0 0
      %309 = vmatprep.subr.bf16.mxu0 0
      %310 = vmatpush2.bf16.xpose.msra.mxu0 0
      %311 = vmatprep.subr.bf16.mxu0 0
      %312 = vmatpush2.bf16.xpose.msra.mxu0 0
      %313 = vmatprep.subr.bf16.mxu0 0
      %314 = vmatpush2.bf16.xpose.msra.mxu0 0
      %315 = vmatprep.mubr.bf16.mxu0 0
      %316 = vmatmul.mubr.bf16.gmra.mxu0 %v278
      %v317 = vpop.f32.mrf.mxu0
      %v318 = vadd.f32 0.0, %v317
      %v319 = vpop.f32.mrf.mxu0
      %v320 = vpop.f32.mrf.mxu0
      %v321 = vpop.f32.mrf.mxu0
      %322 = vdwg.mxu0
      %v323 = vsel %vm209, %v318, -inf
      %324 = vmax.xlane.f32.xlu0 %v323
      %v325 = vpop.xlane.xlu0 %324
      %v326 = vsub.f32 %v318, %v325
      %v327 = vmul.f32 %v326, 1.442695
      %v328 = vpow.pop %v327
      %v329 = vsel %vm209, %v328, 0.0
      %330 = vadd.xlane.f32.xlu0 %v329
      %v331 = vpop.xlane.xlu0 %330
      %v332 = vrcp.pop %v331
      %v333 = vpack.c.bf16 %v328, %v328
      %334 = vrot.lane.b32.xlu0 %v161, 88
      %v335 = vpop.permute.xlu0 %334
      %v337 = vsel %vm162, %v333, 0
      %v340 = vsel %vm227, %v335, 0
      %342 = vmatprep.subr.bf16.mxu0 0
      %343 = vmatpush1.bf16.msra.mxu0 0
      %344 = vmatprep.subr.bf16.mxu0 0
      %345 = vmatpush1.bf16.msra.mxu0 0
      %346 = vmatprep.subr.bf16.mxu0 0
      %347 = vmatpush1.bf16.msra.mxu0 0
      %348 = vmatprep.subr.bf16.mxu0 0
      %349 = vmatpush1.bf16.msra.mxu0 0
      %350 = vmatprep.subr.bf16.mxu0 0
      %351 = vmatpush1.bf16.msra.mxu0 0
      %352 = vmatprep.subr.bf16.mxu0 0
      %353 = vmatpush1.bf16.msra.mxu0 0
      %354 = vmatprep.subr.bf16.mxu0 0
      %355 = vmatpush1.bf16.msra.mxu0 0
      %356 = vmatprep.subr.bf16.mxu0 0
      %357 = vmatpush1.bf16.msra.mxu0 %v340
      %358 = vmatprep.subr.bf16.mxu0 0
      %359 = vmatpush2.bf16.msra.mxu0 0
      %360 = vmatprep.subr.bf16.mxu0 0
      %361 = vmatpush2.bf16.msra.mxu0 0
      %362 = vmatprep.subr.bf16.mxu0 0
      %363 = vmatpush2.bf16.msra.mxu0 0
      %364 = vmatprep.subr.bf16.mxu0 0
      %365 = vmatpush2.bf16.msra.mxu0 0
      %366 = vmatprep.subr.bf16.mxu0 0
      %367 = vmatpush2.bf16.msra.mxu0 0
      %368 = vmatprep.subr.bf16.mxu0 0
      %369 = vmatpush2.bf16.msra.mxu0 0
      %370 = vmatprep.subr.bf16.mxu0 0
      %371 = vmatpush2.bf16.msra.mxu0 0
      %372 = vmatprep.subr.bf16.mxu0 0
      %373 = vmatpush2.bf16.msra.mxu0 0
      %374 = vmatprep.mubr.bf16.mxu0 0
      %375 = vmatmul.mubr.bf16.gmra.mxu0 %v337
      %v376 = vpop.f32.mrf.mxu0
      %v377 = vadd.f32 0.0, %v376
      %v378 = vpop.f32.mrf.mxu0
      %v379 = vpop.f32.mrf.mxu0
      %v380 = vpop.f32.mrf.mxu0
      %381 = vdwg.mxu0
      %v382 = vmul.f32 %v377, %v332
      %383 = vrot.lane.b32.xlu0 %v160, 112
      %v384 = vpop.permute.xlu0 %383
      %385 = vrot.lane.b32.xlu0 %v161, 112
      %v386 = vpop.permute.xlu0 %385
      %v388 = vsel %vm162, %v384, 0
      %v391 = vsel %vm162, %v386, 0
      %393 = vmatprep.subr.bf16.mxu0 0
      %394 = vmatpush1.bf16.xpose.msra.mxu0 0
      %395 = vmatprep.subr.bf16.mxu0 0
      %396 = vmatpush1.bf16.xpose.msra.mxu0 0
      %397 = vmatprep.subr.bf16.mxu0 0
      %398 = vmatpush1.bf16.xpose.msra.mxu0 0
      %399 = vmatprep.subr.bf16.mxu0 0
      %400 = vmatpush1.bf16.xpose.msra.mxu0 0
      %401 = vmatprep.subr.bf16.mxu0 0
      %402 = vmatpush1.bf16.xpose.msra.mxu0 0
      %403 = vmatprep.subr.bf16.mxu0 0
      %404 = vmatpush1.bf16.xpose.msra.mxu0 0
      %405 = vmatprep.subr.bf16.mxu0 0
      %406 = vmatpush1.bf16.xpose.msra.mxu0 0
      %407 = vmatprep.subr.bf16.mxu0 0
      %408 = vmatpush1.bf16.xpose.msra.mxu0 %v391
      %409 = vmatprep.subr.bf16.mxu0 0
      %410 = vmatpush2.bf16.xpose.msra.mxu0 0
      %411 = vmatprep.subr.bf16.mxu0 0
      %412 = vmatpush2.bf16.xpose.msra.mxu0 0
      %413 = vmatprep.subr.bf16.mxu0 0
      %414 = vmatpush2.bf16.xpose.msra.mxu0 0
      %415 = vmatprep.subr.bf16.mxu0 0
      %416 = vmatpush2.bf16.xpose.msra.mxu0 0
      %417 = vmatprep.subr.bf16.mxu0 0
      %418 = vmatpush2.bf16.xpose.msra.mxu0 0
      %419 = vmatprep.subr.bf16.mxu0 0
      %420 = vmatpush2.bf16.xpose.msra.mxu0 0
      %421 = vmatprep.subr.bf16.mxu0 0
      %422 = vmatpush2.bf16.xpose.msra.mxu0 0
      %423 = vmatprep.subr.bf16.mxu0 0
      %424 = vmatpush2.bf16.xpose.msra.mxu0 0
      %425 = vmatprep.mubr.bf16.mxu0 0
      %426 = vmatmul.mubr.bf16.gmra.mxu0 %v388
      %v427 = vpop.f32.mrf.mxu0
      %v428 = vadd.f32 0.0, %v427
      %v429 = vpop.f32.mrf.mxu0
      %v430 = vpop.f32.mrf.mxu0
      %v431 = vpop.f32.mrf.mxu0
      %432 = vdwg.mxu0
      %v433 = vsel %vm209, %v428, -inf
      %434 = vmax.xlane.f32.xlu0 %v433
      %v435 = vpop.xlane.xlu0 %434
      %v436 = vsub.f32 %v428, %v435
      %v437 = vmul.f32 %v436, 1.442695
      %v438 = vpow.pop %v437
      %v439 = vsel %vm209, %v438, 0.0
      %440 = vadd.xlane.f32.xlu0 %v439
      %v441 = vpop.xlane.xlu0 %440
      %v442 = vrcp.pop %v441
      %v443 = vpack.c.bf16 %v438, %v438
      %444 = vrot.lane.b32.xlu0 %v161, 80
      %v445 = vpop.permute.xlu0 %444
      %v447 = vsel %vm162, %v443, 0
      %v450 = vsel %vm227, %v445, 0
      %452 = vmatprep.subr.bf16.mxu0 0
      %453 = vmatpush1.bf16.msra.mxu0 0
      %454 = vmatprep.subr.bf16.mxu0 0
      %455 = vmatpush1.bf16.msra.mxu0 0
      %456 = vmatprep.subr.bf16.mxu0 0
      %457 = vmatpush1.bf16.msra.mxu0 0
      %458 = vmatprep.subr.bf16.mxu0 0
      %459 = vmatpush1.bf16.msra.mxu0 0
      %460 = vmatprep.subr.bf16.mxu0 0
      %461 = vmatpush1.bf16.msra.mxu0 0
      %462 = vmatprep.subr.bf16.mxu0 0
      %463 = vmatpush1.bf16.msra.mxu0 0
      %464 = vmatprep.subr.bf16.mxu0 0
      %465 = vmatpush1.bf16.msra.mxu0 0
      %466 = vmatprep.subr.bf16.mxu0 0
      %467 = vmatpush1.bf16.msra.mxu0 %v450
      %468 = vmatprep.subr.bf16.mxu0 0
      %469 = vmatpush2.bf16.msra.mxu0 0
      %470 = vmatprep.subr.bf16.mxu0 0
      %471 = vmatpush2.bf16.msra.mxu0 0
      %472 = vmatprep.subr.bf16.mxu0 0
      %473 = vmatpush2.bf16.msra.mxu0 0
      %474 = vmatprep.subr.bf16.mxu0 0
      %475 = vmatpush2.bf16.msra.mxu0 0
      %476 = vmatprep.subr.bf16.mxu0 0
      %477 = vmatpush2.bf16.msra.mxu0 0
      %478 = vmatprep.subr.bf16.mxu0 0
      %479 = vmatpush2.bf16.msra.mxu0 0
      %480 = vmatprep.subr.bf16.mxu0 0
      %481 = vmatpush2.bf16.msra.mxu0 0
      %482 = vmatprep.subr.bf16.mxu0 0
      %483 = vmatpush2.bf16.msra.mxu0 0
      %484 = vmatprep.mubr.bf16.mxu0 0
      %485 = vmatmul.mubr.bf16.gmra.mxu0 %v447
      %v486 = vpop.f32.mrf.mxu0
      %v487 = vadd.f32 0.0, %v486
      %v488 = vpop.f32.mrf.mxu0
      %v489 = vpop.f32.mrf.mxu0
      %v490 = vpop.f32.mrf.mxu0
      %491 = vdwg.mxu0
      %v492 = vmul.f32 %v487, %v442
      %493 = vrot.lane.b32.xlu0 %v160, 104
      %v494 = vpop.permute.xlu0 %493
      %495 = vrot.lane.b32.xlu0 %v161, 104
      %v496 = vpop.permute.xlu0 %495
      %v498 = vsel %vm162, %v494, 0
      %v501 = vsel %vm162, %v496, 0
      %503 = vmatprep.subr.bf16.mxu0 0
      %504 = vmatpush1.bf16.xpose.msra.mxu0 0
      %505 = vmatprep.subr.bf16.mxu0 0
      %506 = vmatpush1.bf16.xpose.msra.mxu0 0
      %507 = vmatprep.subr.bf16.mxu0 0
      %508 = vmatpush1.bf16.xpose.msra.mxu0 0
      %509 = vmatprep.subr.bf16.mxu0 0
      %510 = vmatpush1.bf16.xpose.msra.mxu0 0
      %511 = vmatprep.subr.bf16.mxu0 0
      %512 = vmatpush1.bf16.xpose.msra.mxu0 0
      %513 = vmatprep.subr.bf16.mxu0 0
      %514 = vmatpush1.bf16.xpose.msra.mxu0 0
      %515 = vmatprep.subr.bf16.mxu0 0
      %516 = vmatpush1.bf16.xpose.msra.mxu0 0
      %517 = vmatprep.subr.bf16.mxu0 0
      %518 = vmatpush1.bf16.xpose.msra.mxu0 %v501
      %519 = vmatprep.subr.bf16.mxu0 0
      %520 = vmatpush2.bf16.xpose.msra.mxu0 0
      %521 = vmatprep.subr.bf16.mxu0 0
      %522 = vmatpush2.bf16.xpose.msra.mxu0 0
      %523 = vmatprep.subr.bf16.mxu0 0
      %524 = vmatpush2.bf16.xpose.msra.mxu0 0
      %525 = vmatprep.subr.bf16.mxu0 0
      %526 = vmatpush2.bf16.xpose.msra.mxu0 0
      %527 = vmatprep.subr.bf16.mxu0 0
      %528 = vmatpush2.bf16.xpose.msra.mxu0 0
      %529 = vmatprep.subr.bf16.mxu0 0
      %530 = vmatpush2.bf16.xpose.msra.mxu0 0
      %531 = vmatprep.subr.bf16.mxu0 0
      %532 = vmatpush2.bf16.xpose.msra.mxu0 0
      %533 = vmatprep.subr.bf16.mxu0 0
      %534 = vmatpush2.bf16.xpose.msra.mxu0 0
      %535 = vmatprep.mubr.bf16.mxu0 0
      %536 = vmatmul.mubr.bf16.gmra.mxu0 %v498
      %v537 = vpop.f32.mrf.mxu0
      %v538 = vadd.f32 0.0, %v537
      %v539 = vpop.f32.mrf.mxu0
      %v540 = vpop.f32.mrf.mxu0
      %v541 = vpop.f32.mrf.mxu0
      %542 = vdwg.mxu0
      %v543 = vsel %vm209, %v538, -inf
      %544 = vmax.xlane.f32.xlu0 %v543
      %v545 = vpop.xlane.xlu0 %544
      %v546 = vsub.f32 %v538, %v545
      %v547 = vmul.f32 %v546, 1.442695
      %v548 = vpow.pop %v547
      %v549 = vsel %vm209, %v548, 0.0
      %550 = vadd.xlane.f32.xlu0 %v549
      %v551 = vpop.xlane.xlu0 %550
      %v552 = vrcp.pop %v551
      %v553 = vpack.c.bf16 %v548, %v548
      %554 = vrot.lane.b32.xlu0 %v161, 72
      %v555 = vpop.permute.xlu0 %554
      %v557 = vsel %vm162, %v553, 0
      %v560 = vsel %vm227, %v555, 0
      %562 = vmatprep.subr.bf16.mxu0 0
      %563 = vmatpush1.bf16.msra.mxu0 0
      %564 = vmatprep.subr.bf16.mxu0 0
      %565 = vmatpush1.bf16.msra.mxu0 0
      %566 = vmatprep.subr.bf16.mxu0 0
      %567 = vmatpush1.bf16.msra.mxu0 0
      %568 = vmatprep.subr.bf16.mxu0 0
      %569 = vmatpush1.bf16.msra.mxu0 0
      %570 = vmatprep.subr.bf16.mxu0 0
      %571 = vmatpush1.bf16.msra.mxu0 0
      %572 = vmatprep.subr.bf16.mxu0 0
      %573 = vmatpush1.bf16.msra.mxu0 0
      %574 = vmatprep.subr.bf16.mxu0 0
      %575 = vmatpush1.bf16.msra.mxu0 0
      %576 = vmatprep.subr.bf16.mxu0 0
      %577 = vmatpush1.bf16.msra.mxu0 %v560
      %578 = vmatprep.subr.bf16.mxu0 0
      %579 = vmatpush2.bf16.msra.mxu0 0
      %580 = vmatprep.subr.bf16.mxu0 0
      %581 = vmatpush2.bf16.msra.mxu0 0
      %582 = vmatprep.subr.bf16.mxu0 0
      %583 = vmatpush2.bf16.msra.mxu0 0
      %584 = vmatprep.subr.bf16.mxu0 0
      %585 = vmatpush2.bf16.msra.mxu0 0
      %586 = vmatprep.subr.bf16.mxu0 0
      %587 = vmatpush2.bf16.msra.mxu0 0
      %588 = vmatprep.subr.bf16.mxu0 0
      %589 = vmatpush2.bf16.msra.mxu0 0
      %590 = vmatprep.subr.bf16.mxu0 0
      %591 = vmatpush2.bf16.msra.mxu0 0
      %592 = vmatprep.subr.bf16.mxu0 0
      %593 = vmatpush2.bf16.msra.mxu0 0
      %594 = vmatprep.mubr.bf16.mxu0 0
      %595 = vmatmul.mubr.bf16.gmra.mxu0 %v557
      %v596 = vpop.f32.mrf.mxu0
      %v597 = vadd.f32 0.0, %v596
      %v598 = vpop.f32.mrf.mxu0
      %v599 = vpop.f32.mrf.mxu0
      %v600 = vpop.f32.mrf.mxu0
      %601 = vdwg.mxu0
      %v602 = vmul.f32 %v597, %v552
      %604 = vrot.lane.b32.xlu0 %v382, 8
      %v605 = vpop.permute.xlu0 %604
      %608 = vrot.lane.b32.xlu0 %v492, 16
      %v609 = vpop.permute.xlu0 %608
      %612 = vrot.lane.b32.xlu0 %v602, 24
      %v613 = vpop.permute.xlu0 %612
      %v615 = vsel %vm162, %v271, %v605
      %vm616 = vcmask 130048
      %v617 = vsel %vm616, %v615, %v609
      %vm618 = vcmask 195584
      %v619 = vsel %vm618, %v617, %v613
      %vm620 = vcmask 260096
      %621 = vst.msk [vmem:[%s155] sm:$0x7f] %vm620, %v619
      %p622 = scmp.lt.s32.totalorder %s13, 1
      %s623 = scalar_select %p622, %s13, 1
      %s624 = smul.addr %s623, 8
      %s625 = scalar_lea.vmem %s2, %s624
      // Predicated region
      $region29: #{transformer_forward.42} parent=27 // pred_check
        %p626 = pneg %p83
      $region30: #{transformer_forward.42} parent=27 // pred_check_branch
        %628 = sbr.rel (%p626) target = $region32
      $region31: #{transformer_forward.42} parent=27 // pred_region
        _
      $region32: #{transformer_forward.42} parent=27 // pred_fallthru
        _
    $region28: #{transformer_forward.42} parent=5 // pred_fallthru
      _
    %p629 = scmp.le.s32.totalorder 2, %s8
    // Predicated region
    $region33: #{transformer_forward.42} parent=5 // pred_check
      %p630 = pneg %p629
    $region34: #{transformer_forward.42} parent=5 // pred_check_branch
      %632 = sbr.rel (%p630) target = $region36
    $region35: #{transformer_forward.42} parent=5 // pred_region
      %s633 = ssub.s32 %s8, 2
      // Predicated region
      $region37: #{transformer_forward.42} parent=35 // pred_check
        %p634 = pneg %p89
      $region38: #{transformer_forward.42} parent=35 // pred_check_branch
        %636 = sbr.rel (%p634) target = $region40
      $region39: #{transformer_forward.42} parent=35 // pred_region
        %p637 = scmp.lt.s32.totalorder %s14, 1
        %s638 = scalar_select %p637, %s14, 1
        %s639 = smul.addr %s638, 8
        %s640 = scalar_lea.vmem %s2, %s639
      $region40: #{transformer_forward.42} parent=35 // pred_fallthru
        _
    $region36: #{transformer_forward.42} parent=5 // pred_fallthru
      _
  $region6: #{transformer_forward.42} parent=0 // loop_footer
    %s12 = sadd.s32 1, %s8
  $region7: #{transformer_forward.42} parent=0 // loop_footer_branch
    %7 = sbr.rel target = $region3
  $region8: #{transformer_forward.42} parent=0 // loop_exit
    _

</llo_original>
